<compile_context>
chip_gen: v7x
topology: tpu7x:2x2x1
jax: 0.10.0
libtpu: 0.0.40
codegen_flags: <defaults>
</compile_context>

<pallas_src>
import functools
import math

import jax
import jax.numpy as jnp
from jax.experimental import pallas as pl
from jax.experimental.pallas import tpu as pltpu


def _round_up(x, m):
    return ((x + m - 1) // m) * m


# Conservative cross-generation VMEM numbers: v7x has 64 MiB physical per TC,
# v5e/v6e have 128 MiB but 16/32 MiB scoped defaults which we override.
_VMEM_LIMIT_BYTES = 48 * 1024 * 1024
_VMEM_BUDGET_BYTES = 40 * 1024 * 1024


# ----------------------- generic tiled matmul + bias ------------------------
def _matmul_bias_kernel(x_ref, w_ref, b_ref, o_ref):
    o_ref[...] = (
        jnp.dot(x_ref[...].astype(w_ref.dtype), w_ref[...],
                preferred_element_type=jnp.float32)
        + b_ref[...]
    ).astype(o_ref.dtype)


def matmul_bias(x2d, w, b2d, *, block_m=256):
    """x2d: (M, K), w: (K, N) bf16, b2d: (1, N) f32 -> (M, N) f32.

    N is expected to already be a multiple of 128 (lane-dense stores).
    """
    M, K = x2d.shape
    N = w.shape[1]
    tm = M if M <= block_m else block_m
    Mp = _round_up(M, tm)
    xp = jnp.pad(x2d, ((0, Mp - M), (0, 0))) if Mp != M else x2d

    out = pl.pallas_call(
        _matmul_bias_kernel,
        out_shape=jax.ShapeDtypeStruct((Mp, N), jnp.float32),
        grid_spec=pltpu.PrefetchScalarGridSpec(
            num_scalar_prefetch=0,
            grid=(Mp // tm,),
            in_specs=[pl.BlockSpec((tm, K), lambda i: (i, 0)),
                      pl.BlockSpec((K, N), lambda i: (0, 0)),
                      pl.BlockSpec((1, N), lambda i: (0, 0))],
            out_specs=pl.BlockSpec((tm, N), lambda i: (i, 0))),
        compiler_params=pltpu.CompilerParams(
            dimension_semantics=("parallel",),
            vmem_limit_bytes=_VMEM_LIMIT_BYTES),
    )(xp, w, b2d)
    return out[:M] if Mp != M else out


# ----------------------- fused GRU recurrence kernel ------------------------
def _gru_fused_kernel(x_ref, wi_ref, bi_ref, wh_ref, bhn_ref, out_ref,
                      h_ref, gx_ref, *, tc, tb, Hp, unroll):
    """One grid step = one (batch block, time chunk).

    x_ref  : (tc, tb, D)   bf16  input chunk
    wi_ref : (D, 3Hp)      bf16  fused input weights (VMEM resident)
    bi_ref : (1, 3Hp)      f32   fused biases (b_ir+b_hr | b_iz+b_hz | b_in)
    wh_ref : (Hp, 3Hp)     bf16  fused hidden weights (VMEM resident)
    bhn_ref: (1, Hp)       f32   b_hn (stays inside the r-gate)
    out_ref: (tc, tb, Hp)  bf16  hidden states of this chunk
    h_ref  : (tb, Hp)      f32   hidden-state carry across time chunks
    gx_ref : (tc*tb, 3Hp)  f32   in-VMEM input projection for this chunk
    """
    chunk = pl.program_id(1)

    @pl.when(chunk == 0)
    def _():
        # init_states is None in GRUModel.forward -> zero initial hidden state
        h_ref[...] = jnp.zeros_like(h_ref)

    d_in = x_ref.shape[-1]
    # (1) whole-chunk input projection: one MXU-friendly matmul, no HBM trip.
    x2d = x_ref[...].reshape(tc * tb, d_in).astype(wi_ref.dtype)
    gx_ref[...] = (jnp.dot(x2d, wi_ref[...],
                           preferred_element_type=jnp.float32)
                   + bi_ref[...])

    bhn = jnp.broadcast_to(bhn_ref[...], (tb, Hp))      # hoisted out of loop

    # (2) serial recurrence over the chunk; h carried in VMEM scratch.
    def step(i, h):
        row = pl.multiple_of(i * tb, tb)
        g = gx_ref[pl.ds(row, tb), :]                               # (tb, 3Hp)
        gh = jnp.dot(h.astype(wh_ref.dtype), wh_ref[...],
                     preferred_element_type=jnp.float32)            # (tb, 3Hp)
        r = jax.nn.sigmoid(g[:, 0:Hp] + gh[:, 0:Hp])
        z = jax.nn.sigmoid(g[:, Hp:2 * Hp] + gh[:, Hp:2 * Hp])
        n = jnp.tanh(g[:, 2 * Hp:] + r * (gh[:, 2 * Hp:] + bhn))
        h_new = (1.0 - z) * n + z * h
        out_ref[i] = h_new.astype(out_ref.dtype)
        return h_new

    h_ref[...] = jax.lax.fori_loop(0, tc, step, h_ref[...], unroll=unroll)


def _recurrence_footprint_bytes(tc, tb, d_in, Hp):
    G = 3 * Hp
    x_blk = 2 * tc * tb * d_in * 2        # bf16 input chunk, double-buffered
    out_blk = 2 * tc * tb * Hp * 2        # bf16 output chunk, double-buffered
    gx_scr = tc * tb * G * 4              # f32 scratch
    weights = (d_in * G + Hp * G) * 2     # bf16, resident
    misc = tb * Hp * 4 + G * 4 + Hp * 4
    return x_blk + out_blk + gx_scr + weights + misc


def gru_recurrent_fused(x_tbd, w_i, b_i, w_h, b_hn, *,
                        time_chunk=128, batch_block=128):
    """x_tbd: (T, B, D) bf16 -> all hidden states (T, B, Hp) bf16."""
    T, B, d_in = x_tbd.shape
    Hp, G = w_h.shape

    # Batch blocking: multiple of 8 sublanes; leading "parallel" grid axis.
    tb = min(batch_block, _round_up(B, 8))
    Bp = _round_up(B, tb)
    # Time chunking: sized against the VMEM budget.
    tc = min(time_chunk, T)
    while tc > 8 and _recurrence_footprint_bytes(tc, tb, d_in, Hp) > _VMEM_BUDGET_BYTES:
        tc = max(8, tc // 2)
    Tp = _round_up(T, tc)

    x = x_tbd
    if (Tp, Bp) != (T, B):
        # NOTE: padded tail timesteps keep updating the h carry; outputs are
        # sliced below so results are correct (GRUModel never returns h_n).
        x = jnp.pad(x, ((0, Tp - T), (0, Bp - B), (0, 0)))

    unroll = 1
    for u in (8, 4, 2):
        if tc % u == 0:
            unroll = u
            break

    kernel = functools.partial(_gru_fused_kernel, tc=tc, tb=tb, Hp=Hp,
                               unroll=unroll)
    out = pl.pallas_call(
        kernel,
        out_shape=jax.ShapeDtypeStruct((Tp, Bp, Hp), jnp.bfloat16),
        grid_spec=pltpu.PrefetchScalarGridSpec(
            num_scalar_prefetch=0,
            grid=(Bp // tb, Tp // tc),
            in_specs=[pl.BlockSpec((tc, tb, d_in), lambda b, c: (c, b, 0)),
                      pl.BlockSpec((d_in, G), lambda b, c: (0, 0)),
                      pl.BlockSpec((1, G), lambda b, c: (0, 0)),
                      pl.BlockSpec((Hp, G), lambda b, c: (0, 0)),
                      pl.BlockSpec((1, Hp), lambda b, c: (0, 0))],
            out_specs=pl.BlockSpec((tc, tb, Hp), lambda b, c: (c, b, 0)),
            scratch_shapes=[pltpu.VMEM((tb, Hp), jnp.float32),
                            pltpu.VMEM((tc * tb, G), jnp.float32)]),
        # Batch blocks are independent -> "parallel" (shards across v7x's two
        # TensorCores); the time-chunk axis carries h -> must stay "arbitrary".
        compiler_params=pltpu.CompilerParams(
            dimension_semantics=("parallel", "arbitrary"),
            vmem_limit_bytes=_VMEM_LIMIT_BYTES),
    )(x, w_i, b_i, w_h, b_hn)
    if (Tp, Bp) != (T, B):
        out = out[:T, :B]
    return out


# ------------------------------ params / model ------------------------------
def init_gru_cell_params(key, input_size, hidden_size, *, in_padded,
                         weight_dtype=jnp.bfloat16):
    """PyTorch-equivalent uniform(-1/sqrt(H), 1/sqrt(H)) init, then gate
    fusion (order r, z, n), bias folding, and 128-lane padding of H."""
    H = hidden_size
    Hp = _round_up(H, 128)
    stdv = 1.0 / math.sqrt(H)
    ks = jax.random.split(key, 12)
    u = lambda k, s: jax.random.uniform(k, s, jnp.float32, -stdv, stdv)
    wir, whr = u(ks[0], (input_size, H)), u(ks[1], (H, H))
    wiz, whz = u(ks[2], (input_size, H)), u(ks[3], (H, H))
    win, whn = u(ks[4], (input_size, H)), u(ks[5], (H, H))
    bir, bhr = u(ks[6], (1, H)), u(ks[7], (1, H))
    biz, bhz = u(ks[8], (1, H)), u(ks[9], (1, H))
    bin_, bhn = u(ks[10], (1, H)), u(ks[11], (1, H))

    pad_cols = lambda w: jnp.pad(w, ((0, 0), (0, Hp - H)))
    pad_rows = lambda w, r: jnp.pad(w, ((0, r - w.shape[0]), (0, 0)))

    w_i = jnp.concatenate([pad_cols(wir), pad_cols(wiz), pad_cols(win)], axis=1)
    w_i = pad_rows(w_i, in_padded).astype(weight_dtype)            # (Dp, 3Hp)
    w_h = jnp.concatenate([pad_cols(whr), pad_cols(whz), pad_cols(whn)], axis=1)
    w_h = pad_rows(w_h, Hp).astype(weight_dtype)                   # (Hp, 3Hp)
    b_i = jnp.concatenate([pad_cols(bir + bhr), pad_cols(biz + bhz),
                           pad_cols(bin_)], axis=1)                # (1, 3Hp) f32
    b_hn = pad_cols(bhn)                                           # (1, Hp)  f32
    return {"w_i": w_i, "w_h": w_h, "b_i": b_i, "b_hn": b_hn}


def init_model_params(key, input_size, hidden_size, num_layers, output_size,
                      weight_dtype=jnp.bfloat16):
    H = hidden_size
    Hp = _round_up(H, 128)
    keys = jax.random.split(key, num_layers + 1)
    layers, in_sz, in_p = [], input_size, input_size
    for i in range(num_layers):
        layers.append(init_gru_cell_params(keys[i], in_sz, H, in_padded=in_p,
                                           weight_dtype=weight_dtype))
        in_sz, in_p = H, Hp
    stdv = 1.0 / math.sqrt(H)
    kw, kb = jax.random.split(keys[-1])
    fc_w = jax.random.uniform(kw, (H, output_size), jnp.float32, -stdv, stdv)
    fc_b = jax.random.uniform(kb, (1, output_size), jnp.float32, -stdv, stdv)
    Op = _round_up(output_size, 128)
    fc_w = jnp.pad(fc_w, ((0, Hp - H), (0, Op - output_size))).astype(weight_dtype)
    fc_b = jnp.pad(fc_b, ((0, 0), (0, Op - output_size)))
    return {"layers": layers, "fc_w": fc_w, "fc_b": fc_b}


@functools.partial(jax.jit, static_argnames=("output_size",))
def gru_model_forward(params, x_btd, *, output_size):
    """x_btd: (B, T, input_size) f32 -> (B, T, output_size) f32."""
    B, T, _ = x_btd.shape
    # Time-major hot path; cast to bf16 once (all downstream use is matmul).
    x = jnp.transpose(x_btd, (1, 0, 2)).astype(jnp.bfloat16)       # (T, B, D)
    for lp in params["layers"]:
        x = gru_recurrent_fused(x, lp["w_i"], lp["b_i"],
                                lp["w_h"], lp["b_hn"])             # (T, B, Hp) bf16
    Hp = x.shape[-1]
    out = matmul_bias(x.reshape(T * B, Hp), params["fc_w"], params["fc_b"])
    out = out[:, :output_size].reshape(T, B, output_size)
    return jnp.transpose(out, (1, 0, 2))                           # (B, T, O)


if __name__ == "__main__":
    input_size, hidden_size, num_layers, output_size = 16, 32, 2, 8
    B, T = 2, 8

    key = jax.random.PRNGKey(0)
    k_params, k_x = jax.random.split(key)
    params = init_model_params(k_params, input_size, hidden_size,
                               num_layers, output_size)
    x = jax.random.normal(k_x, (B, T, input_size), jnp.float32)

    y = gru_model_forward(params, x, output_size=output_size)
    jax.block_until_ready(y)
    assert y.shape == (B, T, output_size)
    print("KERNEL_OK")
</pallas_src>

<mosaic_0001>
module attributes {stable_mosaic.version = 11 : i64} {
  func.func @_gru_fused_kernel(%arg0: i32, %arg1: i32, %arg2: memref<8x8x16xbf16, #tpu.memory_space<vmem>>, %arg3: memref<16x384xbf16, #tpu.memory_space<vmem>>, %arg4: memref<1x384xf32, #tpu.memory_space<vmem>>, %arg5: memref<128x384xbf16, #tpu.memory_space<vmem>>, %arg6: memref<1x128xf32, #tpu.memory_space<vmem>>, %arg7: memref<8x8x128xbf16, #tpu.memory_space<vmem>>, %arg8: memref<8x128xf32, #tpu.memory_space<vmem>>, %arg9: memref<64x384xf32, #tpu.memory_space<vmem>>) attributes {dimension_semantics = [#tpu.dimension_semantics<parallel>, #tpu.dimension_semantics<arbitrary>], iteration_bounds = array<i64: 1, 1>, scalar_prefetch = 0 : i64, scratch_operands = 2 : i64, tpu.core_type = #tpu.core_type<tc>, window_params = [{transform_indices = @transform_0, window_bounds = array<i64: 8, 8, 16>}, {pipeline_mode = #tpu.pipeline_mode<synchronous>, transform_indices = @transform_1, window_bounds = array<i64: 16, 384>}, {pipeline_mode = #tpu.pipeline_mode<synchronous>, transform_indices = @transform_2, window_bounds = array<i64: 1, 384>}, {pipeline_mode = #tpu.pipeline_mode<synchronous>, transform_indices = @transform_3, window_bounds = array<i64: 128, 384>}, {pipeline_mode = #tpu.pipeline_mode<synchronous>, transform_indices = @transform_4, window_bounds = array<i64: 1, 128>}, {transform_indices = @transform_5, window_bounds = array<i64: 8, 8, 128>}]} {
    %c0_i32 = arith.constant 0 : i32
    %0 = arith.cmpi eq, %arg1, %c0_i32 : i32
    %1 = arith.extui %0 : i1 to i32
    %c0_i32_0 = arith.constant 0 : i32
    %2 = arith.cmpi ne, %1, %c0_i32_0 : i32
    scf.if %2 {
      %cst_96 = arith.constant 0.000000e+00 : f32
      %328 = vector.broadcast %cst_96 : f32 to vector<8x128xf32>
      %c0_97 = arith.constant 0 : index
      %c0_98 = arith.constant 0 : index
      %329 = vector.load %arg8[%c0_97, %c0_98] : memref<8x128xf32, #tpu.memory_space<vmem>>, vector<8x128xf32>
      tpu.vector_store %arg8[%c0_97, %c0_98], %328 {strides = array<i32>} : memref<8x128xf32, #tpu.memory_space<vmem>>, vector<8x128xf32>,
    } else {
    }
    %c0 = arith.constant 0 : index
    %c0_1 = arith.constant 0 : index
    %c0_2 = arith.constant 0 : index
    %3 = vector.load %arg2[%c0, %c0_1, %c0_2] : memref<8x8x16xbf16, #tpu.memory_space<vmem>>, vector<8x8x16xbf16>
    %4 = vector.shape_cast %3 : vector<8x8x16xbf16> to vector<64x16xbf16>
    %c0_3 = arith.constant 0 : index
    %c0_4 = arith.constant 0 : index
    %5 = vector.load %arg3[%c0_3, %c0_4] : memref<16x384xbf16, #tpu.memory_space<vmem>>, vector<16x384xbf16>
    %cst = arith.constant dense<0.000000e+00> : vector<64x384xf32>
    %6 = tpu.matmul %4, %5, %cst {dimension_numbers = #tpu.dot_dimension_numbers<[1], [0], [0], [1], [0, 0, 1, 1], [], []>} : vector<64x16xbf16>, vector<16x384xbf16>, vector<64x384xf32> -> vector<64x384xf32>
    %c0_5 = arith.constant 0 : index
    %c0_6 = arith.constant 0 : index
    %7 = vector.load %arg4[%c0_5, %c0_6] : memref<1x384xf32, #tpu.memory_space<vmem>>, vector<1x384xf32>
    %8 = vector.broadcast %7 : vector<1x384xf32> to vector<64x384xf32>
    %9 = arith.addf %6, %8 : vector<64x384xf32>
    %c0_7 = arith.constant 0 : index
    %c0_8 = arith.constant 0 : index
    %10 = vector.load %arg9[%c0_7, %c0_8] : memref<64x384xf32, #tpu.memory_space<vmem>>, vector<64x384xf32>
    tpu.vector_store %arg9[%c0_7, %c0_8], %9 {strides = array<i32>} : memref<64x384xf32, #tpu.memory_space<vmem>>, vector<64x384xf32>,
    %c0_9 = arith.constant 0 : index
    %c0_10 = arith.constant 0 : index
    %11 = vector.load %arg6[%c0_9, %c0_10] : memref<1x128xf32, #tpu.memory_space<vmem>>, vector<1x128xf32>
    %12 = vector.shape_cast %11 : vector<1x128xf32> to vector<1x128xf32>
    %13 = vector.broadcast %12 : vector<1x128xf32> to vector<8x128xf32>
    %c0_11 = arith.constant 0 : index
    %c0_12 = arith.constant 0 : index
    %14 = vector.load %arg8[%c0_11, %c0_12] : memref<8x128xf32, #tpu.memory_space<vmem>>, vector<8x128xf32>
    %c0_i32_13 = arith.constant 0 : i32
    %c8_i32 = arith.constant 8 : i32
    %15 = arith.muli %c0_i32_13, %c8_i32 : i32
    %16 = tpu.assume_multiple %15, 8 : i32
    %17 = arith.index_cast %16 : i32 to index
    %c0_14 = arith.constant 0 : index
    %18 = vector.load %arg9[%17, %c0_14] : memref<64x384xf32, #tpu.memory_space<vmem>>, vector<8x384xf32>
    %19 = arith.truncf %14 : vector<8x128xf32> to vector<8x128xbf16>
    %c0_15 = arith.constant 0 : index
    %c0_16 = arith.constant 0 : index
    %20 = vector.load %arg5[%c0_15, %c0_16] : memref<128x384xbf16, #tpu.memory_space<vmem>>, vector<128x384xbf16>
    %cst_17 = arith.constant dense<0.000000e+00> : vector<8x384xf32>
    %21 = tpu.matmul %19, %20, %cst_17 {dimension_numbers = #tpu.dot_dimension_numbers<[1], [0], [0], [1], [0, 0, 1, 1], [], []>} : vector<8x128xbf16>, vector<128x384xbf16>, vector<8x384xf32> -> vector<8x384xf32>
    %22 = vector.extract_strided_slice %18 {offsets = [0, 0], sizes = [8, 128], strides = [1, 1]} : vector<8x384xf32> to vector<8x128xf32>
    %23 = vector.extract_strided_slice %21 {offsets = [0, 0], sizes = [8, 128], strides = [1, 1]} : vector<8x384xf32> to vector<8x128xf32>
    %24 = arith.addf %22, %23 : vector<8x128xf32>
    %25 = arith.negf %24 : vector<8x128xf32>
    %26 = math.exp %25 : vector<8x128xf32>
    %cst_18 = arith.constant 1.000000e+00 : f32
    %27 = vector.broadcast %cst_18 : f32 to vector<8x128xf32>
    %28 = arith.addf %27, %26 : vector<8x128xf32>
    %29 = arith.divf %27, %28 : vector<8x128xf32>
    %30 = vector.extract_strided_slice %18 {offsets = [0, 128], sizes = [8, 128], strides = [1, 1]} : vector<8x384xf32> to vector<8x128xf32>
    %31 = vector.extract_strided_slice %21 {offsets = [0, 128], sizes = [8, 128], strides = [1, 1]} : vector<8x384xf32> to vector<8x128xf32>
    %32 = arith.addf %30, %31 : vector<8x128xf32>
    %33 = arith.negf %32 : vector<8x128xf32>
    %34 = math.exp %33 : vector<8x128xf32>
    %cst_19 = arith.constant 1.000000e+00 : f32
    %35 = vector.broadcast %cst_19 : f32 to vector<8x128xf32>
    %36 = arith.addf %35, %34 : vector<8x128xf32>
    %37 = arith.divf %35, %36 : vector<8x128xf32>
    %38 = vector.extract_strided_slice %18 {offsets = [0, 256], sizes = [8, 128], strides = [1, 1]} : vector<8x384xf32> to vector<8x128xf32>
    %39 = vector.extract_strided_slice %21 {offsets = [0, 256], sizes = [8, 128], strides = [1, 1]} : vector<8x384xf32> to vector<8x128xf32>
    %40 = arith.addf %39, %13 : vector<8x128xf32>
    %41 = arith.mulf %29, %40 : vector<8x128xf32>
    %42 = arith.addf %38, %41 : vector<8x128xf32>
    %43 = math.tanh %42 : vector<8x128xf32>
    %cst_20 = arith.constant 1.000000e+00 : f32
    %44 = vector.broadcast %cst_20 : f32 to vector<8x128xf32>
    %45 = arith.subf %44, %37 : vector<8x128xf32>
    %46 = arith.mulf %45, %43 : vector<8x128xf32>
    %47 = arith.mulf %37, %14 : vector<8x128xf32>
    %48 = arith.addf %46, %47 : vector<8x128xf32>
    %49 = arith.truncf %48 : vector<8x128xf32> to vector<8x128xbf16>
    %50 = arith.index_cast %c0_i32_13 : i32 to index
    %c0_21 = arith.constant 0 : index
    %c0_22 = arith.constant 0 : index
    %51 = vector.load %arg7[%50, %c0_21, %c0_22] : memref<8x8x128xbf16, #tpu.memory_space<vmem>>, vector<1x8x128xbf16>
    %52 = vector.shape_cast %51 : vector<1x8x128xbf16> to vector<8x128xbf16>
    %53 = vector.shape_cast %49 : vector<8x128xbf16> to vector<1x8x128xbf16>
    tpu.vector_store %arg7[%50, %c0_21, %c0_22], %53 {strides = array<i32>} : memref<8x8x128xbf16, #tpu.memory_space<vmem>>, vector<1x8x128xbf16>,
    %c1_i32 = arith.constant 1 : i32
    %c8_i32_23 = arith.constant 8 : i32
    %54 = arith.muli %c1_i32, %c8_i32_23 : i32
    %55 = tpu.assume_multiple %54, 8 : i32
    %56 = arith.index_cast %55 : i32 to index
    %c0_24 = arith.constant 0 : index
    %57 = vector.load %arg9[%56, %c0_24] : memref<64x384xf32, #tpu.memory_space<vmem>>, vector<8x384xf32>
    %58 = arith.truncf %48 : vector<8x128xf32> to vector<8x128xbf16>
    %c0_25 = arith.constant 0 : index
    %c0_26 = arith.constant 0 : index
    %59 = vector.load %arg5[%c0_25, %c0_26] : memref<128x384xbf16, #tpu.memory_space<vmem>>, vector<128x384xbf16>
    %cst_27 = arith.constant dense<0.000000e+00> : vector<8x384xf32>
    %60 = tpu.matmul %58, %59, %cst_27 {dimension_numbers = #tpu.dot_dimension_numbers<[1], [0], [0], [1], [0, 0, 1, 1], [], []>} : vector<8x128xbf16>, vector<128x384xbf16>, vector<8x384xf32> -> vector<8x384xf32>
    %61 = vector.extract_strided_slice %57 {offsets = [0, 0], sizes = [8, 128], strides = [1, 1]} : vector<8x384xf32> to vector<8x128xf32>
    %62 = vector.extract_strided_slice %60 {offsets = [0, 0], sizes = [8, 128], strides = [1, 1]} : vector<8x384xf32> to vector<8x128xf32>
    %63 = arith.addf %61, %62 : vector<8x128xf32>
    %64 = arith.negf %63 : vector<8x128xf32>
    %65 = math.exp %64 : vector<8x128xf32>
    %cst_28 = arith.constant 1.000000e+00 : f32
    %66 = vector.broadcast %cst_28 : f32 to vector<8x128xf32>
    %67 = arith.addf %66, %65 : vector<8x128xf32>
    %68 = arith.divf %66, %67 : vector<8x128xf32>
    %69 = vector.extract_strided_slice %57 {offsets = [0, 128], sizes = [8, 128], strides = [1, 1]} : vector<8x384xf32> to vector<8x128xf32>
    %70 = vector.extract_strided_slice %60 {offsets = [0, 128], sizes = [8, 128], strides = [1, 1]} : vector<8x384xf32> to vector<8x128xf32>
    %71 = arith.addf %69, %70 : vector<8x128xf32>
    %72 = arith.negf %71 : vector<8x128xf32>
    %73 = math.exp %72 : vector<8x128xf32>
    %cst_29 = arith.constant 1.000000e+00 : f32
    %74 = vector.broadcast %cst_29 : f32 to vector<8x128xf32>
    %75 = arith.addf %74, %73 : vector<8x128xf32>
    %76 = arith.divf %74, %75 : vector<8x128xf32>
    %77 = vector.extract_strided_slice %57 {offsets = [0, 256], sizes = [8, 128], strides = [1, 1]} : vector<8x384xf32> to vector<8x128xf32>
    %78 = vector.extract_strided_slice %60 {offsets = [0, 256], sizes = [8, 128], strides = [1, 1]} : vector<8x384xf32> to vector<8x128xf32>
    %79 = arith.addf %78, %13 : vector<8x128xf32>
    %80 = arith.mulf %68, %79 : vector<8x128xf32>
    %81 = arith.addf %77, %80 : vector<8x128xf32>
    %82 = math.tanh %81 : vector<8x128xf32>
    %cst_30 = arith.constant 1.000000e+00 : f32
    %83 = vector.broadcast %cst_30 : f32 to vector<8x128xf32>
    %84 = arith.subf %83, %76 : vector<8x128xf32>
    %85 = arith.mulf %84, %82 : vector<8x128xf32>
    %86 = arith.mulf %76, %48 : vector<8x128xf32>
    %87 = arith.addf %85, %86 : vector<8x128xf32>
    %88 = arith.truncf %87 : vector<8x128xf32> to vector<8x128xbf16>
    %89 = arith.index_cast %c1_i32 : i32 to index
    %c0_31 = arith.constant 0 : index
    %c0_32 = arith.constant 0 : index
    %90 = vector.load %arg7[%89, %c0_31, %c0_32] : memref<8x8x128xbf16, #tpu.memory_space<vmem>>, vector<1x8x128xbf16>
    %91 = vector.shape_cast %90 : vector<1x8x128xbf16> to vector<8x128xbf16>
    %92 = vector.shape_cast %88 : vector<8x128xbf16> to vector<1x8x128xbf16>
    tpu.vector_store %arg7[%89, %c0_31, %c0_32], %92 {strides = array<i32>} : memref<8x8x128xbf16, #tpu.memory_space<vmem>>, vector<1x8x128xbf16>,
    %c2_i32 = arith.constant 2 : i32
    %c8_i32_33 = arith.constant 8 : i32
    %93 = arith.muli %c2_i32, %c8_i32_33 : i32
    %94 = tpu.assume_multiple %93, 8 : i32
    %95 = arith.index_cast %94 : i32 to index
    %c0_34 = arith.constant 0 : index
    %96 = vector.load %arg9[%95, %c0_34] : memref<64x384xf32, #tpu.memory_space<vmem>>, vector<8x384xf32>
    %97 = arith.truncf %87 : vector<8x128xf32> to vector<8x128xbf16>
    %c0_35 = arith.constant 0 : index
    %c0_36 = arith.constant 0 : index
    %98 = vector.load %arg5[%c0_35, %c0_36] : memref<128x384xbf16, #tpu.memory_space<vmem>>, vector<128x384xbf16>
    %cst_37 = arith.constant dense<0.000000e+00> : vector<8x384xf32>
    %99 = tpu.matmul %97, %98, %cst_37 {dimension_numbers = #tpu.dot_dimension_numbers<[1], [0], [0], [1], [0, 0, 1, 1], [], []>} : vector<8x128xbf16>, vector<128x384xbf16>, vector<8x384xf32> -> vector<8x384xf32>
    %100 = vector.extract_strided_slice %96 {offsets = [0, 0], sizes = [8, 128], strides = [1, 1]} : vector<8x384xf32> to vector<8x128xf32>
    %101 = vector.extract_strided_slice %99 {offsets = [0, 0], sizes = [8, 128], strides = [1, 1]} : vector<8x384xf32> to vector<8x128xf32>
    %102 = arith.addf %100, %101 : vector<8x128xf32>
    %103 = arith.negf %102 : vector<8x128xf32>
    %104 = math.exp %103 : vector<8x128xf32>
    %cst_38 = arith.constant 1.000000e+00 : f32
    %105 = vector.broadcast %cst_38 : f32 to vector<8x128xf32>
    %106 = arith.addf %105, %104 : vector<8x128xf32>
    %107 = arith.divf %105, %106 : vector<8x128xf32>
    %108 = vector.extract_strided_slice %96 {offsets = [0, 128], sizes = [8, 128], strides = [1, 1]} : vector<8x384xf32> to vector<8x128xf32>
    %109 = vector.extract_strided_slice %99 {offsets = [0, 128], sizes = [8, 128], strides = [1, 1]} : vector<8x384xf32> to vector<8x128xf32>
    %110 = arith.addf %108, %109 : vector<8x128xf32>
    %111 = arith.negf %110 : vector<8x128xf32>
    %112 = math.exp %111 : vector<8x128xf32>
    %cst_39 = arith.constant 1.000000e+00 : f32
    %113 = vector.broadcast %cst_39 : f32 to vector<8x128xf32>
    %114 = arith.addf %113, %112 : vector<8x128xf32>
    %115 = arith.divf %113, %114 : vector<8x128xf32>
    %116 = vector.extract_strided_slice %96 {offsets = [0, 256], sizes = [8, 128], strides = [1, 1]} : vector<8x384xf32> to vector<8x128xf32>
    %117 = vector.extract_strided_slice %99 {offsets = [0, 256], sizes = [8, 128], strides = [1, 1]} : vector<8x384xf32> to vector<8x128xf32>
    %118 = arith.addf %117, %13 : vector<8x128xf32>
    %119 = arith.mulf %107, %118 : vector<8x128xf32>
    %120 = arith.addf %116, %119 : vector<8x128xf32>
    %121 = math.tanh %120 : vector<8x128xf32>
    %cst_40 = arith.constant 1.000000e+00 : f32
    %122 = vector.broadcast %cst_40 : f32 to vector<8x128xf32>
    %123 = arith.subf %122, %115 : vector<8x128xf32>
    %124 = arith.mulf %123, %121 : vector<8x128xf32>
    %125 = arith.mulf %115, %87 : vector<8x128xf32>
    %126 = arith.addf %124, %125 : vector<8x128xf32>
    %127 = arith.truncf %126 : vector<8x128xf32> to vector<8x128xbf16>
    %128 = arith.index_cast %c2_i32 : i32 to index
    %c0_41 = arith.constant 0 : index
    %c0_42 = arith.constant 0 : index
    %129 = vector.load %arg7[%128, %c0_41, %c0_42] : memref<8x8x128xbf16, #tpu.memory_space<vmem>>, vector<1x8x128xbf16>
    %130 = vector.shape_cast %129 : vector<1x8x128xbf16> to vector<8x128xbf16>
    %131 = vector.shape_cast %127 : vector<8x128xbf16> to vector<1x8x128xbf16>
    tpu.vector_store %arg7[%128, %c0_41, %c0_42], %131 {strides = array<i32>} : memref<8x8x128xbf16, #tpu.memory_space<vmem>>, vector<1x8x128xbf16>,
    %c3_i32 = arith.constant 3 : i32
    %c8_i32_43 = arith.constant 8 : i32
    %132 = arith.muli %c3_i32, %c8_i32_43 : i32
    %133 = tpu.assume_multiple %132, 8 : i32
    %134 = arith.index_cast %133 : i32 to index
    %c0_44 = arith.constant 0 : index
    %135 = vector.load %arg9[%134, %c0_44] : memref<64x384xf32, #tpu.memory_space<vmem>>, vector<8x384xf32>
    %136 = arith.truncf %126 : vector<8x128xf32> to vector<8x128xbf16>
    %c0_45 = arith.constant 0 : index
    %c0_46 = arith.constant 0 : index
    %137 = vector.load %arg5[%c0_45, %c0_46] : memref<128x384xbf16, #tpu.memory_space<vmem>>, vector<128x384xbf16>
    %cst_47 = arith.constant dense<0.000000e+00> : vector<8x384xf32>
    %138 = tpu.matmul %136, %137, %cst_47 {dimension_numbers = #tpu.dot_dimension_numbers<[1], [0], [0], [1], [0, 0, 1, 1], [], []>} : vector<8x128xbf16>, vector<128x384xbf16>, vector<8x384xf32> -> vector<8x384xf32>
    %139 = vector.extract_strided_slice %135 {offsets = [0, 0], sizes = [8, 128], strides = [1, 1]} : vector<8x384xf32> to vector<8x128xf32>
    %140 = vector.extract_strided_slice %138 {offsets = [0, 0], sizes = [8, 128], strides = [1, 1]} : vector<8x384xf32> to vector<8x128xf32>
    %141 = arith.addf %139, %140 : vector<8x128xf32>
    %142 = arith.negf %141 : vector<8x128xf32>
    %143 = math.exp %142 : vector<8x128xf32>
    %cst_48 = arith.constant 1.000000e+00 : f32
    %144 = vector.broadcast %cst_48 : f32 to vector<8x128xf32>
    %145 = arith.addf %144, %143 : vector<8x128xf32>
    %146 = arith.divf %144, %145 : vector<8x128xf32>
    %147 = vector.extract_strided_slice %135 {offsets = [0, 128], sizes = [8, 128], strides = [1, 1]} : vector<8x384xf32> to vector<8x128xf32>
    %148 = vector.extract_strided_slice %138 {offsets = [0, 128], sizes = [8, 128], strides = [1, 1]} : vector<8x384xf32> to vector<8x128xf32>
    %149 = arith.addf %147, %148 : vector<8x128xf32>
    %150 = arith.negf %149 : vector<8x128xf32>
    %151 = math.exp %150 : vector<8x128xf32>
    %cst_49 = arith.constant 1.000000e+00 : f32
    %152 = vector.broadcast %cst_49 : f32 to vector<8x128xf32>
    %153 = arith.addf %152, %151 : vector<8x128xf32>
    %154 = arith.divf %152, %153 : vector<8x128xf32>
    %155 = vector.extract_strided_slice %135 {offsets = [0, 256], sizes = [8, 128], strides = [1, 1]} : vector<8x384xf32> to vector<8x128xf32>
    %156 = vector.extract_strided_slice %138 {offsets = [0, 256], sizes = [8, 128], strides = [1, 1]} : vector<8x384xf32> to vector<8x128xf32>
    %157 = arith.addf %156, %13 : vector<8x128xf32>
    %158 = arith.mulf %146, %157 : vector<8x128xf32>
    %159 = arith.addf %155, %158 : vector<8x128xf32>
    %160 = math.tanh %159 : vector<8x128xf32>
    %cst_50 = arith.constant 1.000000e+00 : f32
    %161 = vector.broadcast %cst_50 : f32 to vector<8x128xf32>
    %162 = arith.subf %161, %154 : vector<8x128xf32>
    %163 = arith.mulf %162, %160 : vector<8x128xf32>
    %164 = arith.mulf %154, %126 : vector<8x128xf32>
    %165 = arith.addf %163, %164 : vector<8x128xf32>
    %166 = arith.truncf %165 : vector<8x128xf32> to vector<8x128xbf16>
    %167 = arith.index_cast %c3_i32 : i32 to index
    %c0_51 = arith.constant 0 : index
    %c0_52 = arith.constant 0 : index
    %168 = vector.load %arg7[%167, %c0_51, %c0_52] : memref<8x8x128xbf16, #tpu.memory_space<vmem>>, vector<1x8x128xbf16>
    %169 = vector.shape_cast %168 : vector<1x8x128xbf16> to vector<8x128xbf16>
    %170 = vector.shape_cast %166 : vector<8x128xbf16> to vector<1x8x128xbf16>
    tpu.vector_store %arg7[%167, %c0_51, %c0_52], %170 {strides = array<i32>} : memref<8x8x128xbf16, #tpu.memory_space<vmem>>, vector<1x8x128xbf16>,
    %c4_i32 = arith.constant 4 : i32
    %c8_i32_53 = arith.constant 8 : i32
    %171 = arith.muli %c4_i32, %c8_i32_53 : i32
    %172 = tpu.assume_multiple %171, 8 : i32
    %173 = arith.index_cast %172 : i32 to index
    %c0_54 = arith.constant 0 : index
    %174 = vector.load %arg9[%173, %c0_54] : memref<64x384xf32, #tpu.memory_space<vmem>>, vector<8x384xf32>
    %175 = arith.truncf %165 : vector<8x128xf32> to vector<8x128xbf16>
    %c0_55 = arith.constant 0 : index
    %c0_56 = arith.constant 0 : index
    %176 = vector.load %arg5[%c0_55, %c0_56] : memref<128x384xbf16, #tpu.memory_space<vmem>>, vector<128x384xbf16>
    %cst_57 = arith.constant dense<0.000000e+00> : vector<8x384xf32>
    %177 = tpu.matmul %175, %176, %cst_57 {dimension_numbers = #tpu.dot_dimension_numbers<[1], [0], [0], [1], [0, 0, 1, 1], [], []>} : vector<8x128xbf16>, vector<128x384xbf16>, vector<8x384xf32> -> vector<8x384xf32>
    %178 = vector.extract_strided_slice %174 {offsets = [0, 0], sizes = [8, 128], strides = [1, 1]} : vector<8x384xf32> to vector<8x128xf32>
    %179 = vector.extract_strided_slice %177 {offsets = [0, 0], sizes = [8, 128], strides = [1, 1]} : vector<8x384xf32> to vector<8x128xf32>
    %180 = arith.addf %178, %179 : vector<8x128xf32>
    %181 = arith.negf %180 : vector<8x128xf32>
    %182 = math.exp %181 : vector<8x128xf32>
    %cst_58 = arith.constant 1.000000e+00 : f32
    %183 = vector.broadcast %cst_58 : f32 to vector<8x128xf32>
    %184 = arith.addf %183, %182 : vector<8x128xf32>
    %185 = arith.divf %183, %184 : vector<8x128xf32>
    %186 = vector.extract_strided_slice %174 {offsets = [0, 128], sizes = [8, 128], strides = [1, 1]} : vector<8x384xf32> to vector<8x128xf32>
    %187 = vector.extract_strided_slice %177 {offsets = [0, 128], sizes = [8, 128], strides = [1, 1]} : vector<8x384xf32> to vector<8x128xf32>
    %188 = arith.addf %186, %187 : vector<8x128xf32>
    %189 = arith.negf %188 : vector<8x128xf32>
    %190 = math.exp %189 : vector<8x128xf32>
    %cst_59 = arith.constant 1.000000e+00 : f32
    %191 = vector.broadcast %cst_59 : f32 to vector<8x128xf32>
    %192 = arith.addf %191, %190 : vector<8x128xf32>
    %193 = arith.divf %191, %192 : vector<8x128xf32>
    %194 = vector.extract_strided_slice %174 {offsets = [0, 256], sizes = [8, 128], strides = [1, 1]} : vector<8x384xf32> to vector<8x128xf32>
    %195 = vector.extract_strided_slice %177 {offsets = [0, 256], sizes = [8, 128], strides = [1, 1]} : vector<8x384xf32> to vector<8x128xf32>
    %196 = arith.addf %195, %13 : vector<8x128xf32>
    %197 = arith.mulf %185, %196 : vector<8x128xf32>
    %198 = arith.addf %194, %197 : vector<8x128xf32>
    %199 = math.tanh %198 : vector<8x128xf32>
    %cst_60 = arith.constant 1.000000e+00 : f32
    %200 = vector.broadcast %cst_60 : f32 to vector<8x128xf32>
    %201 = arith.subf %200, %193 : vector<8x128xf32>
    %202 = arith.mulf %201, %199 : vector<8x128xf32>
    %203 = arith.mulf %193, %165 : vector<8x128xf32>
    %204 = arith.addf %202, %203 : vector<8x128xf32>
    %205 = arith.truncf %204 : vector<8x128xf32> to vector<8x128xbf16>
    %206 = arith.index_cast %c4_i32 : i32 to index
    %c0_61 = arith.constant 0 : index
    %c0_62 = arith.constant 0 : index
    %207 = vector.load %arg7[%206, %c0_61, %c0_62] : memref<8x8x128xbf16, #tpu.memory_space<vmem>>, vector<1x8x128xbf16>
    %208 = vector.shape_cast %207 : vector<1x8x128xbf16> to vector<8x128xbf16>
    %209 = vector.shape_cast %205 : vector<8x128xbf16> to vector<1x8x128xbf16>
    tpu.vector_store %arg7[%206, %c0_61, %c0_62], %209 {strides = array<i32>} : memref<8x8x128xbf16, #tpu.memory_space<vmem>>, vector<1x8x128xbf16>,
    %c5_i32 = arith.constant 5 : i32
    %c8_i32_63 = arith.constant 8 : i32
    %210 = arith.muli %c5_i32, %c8_i32_63 : i32
    %211 = tpu.assume_multiple %210, 8 : i32
    %212 = arith.index_cast %211 : i32 to index
    %c0_64 = arith.constant 0 : index
    %213 = vector.load %arg9[%212, %c0_64] : memref<64x384xf32, #tpu.memory_space<vmem>>, vector<8x384xf32>
    %214 = arith.truncf %204 : vector<8x128xf32> to vector<8x128xbf16>
    %c0_65 = arith.constant 0 : index
    %c0_66 = arith.constant 0 : index
    %215 = vector.load %arg5[%c0_65, %c0_66] : memref<128x384xbf16, #tpu.memory_space<vmem>>, vector<128x384xbf16>
    %cst_67 = arith.constant dense<0.000000e+00> : vector<8x384xf32>
    %216 = tpu.matmul %214, %215, %cst_67 {dimension_numbers = #tpu.dot_dimension_numbers<[1], [0], [0], [1], [0, 0, 1, 1], [], []>} : vector<8x128xbf16>, vector<128x384xbf16>, vector<8x384xf32> -> vector<8x384xf32>
    %217 = vector.extract_strided_slice %213 {offsets = [0, 0], sizes = [8, 128], strides = [1, 1]} : vector<8x384xf32> to vector<8x128xf32>
    %218 = vector.extract_strided_slice %216 {offsets = [0, 0], sizes = [8, 128], strides = [1, 1]} : vector<8x384xf32> to vector<8x128xf32>
    %219 = arith.addf %217, %218 : vector<8x128xf32>
    %220 = arith.negf %219 : vector<8x128xf32>
    %221 = math.exp %220 : vector<8x128xf32>
    %cst_68 = arith.constant 1.000000e+00 : f32
    %222 = vector.broadcast %cst_68 : f32 to vector<8x128xf32>
    %223 = arith.addf %222, %221 : vector<8x128xf32>
    %224 = arith.divf %222, %223 : vector<8x128xf32>
    %225 = vector.extract_strided_slice %213 {offsets = [0, 128], sizes = [8, 128], strides = [1, 1]} : vector<8x384xf32> to vector<8x128xf32>
    %226 = vector.extract_strided_slice %216 {offsets = [0, 128], sizes = [8, 128], strides = [1, 1]} : vector<8x384xf32> to vector<8x128xf32>
    %227 = arith.addf %225, %226 : vector<8x128xf32>
    %228 = arith.negf %227 : vector<8x128xf32>
    %229 = math.exp %228 : vector<8x128xf32>
    %cst_69 = arith.constant 1.000000e+00 : f32
    %230 = vector.broadcast %cst_69 : f32 to vector<8x128xf32>
    %231 = arith.addf %230, %229 : vector<8x128xf32>
    %232 = arith.divf %230, %231 : vector<8x128xf32>
    %233 = vector.extract_strided_slice %213 {offsets = [0, 256], sizes = [8, 128], strides = [1, 1]} : vector<8x384xf32> to vector<8x128xf32>
    %234 = vector.extract_strided_slice %216 {offsets = [0, 256], sizes = [8, 128], strides = [1, 1]} : vector<8x384xf32> to vector<8x128xf32>
    %235 = arith.addf %234, %13 : vector<8x128xf32>
    %236 = arith.mulf %224, %235 : vector<8x128xf32>
    %237 = arith.addf %233, %236 : vector<8x128xf32>
    %238 = math.tanh %237 : vector<8x128xf32>
    %cst_70 = arith.constant 1.000000e+00 : f32
    %239 = vector.broadcast %cst_70 : f32 to vector<8x128xf32>
    %240 = arith.subf %239, %232 : vector<8x128xf32>
    %241 = arith.mulf %240, %238 : vector<8x128xf32>
    %242 = arith.mulf %232, %204 : vector<8x128xf32>
    %243 = arith.addf %241, %242 : vector<8x128xf32>
    %244 = arith.truncf %243 : vector<8x128xf32> to vector<8x128xbf16>
    %245 = arith.index_cast %c5_i32 : i32 to index
    %c0_71 = arith.constant 0 : index
    %c0_72 = arith.constant 0 : index
    %246 = vector.load %arg7[%245, %c0_71, %c0_72] : memref<8x8x128xbf16, #tpu.memory_space<vmem>>, vector<1x8x128xbf16>
    %247 = vector.shape_cast %246 : vector<1x8x128xbf16> to vector<8x128xbf16>
    %248 = vector.shape_cast %244 : vector<8x128xbf16> to vector<1x8x128xbf16>
    tpu.vector_store %arg7[%245, %c0_71, %c0_72], %248 {strides = array<i32>} : memref<8x8x128xbf16, #tpu.memory_space<vmem>>, vector<1x8x128xbf16>,
    %c6_i32 = arith.constant 6 : i32
    %c8_i32_73 = arith.constant 8 : i32
    %249 = arith.muli %c6_i32, %c8_i32_73 : i32
    %250 = tpu.assume_multiple %249, 8 : i32
    %251 = arith.index_cast %250 : i32 to index
    %c0_74 = arith.constant 0 : index
    %252 = vector.load %arg9[%251, %c0_74] : memref<64x384xf32, #tpu.memory_space<vmem>>, vector<8x384xf32>
    %253 = arith.truncf %243 : vector<8x128xf32> to vector<8x128xbf16>
    %c0_75 = arith.constant 0 : index
    %c0_76 = arith.constant 0 : index
    %254 = vector.load %arg5[%c0_75, %c0_76] : memref<128x384xbf16, #tpu.memory_space<vmem>>, vector<128x384xbf16>
    %cst_77 = arith.constant dense<0.000000e+00> : vector<8x384xf32>
    %255 = tpu.matmul %253, %254, %cst_77 {dimension_numbers = #tpu.dot_dimension_numbers<[1], [0], [0], [1], [0, 0, 1, 1], [], []>} : vector<8x128xbf16>, vector<128x384xbf16>, vector<8x384xf32> -> vector<8x384xf32>
    %256 = vector.extract_strided_slice %252 {offsets = [0, 0], sizes = [8, 128], strides = [1, 1]} : vector<8x384xf32> to vector<8x128xf32>
    %257 = vector.extract_strided_slice %255 {offsets = [0, 0], sizes = [8, 128], strides = [1, 1]} : vector<8x384xf32> to vector<8x128xf32>
    %258 = arith.addf %256, %257 : vector<8x128xf32>
    %259 = arith.negf %258 : vector<8x128xf32>
    %260 = math.exp %259 : vector<8x128xf32>
    %cst_78 = arith.constant 1.000000e+00 : f32
    %261 = vector.broadcast %cst_78 : f32 to vector<8x128xf32>
    %262 = arith.addf %261, %260 : vector<8x128xf32>
    %263 = arith.divf %261, %262 : vector<8x128xf32>
    %264 = vector.extract_strided_slice %252 {offsets = [0, 128], sizes = [8, 128], strides = [1, 1]} : vector<8x384xf32> to vector<8x128xf32>
    %265 = vector.extract_strided_slice %255 {offsets = [0, 128], sizes = [8, 128], strides = [1, 1]} : vector<8x384xf32> to vector<8x128xf32>
    %266 = arith.addf %264, %265 : vector<8x128xf32>
    %267 = arith.negf %266 : vector<8x128xf32>
    %268 = math.exp %267 : vector<8x128xf32>
    %cst_79 = arith.constant 1.000000e+00 : f32
    %269 = vector.broadcast %cst_79 : f32 to vector<8x128xf32>
    %270 = arith.addf %269, %268 : vector<8x128xf32>
    %271 = arith.divf %269, %270 : vector<8x128xf32>
    %272 = vector.extract_strided_slice %252 {offsets = [0, 256], sizes = [8, 128], strides = [1, 1]} : vector<8x384xf32> to vector<8x128xf32>
    %273 = vector.extract_strided_slice %255 {offsets = [0, 256], sizes = [8, 128], strides = [1, 1]} : vector<8x384xf32> to vector<8x128xf32>
    %274 = arith.addf %273, %13 : vector<8x128xf32>
    %275 = arith.mulf %263, %274 : vector<8x128xf32>
    %276 = arith.addf %272, %275 : vector<8x128xf32>
    %277 = math.tanh %276 : vector<8x128xf32>
    %cst_80 = arith.constant 1.000000e+00 : f32
    %278 = vector.broadcast %cst_80 : f32 to vector<8x128xf32>
    %279 = arith.subf %278, %271 : vector<8x128xf32>
    %280 = arith.mulf %279, %277 : vector<8x128xf32>
    %281 = arith.mulf %271, %243 : vector<8x128xf32>
    %282 = arith.addf %280, %281 : vector<8x128xf32>
    %283 = arith.truncf %282 : vector<8x128xf32> to vector<8x128xbf16>
    %284 = arith.index_cast %c6_i32 : i32 to index
    %c0_81 = arith.constant 0 : index
    %c0_82 = arith.constant 0 : index
    %285 = vector.load %arg7[%284, %c0_81, %c0_82] : memref<8x8x128xbf16, #tpu.memory_space<vmem>>, vector<1x8x128xbf16>
    %286 = vector.shape_cast %285 : vector<1x8x128xbf16> to vector<8x128xbf16>
    %287 = vector.shape_cast %283 : vector<8x128xbf16> to vector<1x8x128xbf16>
    tpu.vector_store %arg7[%284, %c0_81, %c0_82], %287 {strides = array<i32>} : memref<8x8x128xbf16, #tpu.memory_space<vmem>>, vector<1x8x128xbf16>,
    %c7_i32 = arith.constant 7 : i32
    %c8_i32_83 = arith.constant 8 : i32
    %288 = arith.muli %c7_i32, %c8_i32_83 : i32
    %289 = tpu.assume_multiple %288, 8 : i32
    %290 = arith.index_cast %289 : i32 to index
    %c0_84 = arith.constant 0 : index
    %291 = vector.load %arg9[%290, %c0_84] : memref<64x384xf32, #tpu.memory_space<vmem>>, vector<8x384xf32>
    %292 = arith.truncf %282 : vector<8x128xf32> to vector<8x128xbf16>
    %c0_85 = arith.constant 0 : index
    %c0_86 = arith.constant 0 : index
    %293 = vector.load %arg5[%c0_85, %c0_86] : memref<128x384xbf16, #tpu.memory_space<vmem>>, vector<128x384xbf16>
    %cst_87 = arith.constant dense<0.000000e+00> : vector<8x384xf32>
    %294 = tpu.matmul %292, %293, %cst_87 {dimension_numbers = #tpu.dot_dimension_numbers<[1], [0], [0], [1], [0, 0, 1, 1], [], []>} : vector<8x128xbf16>, vector<128x384xbf16>, vector<8x384xf32> -> vector<8x384xf32>
    %295 = vector.extract_strided_slice %291 {offsets = [0, 0], sizes = [8, 128], strides = [1, 1]} : vector<8x384xf32> to vector<8x128xf32>
    %296 = vector.extract_strided_slice %294 {offsets = [0, 0], sizes = [8, 128], strides = [1, 1]} : vector<8x384xf32> to vector<8x128xf32>
    %297 = arith.addf %295, %296 : vector<8x128xf32>
    %298 = arith.negf %297 : vector<8x128xf32>
    %299 = math.exp %298 : vector<8x128xf32>
    %cst_88 = arith.constant 1.000000e+00 : f32
    %300 = vector.broadcast %cst_88 : f32 to vector<8x128xf32>
    %301 = arith.addf %300, %299 : vector<8x128xf32>
    %302 = arith.divf %300, %301 : vector<8x128xf32>
    %303 = vector.extract_strided_slice %291 {offsets = [0, 128], sizes = [8, 128], strides = [1, 1]} : vector<8x384xf32> to vector<8x128xf32>
    %304 = vector.extract_strided_slice %294 {offsets = [0, 128], sizes = [8, 128], strides = [1, 1]} : vector<8x384xf32> to vector<8x128xf32>
    %305 = arith.addf %303, %304 : vector<8x128xf32>
    %306 = arith.negf %305 : vector<8x128xf32>
    %307 = math.exp %306 : vector<8x128xf32>
    %cst_89 = arith.constant 1.000000e+00 : f32
    %308 = vector.broadcast %cst_89 : f32 to vector<8x128xf32>
    %309 = arith.addf %308, %307 : vector<8x128xf32>
    %310 = arith.divf %308, %309 : vector<8x128xf32>
    %311 = vector.extract_strided_slice %291 {offsets = [0, 256], sizes = [8, 128], strides = [1, 1]} : vector<8x384xf32> to vector<8x128xf32>
    %312 = vector.extract_strided_slice %294 {offsets = [0, 256], sizes = [8, 128], strides = [1, 1]} : vector<8x384xf32> to vector<8x128xf32>
    %313 = arith.addf %312, %13 : vector<8x128xf32>
    %314 = arith.mulf %302, %313 : vector<8x128xf32>
    %315 = arith.addf %311, %314 : vector<8x128xf32>
    %316 = math.tanh %315 : vector<8x128xf32>
    %cst_90 = arith.constant 1.000000e+00 : f32
    %317 = vector.broadcast %cst_90 : f32 to vector<8x128xf32>
    %318 = arith.subf %317, %310 : vector<8x128xf32>
    %319 = arith.mulf %318, %316 : vector<8x128xf32>
    %320 = arith.mulf %310, %282 : vector<8x128xf32>
    %321 = arith.addf %319, %320 : vector<8x128xf32>
    %322 = arith.truncf %321 : vector<8x128xf32> to vector<8x128xbf16>
    %323 = arith.index_cast %c7_i32 : i32 to index
    %c0_91 = arith.constant 0 : index
    %c0_92 = arith.constant 0 : index
    %324 = vector.load %arg7[%323, %c0_91, %c0_92] : memref<8x8x128xbf16, #tpu.memory_space<vmem>>, vector<1x8x128xbf16>
    %325 = vector.shape_cast %324 : vector<1x8x128xbf16> to vector<8x128xbf16>
    %326 = vector.shape_cast %322 : vector<8x128xbf16> to vector<1x8x128xbf16>
    tpu.vector_store %arg7[%323, %c0_91, %c0_92], %326 {strides = array<i32>} : memref<8x8x128xbf16, #tpu.memory_space<vmem>>, vector<1x8x128xbf16>,
    %c8_i32_93 = arith.constant 8 : i32
    %c0_94 = arith.constant 0 : index
    %c0_95 = arith.constant 0 : index
    %327 = vector.load %arg8[%c0_94, %c0_95] : memref<8x128xf32, #tpu.memory_space<vmem>>, vector<8x128xf32>
    tpu.vector_store %arg8[%c0_94, %c0_95], %321 {strides = array<i32>} : memref<8x128xf32, #tpu.memory_space<vmem>>, vector<8x128xf32>,
    return
  }
  func.func @transform_0(%arg0: i32, %arg1: i32) -> (i32, i32, i32) {
    %c0_i32 = arith.constant 0 : i32
    %c0_i32_0 = arith.constant 0 : i32
    return %arg1, %arg0, %c0_i32 : i32, i32, i32
  }
  func.func @transform_1(%arg0: i32, %arg1: i32) -> (i32, i32) {
    %c0_i32 = arith.constant 0 : i32
    %c0_i32_0 = arith.constant 0 : i32
    %c0_i32_1 = arith.constant 0 : i32
    return %c0_i32, %c0_i32_0 : i32, i32
  }
  func.func @transform_2(%arg0: i32, %arg1: i32) -> (i32, i32) {
    %c0_i32 = arith.constant 0 : i32
    %c0_i32_0 = arith.constant 0 : i32
    %c0_i32_1 = arith.constant 0 : i32
    return %c0_i32, %c0_i32_0 : i32, i32
  }
  func.func @transform_3(%arg0: i32, %arg1: i32) -> (i32, i32) {
    %c0_i32 = arith.constant 0 : i32
    %c0_i32_0 = arith.constant 0 : i32
    %c0_i32_1 = arith.constant 0 : i32
    return %c0_i32, %c0_i32_0 : i32, i32
  }
  func.func @transform_4(%arg0: i32, %arg1: i32) -> (i32, i32) {
    %c0_i32 = arith.constant 0 : i32
    %c0_i32_0 = arith.constant 0 : i32
    %c0_i32_1 = arith.constant 0 : i32
    return %c0_i32, %c0_i32_0 : i32, i32
  }
  func.func @transform_5(%arg0: i32, %arg1: i32) -> (i32, i32, i32) {
    %c0_i32 = arith.constant 0 : i32
    %c0_i32_0 = arith.constant 0 : i32
    return %arg1, %arg0, %c0_i32 : i32, i32, i32
  }
}

module attributes {stable_mosaic.version = 11 : i64} {
  func.func @_gru_fused_kernel(%arg0: i32, %arg1: i32, %arg2: memref<8x8x128xbf16, #tpu.memory_space<vmem>>, %arg3: memref<128x384xbf16, #tpu.memory_space<vmem>>, %arg4: memref<1x384xf32, #tpu.memory_space<vmem>>, %arg5: memref<128x384xbf16, #tpu.memory_space<vmem>>, %arg6: memref<1x128xf32, #tpu.memory_space<vmem>>, %arg7: memref<8x8x128xbf16, #tpu.memory_space<vmem>>, %arg8: memref<8x128xf32, #tpu.memory_space<vmem>>, %arg9: memref<64x384xf32, #tpu.memory_space<vmem>>) attributes {dimension_semantics = [#tpu.dimension_semantics<parallel>, #tpu.dimension_semantics<arbitrary>], iteration_bounds = array<i64: 1, 1>, scalar_prefetch = 0 : i64, scratch_operands = 2 : i64, tpu.core_type = #tpu.core_type<tc>, window_params = [{transform_indices = @transform_0, window_bounds = array<i64: 8, 8, 128>}, {pipeline_mode = #tpu.pipeline_mode<synchronous>, transform_indices = @transform_1, window_bounds = array<i64: 128, 384>}, {pipeline_mode = #tpu.pipeline_mode<synchronous>, transform_indices = @transform_2, window_bounds = array<i64: 1, 384>}, {pipeline_mode = #tpu.pipeline_mode<synchronous>, transform_indices = @transform_3, window_bounds = array<i64: 128, 384>}, {pipeline_mode = #tpu.pipeline_mode<synchronous>, transform_indices = @transform_4, window_bounds = array<i64: 1, 128>}, {transform_indices = @transform_5, window_bounds = array<i64: 8, 8, 128>}]} {
    %c0_i32 = arith.constant 0 : i32
    %0 = arith.cmpi eq, %arg1, %c0_i32 : i32
    %1 = arith.extui %0 : i1 to i32
    %c0_i32_0 = arith.constant 0 : i32
    %2 = arith.cmpi ne, %1, %c0_i32_0 : i32
    scf.if %2 {
      %cst_96 = arith.constant 0.000000e+00 : f32
      %328 = vector.broadcast %cst_96 : f32 to vector<8x128xf32>
      %c0_97 = arith.constant 0 : index
      %c0_98 = arith.constant 0 : index
      %329 = vector.load %arg8[%c0_97, %c0_98] : memref<8x128xf32, #tpu.memory_space<vmem>>, vector<8x128xf32>
      tpu.vector_store %arg8[%c0_97, %c0_98], %328 {strides = array<i32>} : memref<8x128xf32, #tpu.memory_space<vmem>>, vector<8x128xf32>,
    } else {
    }
    %c0 = arith.constant 0 : index
    %c0_1 = arith.constant 0 : index
    %c0_2 = arith.constant 0 : index
    %3 = vector.load %arg2[%c0, %c0_1, %c0_2] : memref<8x8x128xbf16, #tpu.memory_space<vmem>>, vector<8x8x128xbf16>
    %4 = vector.shape_cast %3 : vector<8x8x128xbf16> to vector<64x128xbf16>
    %c0_3 = arith.constant 0 : index
    %c0_4 = arith.constant 0 : index
    %5 = vector.load %arg3[%c0_3, %c0_4] : memref<128x384xbf16, #tpu.memory_space<vmem>>, vector<128x384xbf16>
    %cst = arith.constant dense<0.000000e+00> : vector<64x384xf32>
    %6 = tpu.matmul %4, %5, %cst {dimension_numbers = #tpu.dot_dimension_numbers<[1], [0], [0], [1], [0, 0, 1, 1], [], []>} : vector<64x128xbf16>, vector<128x384xbf16>, vector<64x384xf32> -> vector<64x384xf32>
    %c0_5 = arith.constant 0 : index
    %c0_6 = arith.constant 0 : index
    %7 = vector.load %arg4[%c0_5, %c0_6] : memref<1x384xf32, #tpu.memory_space<vmem>>, vector<1x384xf32>
    %8 = vector.broadcast %7 : vector<1x384xf32> to vector<64x384xf32>
    %9 = arith.addf %6, %8 : vector<64x384xf32>
    %c0_7 = arith.constant 0 : index
    %c0_8 = arith.constant 0 : index
    %10 = vector.load %arg9[%c0_7, %c0_8] : memref<64x384xf32, #tpu.memory_space<vmem>>, vector<64x384xf32>
    tpu.vector_store %arg9[%c0_7, %c0_8], %9 {strides = array<i32>} : memref<64x384xf32, #tpu.memory_space<vmem>>, vector<64x384xf32>,
    %c0_9 = arith.constant 0 : index
    %c0_10 = arith.constant 0 : index
    %11 = vector.load %arg6[%c0_9, %c0_10] : memref<1x128xf32, #tpu.memory_space<vmem>>, vector<1x128xf32>
    %12 = vector.shape_cast %11 : vector<1x128xf32> to vector<1x128xf32>
    %13 = vector.broadcast %12 : vector<1x128xf32> to vector<8x128xf32>
    %c0_11 = arith.constant 0 : index
    %c0_12 = arith.constant 0 : index
    %14 = vector.load %arg8[%c0_11, %c0_12] : memref<8x128xf32, #tpu.memory_space<vmem>>, vector<8x128xf32>
    %c0_i32_13 = arith.constant 0 : i32
    %c8_i32 = arith.constant 8 : i32
    %15 = arith.muli %c0_i32_13, %c8_i32 : i32
    %16 = tpu.assume_multiple %15, 8 : i32
    %17 = arith.index_cast %16 : i32 to index
    %c0_14 = arith.constant 0 : index
    %18 = vector.load %arg9[%17, %c0_14] : memref<64x384xf32, #tpu.memory_space<vmem>>, vector<8x384xf32>
    %19 = arith.truncf %14 : vector<8x128xf32> to vector<8x128xbf16>
    %c0_15 = arith.constant 0 : index
    %c0_16 = arith.constant 0 : index
    %20 = vector.load %arg5[%c0_15, %c0_16] : memref<128x384xbf16, #tpu.memory_space<vmem>>, vector<128x384xbf16>
    %cst_17 = arith.constant dense<0.000000e+00> : vector<8x384xf32>
    %21 = tpu.matmul %19, %20, %cst_17 {dimension_numbers = #tpu.dot_dimension_numbers<[1], [0], [0], [1], [0, 0, 1, 1], [], []>} : vector<8x128xbf16>, vector<128x384xbf16>, vector<8x384xf32> -> vector<8x384xf32>
    %22 = vector.extract_strided_slice %18 {offsets = [0, 0], sizes = [8, 128], strides = [1, 1]} : vector<8x384xf32> to vector<8x128xf32>
    %23 = vector.extract_strided_slice %21 {offsets = [0, 0], sizes = [8, 128], strides = [1, 1]} : vector<8x384xf32> to vector<8x128xf32>
    %24 = arith.addf %22, %23 : vector<8x128xf32>
    %25 = arith.negf %24 : vector<8x128xf32>
    %26 = math.exp %25 : vector<8x128xf32>
    %cst_18 = arith.constant 1.000000e+00 : f32
    %27 = vector.broadcast %cst_18 : f32 to vector<8x128xf32>
    %28 = arith.addf %27, %26 : vector<8x128xf32>
    %29 = arith.divf %27, %28 : vector<8x128xf32>
    %30 = vector.extract_strided_slice %18 {offsets = [0, 128], sizes = [8, 128], strides = [1, 1]} : vector<8x384xf32> to vector<8x128xf32>
    %31 = vector.extract_strided_slice %21 {offsets = [0, 128], sizes = [8, 128], strides = [1, 1]} : vector<8x384xf32> to vector<8x128xf32>
    %32 = arith.addf %30, %31 : vector<8x128xf32>
    %33 = arith.negf %32 : vector<8x128xf32>
    %34 = math.exp %33 : vector<8x128xf32>
    %cst_19 = arith.constant 1.000000e+00 : f32
    %35 = vector.broadcast %cst_19 : f32 to vector<8x128xf32>
    %36 = arith.addf %35, %34 : vector<8x128xf32>
    %37 = arith.divf %35, %36 : vector<8x128xf32>
    %38 = vector.extract_strided_slice %18 {offsets = [0, 256], sizes = [8, 128], strides = [1, 1]} : vector<8x384xf32> to vector<8x128xf32>
    %39 = vector.extract_strided_slice %21 {offsets = [0, 256], sizes = [8, 128], strides = [1, 1]} : vector<8x384xf32> to vector<8x128xf32>
    %40 = arith.addf %39, %13 : vector<8x128xf32>
    %41 = arith.mulf %29, %40 : vector<8x128xf32>
    %42 = arith.addf %38, %41 : vector<8x128xf32>
    %43 = math.tanh %42 : vector<8x128xf32>
    %cst_20 = arith.constant 1.000000e+00 : f32
    %44 = vector.broadcast %cst_20 : f32 to vector<8x128xf32>
    %45 = arith.subf %44, %37 : vector<8x128xf32>
    %46 = arith.mulf %45, %43 : vector<8x128xf32>
    %47 = arith.mulf %37, %14 : vector<8x128xf32>
    %48 = arith.addf %46, %47 : vector<8x128xf32>
    %49 = arith.truncf %48 : vector<8x128xf32> to vector<8x128xbf16>
    %50 = arith.index_cast %c0_i32_13 : i32 to index
    %c0_21 = arith.constant 0 : index
    %c0_22 = arith.constant 0 : index
    %51 = vector.load %arg7[%50, %c0_21, %c0_22] : memref<8x8x128xbf16, #tpu.memory_space<vmem>>, vector<1x8x128xbf16>
    %52 = vector.shape_cast %51 : vector<1x8x128xbf16> to vector<8x128xbf16>
    %53 = vector.shape_cast %49 : vector<8x128xbf16> to vector<1x8x128xbf16>
    tpu.vector_store %arg7[%50, %c0_21, %c0_22], %53 {strides = array<i32>} : memref<8x8x128xbf16, #tpu.memory_space<vmem>>, vector<1x8x128xbf16>,
    %c1_i32 = arith.constant 1 : i32
    %c8_i32_23 = arith.constant 8 : i32
    %54 = arith.muli %c1_i32, %c8_i32_23 : i32
    %55 = tpu.assume_multiple %54, 8 : i32
    %56 = arith.index_cast %55 : i32 to index
    %c0_24 = arith.constant 0 : index
    %57 = vector.load %arg9[%56, %c0_24] : memref<64x384xf32, #tpu.memory_space<vmem>>, vector<8x384xf32>
    %58 = arith.truncf %48 : vector<8x128xf32> to vector<8x128xbf16>
    %c0_25 = arith.constant 0 : index
    %c0_26 = arith.constant 0 : index
    %59 = vector.load %arg5[%c0_25, %c0_26] : memref<128x384xbf16, #tpu.memory_space<vmem>>, vector<128x384xbf16>
    %cst_27 = arith.constant dense<0.000000e+00> : vector<8x384xf32>
    %60 = tpu.matmul %58, %59, %cst_27 {dimension_numbers = #tpu.dot_dimension_numbers<[1], [0], [0], [1], [0, 0, 1, 1], [], []>} : vector<8x128xbf16>, vector<128x384xbf16>, vector<8x384xf32> -> vector<8x384xf32>
    %61 = vector.extract_strided_slice %57 {offsets = [0, 0], sizes = [8, 128], strides = [1, 1]} : vector<8x384xf32> to vector<8x128xf32>
    %62 = vector.extract_strided_slice %60 {offsets = [0, 0], sizes = [8, 128], strides = [1, 1]} : vector<8x384xf32> to vector<8x128xf32>
    %63 = arith.addf %61, %62 : vector<8x128xf32>
    %64 = arith.negf %63 : vector<8x128xf32>
    %65 = math.exp %64 : vector<8x128xf32>
    %cst_28 = arith.constant 1.000000e+00 : f32
    %66 = vector.broadcast %cst_28 : f32 to vector<8x128xf32>
    %67 = arith.addf %66, %65 : vector<8x128xf32>
    %68 = arith.divf %66, %67 : vector<8x128xf32>
    %69 = vector.extract_strided_slice %57 {offsets = [0, 128], sizes = [8, 128], strides = [1, 1]} : vector<8x384xf32> to vector<8x128xf32>
    %70 = vector.extract_strided_slice %60 {offsets = [0, 128], sizes = [8, 128], strides = [1, 1]} : vector<8x384xf32> to vector<8x128xf32>
    %71 = arith.addf %69, %70 : vector<8x128xf32>
    %72 = arith.negf %71 : vector<8x128xf32>
    %73 = math.exp %72 : vector<8x128xf32>
    %cst_29 = arith.constant 1.000000e+00 : f32
    %74 = vector.broadcast %cst_29 : f32 to vector<8x128xf32>
    %75 = arith.addf %74, %73 : vector<8x128xf32>
    %76 = arith.divf %74, %75 : vector<8x128xf32>
    %77 = vector.extract_strided_slice %57 {offsets = [0, 256], sizes = [8, 128], strides = [1, 1]} : vector<8x384xf32> to vector<8x128xf32>
    %78 = vector.extract_strided_slice %60 {offsets = [0, 256], sizes = [8, 128], strides = [1, 1]} : vector<8x384xf32> to vector<8x128xf32>
    %79 = arith.addf %78, %13 : vector<8x128xf32>
    %80 = arith.mulf %68, %79 : vector<8x128xf32>
    %81 = arith.addf %77, %80 : vector<8x128xf32>
    %82 = math.tanh %81 : vector<8x128xf32>
    %cst_30 = arith.constant 1.000000e+00 : f32
    %83 = vector.broadcast %cst_30 : f32 to vector<8x128xf32>
    %84 = arith.subf %83, %76 : vector<8x128xf32>
    %85 = arith.mulf %84, %82 : vector<8x128xf32>
    %86 = arith.mulf %76, %48 : vector<8x128xf32>
    %87 = arith.addf %85, %86 : vector<8x128xf32>
    %88 = arith.truncf %87 : vector<8x128xf32> to vector<8x128xbf16>
    %89 = arith.index_cast %c1_i32 : i32 to index
    %c0_31 = arith.constant 0 : index
    %c0_32 = arith.constant 0 : index
    %90 = vector.load %arg7[%89, %c0_31, %c0_32] : memref<8x8x128xbf16, #tpu.memory_space<vmem>>, vector<1x8x128xbf16>
    %91 = vector.shape_cast %90 : vector<1x8x128xbf16> to vector<8x128xbf16>
    %92 = vector.shape_cast %88 : vector<8x128xbf16> to vector<1x8x128xbf16>
    tpu.vector_store %arg7[%89, %c0_31, %c0_32], %92 {strides = array<i32>} : memref<8x8x128xbf16, #tpu.memory_space<vmem>>, vector<1x8x128xbf16>,
    %c2_i32 = arith.constant 2 : i32
    %c8_i32_33 = arith.constant 8 : i32
    %93 = arith.muli %c2_i32, %c8_i32_33 : i32
    %94 = tpu.assume_multiple %93, 8 : i32
    %95 = arith.index_cast %94 : i32 to index
    %c0_34 = arith.constant 0 : index
    %96 = vector.load %arg9[%95, %c0_34] : memref<64x384xf32, #tpu.memory_space<vmem>>, vector<8x384xf32>
    %97 = arith.truncf %87 : vector<8x128xf32> to vector<8x128xbf16>
    %c0_35 = arith.constant 0 : index
    %c0_36 = arith.constant 0 : index
    %98 = vector.load %arg5[%c0_35, %c0_36] : memref<128x384xbf16, #tpu.memory_space<vmem>>, vector<128x384xbf16>
    %cst_37 = arith.constant dense<0.000000e+00> : vector<8x384xf32>
    %99 = tpu.matmul %97, %98, %cst_37 {dimension_numbers = #tpu.dot_dimension_numbers<[1], [0], [0], [1], [0, 0, 1, 1], [], []>} : vector<8x128xbf16>, vector<128x384xbf16>, vector<8x384xf32> -> vector<8x384xf32>
    %100 = vector.extract_strided_slice %96 {offsets = [0, 0], sizes = [8, 128], strides = [1, 1]} : vector<8x384xf32> to vector<8x128xf32>
    %101 = vector.extract_strided_slice %99 {offsets = [0, 0], sizes = [8, 128], strides = [1, 1]} : vector<8x384xf32> to vector<8x128xf32>
    %102 = arith.addf %100, %101 : vector<8x128xf32>
    %103 = arith.negf %102 : vector<8x128xf32>
    %104 = math.exp %103 : vector<8x128xf32>
    %cst_38 = arith.constant 1.000000e+00 : f32
    %105 = vector.broadcast %cst_38 : f32 to vector<8x128xf32>
    %106 = arith.addf %105, %104 : vector<8x128xf32>
    %107 = arith.divf %105, %106 : vector<8x128xf32>
    %108 = vector.extract_strided_slice %96 {offsets = [0, 128], sizes = [8, 128], strides = [1, 1]} : vector<8x384xf32> to vector<8x128xf32>
    %109 = vector.extract_strided_slice %99 {offsets = [0, 128], sizes = [8, 128], strides = [1, 1]} : vector<8x384xf32> to vector<8x128xf32>
    %110 = arith.addf %108, %109 : vector<8x128xf32>
    %111 = arith.negf %110 : vector<8x128xf32>
    %112 = math.exp %111 : vector<8x128xf32>
    %cst_39 = arith.constant 1.000000e+00 : f32
    %113 = vector.broadcast %cst_39 : f32 to vector<8x128xf32>
    %114 = arith.addf %113, %112 : vector<8x128xf32>
    %115 = arith.divf %113, %114 : vector<8x128xf32>
    %116 = vector.extract_strided_slice %96 {offsets = [0, 256], sizes = [8, 128], strides = [1, 1]} : vector<8x384xf32> to vector<8x128xf32>
    %117 = vector.extract_strided_slice %99 {offsets = [0, 256], sizes = [8, 128], strides = [1, 1]} : vector<8x384xf32> to vector<8x128xf32>
    %118 = arith.addf %117, %13 : vector<8x128xf32>
    %119 = arith.mulf %107, %118 : vector<8x128xf32>
    %120 = arith.addf %116, %119 : vector<8x128xf32>
    %121 = math.tanh %120 : vector<8x128xf32>
    %cst_40 = arith.constant 1.000000e+00 : f32
    %122 = vector.broadcast %cst_40 : f32 to vector<8x128xf32>
    %123 = arith.subf %122, %115 : vector<8x128xf32>
    %124 = arith.mulf %123, %121 : vector<8x128xf32>
    %125 = arith.mulf %115, %87 : vector<8x128xf32>
    %126 = arith.addf %124, %125 : vector<8x128xf32>
    %127 = arith.truncf %126 : vector<8x128xf32> to vector<8x128xbf16>
    %128 = arith.index_cast %c2_i32 : i32 to index
    %c0_41 = arith.constant 0 : index
    %c0_42 = arith.constant 0 : index
    %129 = vector.load %arg7[%128, %c0_41, %c0_42] : memref<8x8x128xbf16, #tpu.memory_space<vmem>>, vector<1x8x128xbf16>
    %130 = vector.shape_cast %129 : vector<1x8x128xbf16> to vector<8x128xbf16>
    %131 = vector.shape_cast %127 : vector<8x128xbf16> to vector<1x8x128xbf16>
    tpu.vector_store %arg7[%128, %c0_41, %c0_42], %131 {strides = array<i32>} : memref<8x8x128xbf16, #tpu.memory_space<vmem>>, vector<1x8x128xbf16>,
    %c3_i32 = arith.constant 3 : i32
    %c8_i32_43 = arith.constant 8 : i32
    %132 = arith.muli %c3_i32, %c8_i32_43 : i32
    %133 = tpu.assume_multiple %132, 8 : i32
    %134 = arith.index_cast %133 : i32 to index
    %c0_44 = arith.constant 0 : index
    %135 = vector.load %arg9[%134, %c0_44] : memref<64x384xf32, #tpu.memory_space<vmem>>, vector<8x384xf32>
    %136 = arith.truncf %126 : vector<8x128xf32> to vector<8x128xbf16>
    %c0_45 = arith.constant 0 : index
    %c0_46 = arith.constant 0 : index
    %137 = vector.load %arg5[%c0_45, %c0_46] : memref<128x384xbf16, #tpu.memory_space<vmem>>, vector<128x384xbf16>
    %cst_47 = arith.constant dense<0.000000e+00> : vector<8x384xf32>
    %138 = tpu.matmul %136, %137, %cst_47 {dimension_numbers = #tpu.dot_dimension_numbers<[1], [0], [0], [1], [0, 0, 1, 1], [], []>} : vector<8x128xbf16>, vector<128x384xbf16>, vector<8x384xf32> -> vector<8x384xf32>
    %139 = vector.extract_strided_slice %135 {offsets = [0, 0], sizes = [8, 128], strides = [1, 1]} : vector<8x384xf32> to vector<8x128xf32>
    %140 = vector.extract_strided_slice %138 {offsets = [0, 0], sizes = [8, 128], strides = [1, 1]} : vector<8x384xf32> to vector<8x128xf32>
    %141 = arith.addf %139, %140 : vector<8x128xf32>
    %142 = arith.negf %141 : vector<8x128xf32>
    %143 = math.exp %142 : vector<8x128xf32>
    %cst_48 = arith.constant 1.000000e+00 : f32
    %144 = vector.broadcast %cst_48 : f32 to vector<8x128xf32>
    %145 = arith.addf %144, %143 : vector<8x128xf32>
    %146 = arith.divf %144, %145 : vector<8x128xf32>
    %147 = vector.extract_strided_slice %135 {offsets = [0, 128], sizes = [8, 128], strides = [1, 1]} : vector<8x384xf32> to vector<8x128xf32>
    %148 = vector.extract_strided_slice %138 {offsets = [0, 128], sizes = [8, 128], strides = [1, 1]} : vector<8x384xf32> to vector<8x128xf32>
    %149 = arith.addf %147, %148 : vector<8x128xf32>
    %150 = arith.negf %149 : vector<8x128xf32>
    %151 = math.exp %150 : vector<8x128xf32>
    %cst_49 = arith.constant 1.000000e+00 : f32
    %152 = vector.broadcast %cst_49 : f32 to vector<8x128xf32>
    %153 = arith.addf %152, %151 : vector<8x128xf32>
    %154 = arith.divf %152, %153 : vector<8x128xf32>
    %155 = vector.extract_strided_slice %135 {offsets = [0, 256], sizes = [8, 128], strides = [1, 1]} : vector<8x384xf32> to vector<8x128xf32>
    %156 = vector.extract_strided_slice %138 {offsets = [0, 256], sizes = [8, 128], strides = [1, 1]} : vector<8x384xf32> to vector<8x128xf32>
    %157 = arith.addf %156, %13 : vector<8x128xf32>
    %158 = arith.mulf %146, %157 : vector<8x128xf32>
    %159 = arith.addf %155, %158 : vector<8x128xf32>
    %160 = math.tanh %159 : vector<8x128xf32>
    %cst_50 = arith.constant 1.000000e+00 : f32
    %161 = vector.broadcast %cst_50 : f32 to vector<8x128xf32>
    %162 = arith.subf %161, %154 : vector<8x128xf32>
    %163 = arith.mulf %162, %160 : vector<8x128xf32>
    %164 = arith.mulf %154, %126 : vector<8x128xf32>
    %165 = arith.addf %163, %164 : vector<8x128xf32>
    %166 = arith.truncf %165 : vector<8x128xf32> to vector<8x128xbf16>
    %167 = arith.index_cast %c3_i32 : i32 to index
    %c0_51 = arith.constant 0 : index
    %c0_52 = arith.constant 0 : index
    %168 = vector.load %arg7[%167, %c0_51, %c0_52] : memref<8x8x128xbf16, #tpu.memory_space<vmem>>, vector<1x8x128xbf16>
    %169 = vector.shape_cast %168 : vector<1x8x128xbf16> to vector<8x128xbf16>
    %170 = vector.shape_cast %166 : vector<8x128xbf16> to vector<1x8x128xbf16>
    tpu.vector_store %arg7[%167, %c0_51, %c0_52], %170 {strides = array<i32>} : memref<8x8x128xbf16, #tpu.memory_space<vmem>>, vector<1x8x128xbf16>,
    %c4_i32 = arith.constant 4 : i32
    %c8_i32_53 = arith.constant 8 : i32
    %171 = arith.muli %c4_i32, %c8_i32_53 : i32
    %172 = tpu.assume_multiple %171, 8 : i32
    %173 = arith.index_cast %172 : i32 to index
    %c0_54 = arith.constant 0 : index
    %174 = vector.load %arg9[%173, %c0_54] : memref<64x384xf32, #tpu.memory_space<vmem>>, vector<8x384xf32>
    %175 = arith.truncf %165 : vector<8x128xf32> to vector<8x128xbf16>
    %c0_55 = arith.constant 0 : index
    %c0_56 = arith.constant 0 : index
    %176 = vector.load %arg5[%c0_55, %c0_56] : memref<128x384xbf16, #tpu.memory_space<vmem>>, vector<128x384xbf16>
    %cst_57 = arith.constant dense<0.000000e+00> : vector<8x384xf32>
    %177 = tpu.matmul %175, %176, %cst_57 {dimension_numbers = #tpu.dot_dimension_numbers<[1], [0], [0], [1], [0, 0, 1, 1], [], []>} : vector<8x128xbf16>, vector<128x384xbf16>, vector<8x384xf32> -> vector<8x384xf32>
    %178 = vector.extract_strided_slice %174 {offsets = [0, 0], sizes = [8, 128], strides = [1, 1]} : vector<8x384xf32> to vector<8x128xf32>
    %179 = vector.extract_strided_slice %177 {offsets = [0, 0], sizes = [8, 128], strides = [1, 1]} : vector<8x384xf32> to vector<8x128xf32>
    %180 = arith.addf %178, %179 : vector<8x128xf32>
    %181 = arith.negf %180 : vector<8x128xf32>
    %182 = math.exp %181 : vector<8x128xf32>
    %cst_58 = arith.constant 1.000000e+00 : f32
    %183 = vector.broadcast %cst_58 : f32 to vector<8x128xf32>
    %184 = arith.addf %183, %182 : vector<8x128xf32>
    %185 = arith.divf %183, %184 : vector<8x128xf32>
    %186 = vector.extract_strided_slice %174 {offsets = [0, 128], sizes = [8, 128], strides = [1, 1]} : vector<8x384xf32> to vector<8x128xf32>
    %187 = vector.extract_strided_slice %177 {offsets = [0, 128], sizes = [8, 128], strides = [1, 1]} : vector<8x384xf32> to vector<8x128xf32>
    %188 = arith.addf %186, %187 : vector<8x128xf32>
    %189 = arith.negf %188 : vector<8x128xf32>
    %190 = math.exp %189 : vector<8x128xf32>
    %cst_59 = arith.constant 1.000000e+00 : f32
    %191 = vector.broadcast %cst_59 : f32 to vector<8x128xf32>
    %192 = arith.addf %191, %190 : vector<8x128xf32>
    %193 = arith.divf %191, %192 : vector<8x128xf32>
    %194 = vector.extract_strided_slice %174 {offsets = [0, 256], sizes = [8, 128], strides = [1, 1]} : vector<8x384xf32> to vector<8x128xf32>
    %195 = vector.extract_strided_slice %177 {offsets = [0, 256], sizes = [8, 128], strides = [1, 1]} : vector<8x384xf32> to vector<8x128xf32>
    %196 = arith.addf %195, %13 : vector<8x128xf32>
    %197 = arith.mulf %185, %196 : vector<8x128xf32>
    %198 = arith.addf %194, %197 : vector<8x128xf32>
    %199 = math.tanh %198 : vector<8x128xf32>
    %cst_60 = arith.constant 1.000000e+00 : f32
    %200 = vector.broadcast %cst_60 : f32 to vector<8x128xf32>
    %201 = arith.subf %200, %193 : vector<8x128xf32>
    %202 = arith.mulf %201, %199 : vector<8x128xf32>
    %203 = arith.mulf %193, %165 : vector<8x128xf32>
    %204 = arith.addf %202, %203 : vector<8x128xf32>
    %205 = arith.truncf %204 : vector<8x128xf32> to vector<8x128xbf16>
    %206 = arith.index_cast %c4_i32 : i32 to index
    %c0_61 = arith.constant 0 : index
    %c0_62 = arith.constant 0 : index
    %207 = vector.load %arg7[%206, %c0_61, %c0_62] : memref<8x8x128xbf16, #tpu.memory_space<vmem>>, vector<1x8x128xbf16>
    %208 = vector.shape_cast %207 : vector<1x8x128xbf16> to vector<8x128xbf16>
    %209 = vector.shape_cast %205 : vector<8x128xbf16> to vector<1x8x128xbf16>
    tpu.vector_store %arg7[%206, %c0_61, %c0_62], %209 {strides = array<i32>} : memref<8x8x128xbf16, #tpu.memory_space<vmem>>, vector<1x8x128xbf16>,
    %c5_i32 = arith.constant 5 : i32
    %c8_i32_63 = arith.constant 8 : i32
    %210 = arith.muli %c5_i32, %c8_i32_63 : i32
    %211 = tpu.assume_multiple %210, 8 : i32
    %212 = arith.index_cast %211 : i32 to index
    %c0_64 = arith.constant 0 : index
    %213 = vector.load %arg9[%212, %c0_64] : memref<64x384xf32, #tpu.memory_space<vmem>>, vector<8x384xf32>
    %214 = arith.truncf %204 : vector<8x128xf32> to vector<8x128xbf16>
    %c0_65 = arith.constant 0 : index
    %c0_66 = arith.constant 0 : index
    %215 = vector.load %arg5[%c0_65, %c0_66] : memref<128x384xbf16, #tpu.memory_space<vmem>>, vector<128x384xbf16>
    %cst_67 = arith.constant dense<0.000000e+00> : vector<8x384xf32>
    %216 = tpu.matmul %214, %215, %cst_67 {dimension_numbers = #tpu.dot_dimension_numbers<[1], [0], [0], [1], [0, 0, 1, 1], [], []>} : vector<8x128xbf16>, vector<128x384xbf16>, vector<8x384xf32> -> vector<8x384xf32>
    %217 = vector.extract_strided_slice %213 {offsets = [0, 0], sizes = [8, 128], strides = [1, 1]} : vector<8x384xf32> to vector<8x128xf32>
    %218 = vector.extract_strided_slice %216 {offsets = [0, 0], sizes = [8, 128], strides = [1, 1]} : vector<8x384xf32> to vector<8x128xf32>
    %219 = arith.addf %217, %218 : vector<8x128xf32>
    %220 = arith.negf %219 : vector<8x128xf32>
    %221 = math.exp %220 : vector<8x128xf32>
    %cst_68 = arith.constant 1.000000e+00 : f32
    %222 = vector.broadcast %cst_68 : f32 to vector<8x128xf32>
    %223 = arith.addf %222, %221 : vector<8x128xf32>
    %224 = arith.divf %222, %223 : vector<8x128xf32>
    %225 = vector.extract_strided_slice %213 {offsets = [0, 128], sizes = [8, 128], strides = [1, 1]} : vector<8x384xf32> to vector<8x128xf32>
    %226 = vector.extract_strided_slice %216 {offsets = [0, 128], sizes = [8, 128], strides = [1, 1]} : vector<8x384xf32> to vector<8x128xf32>
    %227 = arith.addf %225, %226 : vector<8x128xf32>
    %228 = arith.negf %227 : vector<8x128xf32>
    %229 = math.exp %228 : vector<8x128xf32>
    %cst_69 = arith.constant 1.000000e+00 : f32
    %230 = vector.broadcast %cst_69 : f32 to vector<8x128xf32>
    %231 = arith.addf %230, %229 : vector<8x128xf32>
    %232 = arith.divf %230, %231 : vector<8x128xf32>
    %233 = vector.extract_strided_slice %213 {offsets = [0, 256], sizes = [8, 128], strides = [1, 1]} : vector<8x384xf32> to vector<8x128xf32>
    %234 = vector.extract_strided_slice %216 {offsets = [0, 256], sizes = [8, 128], strides = [1, 1]} : vector<8x384xf32> to vector<8x128xf32>
    %235 = arith.addf %234, %13 : vector<8x128xf32>
    %236 = arith.mulf %224, %235 : vector<8x128xf32>
    %237 = arith.addf %233, %236 : vector<8x128xf32>
    %238 = math.tanh %237 : vector<8x128xf32>
    %cst_70 = arith.constant 1.000000e+00 : f32
    %239 = vector.broadcast %cst_70 : f32 to vector<8x128xf32>
    %240 = arith.subf %239, %232 : vector<8x128xf32>
    %241 = arith.mulf %240, %238 : vector<8x128xf32>
    %242 = arith.mulf %232, %204 : vector<8x128xf32>
    %243 = arith.addf %241, %242 : vector<8x128xf32>
    %244 = arith.truncf %243 : vector<8x128xf32> to vector<8x128xbf16>
    %245 = arith.index_cast %c5_i32 : i32 to index
    %c0_71 = arith.constant 0 : index
    %c0_72 = arith.constant 0 : index
    %246 = vector.load %arg7[%245, %c0_71, %c0_72] : memref<8x8x128xbf16, #tpu.memory_space<vmem>>, vector<1x8x128xbf16>
    %247 = vector.shape_cast %246 : vector<1x8x128xbf16> to vector<8x128xbf16>
    %248 = vector.shape_cast %244 : vector<8x128xbf16> to vector<1x8x128xbf16>
    tpu.vector_store %arg7[%245, %c0_71, %c0_72], %248 {strides = array<i32>} : memref<8x8x128xbf16, #tpu.memory_space<vmem>>, vector<1x8x128xbf16>,
    %c6_i32 = arith.constant 6 : i32
    %c8_i32_73 = arith.constant 8 : i32
    %249 = arith.muli %c6_i32, %c8_i32_73 : i32
    %250 = tpu.assume_multiple %249, 8 : i32
    %251 = arith.index_cast %250 : i32 to index
    %c0_74 = arith.constant 0 : index
    %252 = vector.load %arg9[%251, %c0_74] : memref<64x384xf32, #tpu.memory_space<vmem>>, vector<8x384xf32>
    %253 = arith.truncf %243 : vector<8x128xf32> to vector<8x128xbf16>
    %c0_75 = arith.constant 0 : index
    %c0_76 = arith.constant 0 : index
    %254 = vector.load %arg5[%c0_75, %c0_76] : memref<128x384xbf16, #tpu.memory_space<vmem>>, vector<128x384xbf16>
    %cst_77 = arith.constant dense<0.000000e+00> : vector<8x384xf32>
    %255 = tpu.matmul %253, %254, %cst_77 {dimension_numbers = #tpu.dot_dimension_numbers<[1], [0], [0], [1], [0, 0, 1, 1], [], []>} : vector<8x128xbf16>, vector<128x384xbf16>, vector<8x384xf32> -> vector<8x384xf32>
    %256 = vector.extract_strided_slice %252 {offsets = [0, 0], sizes = [8, 128], strides = [1, 1]} : vector<8x384xf32> to vector<8x128xf32>
    %257 = vector.extract_strided_slice %255 {offsets = [0, 0], sizes = [8, 128], strides = [1, 1]} : vector<8x384xf32> to vector<8x128xf32>
    %258 = arith.addf %256, %257 : vector<8x128xf32>
    %259 = arith.negf %258 : vector<8x128xf32>
    %260 = math.exp %259 : vector<8x128xf32>
    %cst_78 = arith.constant 1.000000e+00 : f32
    %261 = vector.broadcast %cst_78 : f32 to vector<8x128xf32>
    %262 = arith.addf %261, %260 : vector<8x128xf32>
    %263 = arith.divf %261, %262 : vector<8x128xf32>
    %264 = vector.extract_strided_slice %252 {offsets = [0, 128], sizes = [8, 128], strides = [1, 1]} : vector<8x384xf32> to vector<8x128xf32>
    %265 = vector.extract_strided_slice %255 {offsets = [0, 128], sizes = [8, 128], strides = [1, 1]} : vector<8x384xf32> to vector<8x128xf32>
    %266 = arith.addf %264, %265 : vector<8x128xf32>
    %267 = arith.negf %266 : vector<8x128xf32>
    %268 = math.exp %267 : vector<8x128xf32>
    %cst_79 = arith.constant 1.000000e+00 : f32
    %269 = vector.broadcast %cst_79 : f32 to vector<8x128xf32>
    %270 = arith.addf %269, %268 : vector<8x128xf32>
    %271 = arith.divf %269, %270 : vector<8x128xf32>
    %272 = vector.extract_strided_slice %252 {offsets = [0, 256], sizes = [8, 128], strides = [1, 1]} : vector<8x384xf32> to vector<8x128xf32>
    %273 = vector.extract_strided_slice %255 {offsets = [0, 256], sizes = [8, 128], strides = [1, 1]} : vector<8x384xf32> to vector<8x128xf32>
    %274 = arith.addf %273, %13 : vector<8x128xf32>
    %275 = arith.mulf %263, %274 : vector<8x128xf32>
    %276 = arith.addf %272, %275 : vector<8x128xf32>
    %277 = math.tanh %276 : vector<8x128xf32>
    %cst_80 = arith.constant 1.000000e+00 : f32
    %278 = vector.broadcast %cst_80 : f32 to vector<8x128xf32>
    %279 = arith.subf %278, %271 : vector<8x128xf32>
    %280 = arith.mulf %279, %277 : vector<8x128xf32>
    %281 = arith.mulf %271, %243 : vector<8x128xf32>
    %282 = arith.addf %280, %281 : vector<8x128xf32>
    %283 = arith.truncf %282 : vector<8x128xf32> to vector<8x128xbf16>
    %284 = arith.index_cast %c6_i32 : i32 to index
    %c0_81 = arith.constant 0 : index
    %c0_82 = arith.constant 0 : index
    %285 = vector.load %arg7[%284, %c0_81, %c0_82] : memref<8x8x128xbf16, #tpu.memory_space<vmem>>, vector<1x8x128xbf16>
    %286 = vector.shape_cast %285 : vector<1x8x128xbf16> to vector<8x128xbf16>
    %287 = vector.shape_cast %283 : vector<8x128xbf16> to vector<1x8x128xbf16>
    tpu.vector_store %arg7[%284, %c0_81, %c0_82], %287 {strides = array<i32>} : memref<8x8x128xbf16, #tpu.memory_space<vmem>>, vector<1x8x128xbf16>,
    %c7_i32 = arith.constant 7 : i32
    %c8_i32_83 = arith.constant 8 : i32
    %288 = arith.muli %c7_i32, %c8_i32_83 : i32
    %289 = tpu.assume_multiple %288, 8 : i32
    %290 = arith.index_cast %289 : i32 to index
    %c0_84 = arith.constant 0 : index
    %291 = vector.load %arg9[%290, %c0_84] : memref<64x384xf32, #tpu.memory_space<vmem>>, vector<8x384xf32>
    %292 = arith.truncf %282 : vector<8x128xf32> to vector<8x128xbf16>
    %c0_85 = arith.constant 0 : index
    %c0_86 = arith.constant 0 : index
    %293 = vector.load %arg5[%c0_85, %c0_86] : memref<128x384xbf16, #tpu.memory_space<vmem>>, vector<128x384xbf16>
    %cst_87 = arith.constant dense<0.000000e+00> : vector<8x384xf32>
    %294 = tpu.matmul %292, %293, %cst_87 {dimension_numbers = #tpu.dot_dimension_numbers<[1], [0], [0], [1], [0, 0, 1, 1], [], []>} : vector<8x128xbf16>, vector<128x384xbf16>, vector<8x384xf32> -> vector<8x384xf32>
    %295 = vector.extract_strided_slice %291 {offsets = [0, 0], sizes = [8, 128], strides = [1, 1]} : vector<8x384xf32> to vector<8x128xf32>
    %296 = vector.extract_strided_slice %294 {offsets = [0, 0], sizes = [8, 128], strides = [1, 1]} : vector<8x384xf32> to vector<8x128xf32>
    %297 = arith.addf %295, %296 : vector<8x128xf32>
    %298 = arith.negf %297 : vector<8x128xf32>
    %299 = math.exp %298 : vector<8x128xf32>
    %cst_88 = arith.constant 1.000000e+00 : f32
    %300 = vector.broadcast %cst_88 : f32 to vector<8x128xf32>
    %301 = arith.addf %300, %299 : vector<8x128xf32>
    %302 = arith.divf %300, %301 : vector<8x128xf32>
    %303 = vector.extract_strided_slice %291 {offsets = [0, 128], sizes = [8, 128], strides = [1, 1]} : vector<8x384xf32> to vector<8x128xf32>
    %304 = vector.extract_strided_slice %294 {offsets = [0, 128], sizes = [8, 128], strides = [1, 1]} : vector<8x384xf32> to vector<8x128xf32>
    %305 = arith.addf %303, %304 : vector<8x128xf32>
    %306 = arith.negf %305 : vector<8x128xf32>
    %307 = math.exp %306 : vector<8x128xf32>
    %cst_89 = arith.constant 1.000000e+00 : f32
    %308 = vector.broadcast %cst_89 : f32 to vector<8x128xf32>
    %309 = arith.addf %308, %307 : vector<8x128xf32>
    %310 = arith.divf %308, %309 : vector<8x128xf32>
    %311 = vector.extract_strided_slice %291 {offsets = [0, 256], sizes = [8, 128], strides = [1, 1]} : vector<8x384xf32> to vector<8x128xf32>
    %312 = vector.extract_strided_slice %294 {offsets = [0, 256], sizes = [8, 128], strides = [1, 1]} : vector<8x384xf32> to vector<8x128xf32>
    %313 = arith.addf %312, %13 : vector<8x128xf32>
    %314 = arith.mulf %302, %313 : vector<8x128xf32>
    %315 = arith.addf %311, %314 : vector<8x128xf32>
    %316 = math.tanh %315 : vector<8x128xf32>
    %cst_90 = arith.constant 1.000000e+00 : f32
    %317 = vector.broadcast %cst_90 : f32 to vector<8x128xf32>
    %318 = arith.subf %317, %310 : vector<8x128xf32>
    %319 = arith.mulf %318, %316 : vector<8x128xf32>
    %320 = arith.mulf %310, %282 : vector<8x128xf32>
    %321 = arith.addf %319, %320 : vector<8x128xf32>
    %322 = arith.truncf %321 : vector<8x128xf32> to vector<8x128xbf16>
    %323 = arith.index_cast %c7_i32 : i32 to index
    %c0_91 = arith.constant 0 : index
    %c0_92 = arith.constant 0 : index
    %324 = vector.load %arg7[%323, %c0_91, %c0_92] : memref<8x8x128xbf16, #tpu.memory_space<vmem>>, vector<1x8x128xbf16>
    %325 = vector.shape_cast %324 : vector<1x8x128xbf16> to vector<8x128xbf16>
    %326 = vector.shape_cast %322 : vector<8x128xbf16> to vector<1x8x128xbf16>
    tpu.vector_store %arg7[%323, %c0_91, %c0_92], %326 {strides = array<i32>} : memref<8x8x128xbf16, #tpu.memory_space<vmem>>, vector<1x8x128xbf16>,
    %c8_i32_93 = arith.constant 8 : i32
    %c0_94 = arith.constant 0 : index
    %c0_95 = arith.constant 0 : index
    %327 = vector.load %arg8[%c0_94, %c0_95] : memref<8x128xf32, #tpu.memory_space<vmem>>, vector<8x128xf32>
    tpu.vector_store %arg8[%c0_94, %c0_95], %321 {strides = array<i32>} : memref<8x128xf32, #tpu.memory_space<vmem>>, vector<8x128xf32>,
    return
  }
  func.func @transform_0(%arg0: i32, %arg1: i32) -> (i32, i32, i32) {
    %c0_i32 = arith.constant 0 : i32
    %c0_i32_0 = arith.constant 0 : i32
    return %arg1, %arg0, %c0_i32 : i32, i32, i32
  }
  func.func @transform_1(%arg0: i32, %arg1: i32) -> (i32, i32) {
    %c0_i32 = arith.constant 0 : i32
    %c0_i32_0 = arith.constant 0 : i32
    %c0_i32_1 = arith.constant 0 : i32
    return %c0_i32, %c0_i32_0 : i32, i32
  }
  func.func @transform_2(%arg0: i32, %arg1: i32) -> (i32, i32) {
    %c0_i32 = arith.constant 0 : i32
    %c0_i32_0 = arith.constant 0 : i32
    %c0_i32_1 = arith.constant 0 : i32
    return %c0_i32, %c0_i32_0 : i32, i32
  }
  func.func @transform_3(%arg0: i32, %arg1: i32) -> (i32, i32) {
    %c0_i32 = arith.constant 0 : i32
    %c0_i32_0 = arith.constant 0 : i32
    %c0_i32_1 = arith.constant 0 : i32
    return %c0_i32, %c0_i32_0 : i32, i32
  }
  func.func @transform_4(%arg0: i32, %arg1: i32) -> (i32, i32) {
    %c0_i32 = arith.constant 0 : i32
    %c0_i32_0 = arith.constant 0 : i32
    %c0_i32_1 = arith.constant 0 : i32
    return %c0_i32, %c0_i32_0 : i32, i32
  }
  func.func @transform_5(%arg0: i32, %arg1: i32) -> (i32, i32, i32) {
    %c0_i32 = arith.constant 0 : i32
    %c0_i32_0 = arith.constant 0 : i32
    return %arg1, %arg0, %c0_i32 : i32, i32, i32
  }
}

module attributes {stable_mosaic.version = 11 : i64} {
  func.func @_matmul_bias_kernel(%arg0: i32, %arg1: memref<16x128xbf16, #tpu.memory_space<vmem>>, %arg2: memref<128x128xbf16, #tpu.memory_space<vmem>>, %arg3: memref<1x128xf32, #tpu.memory_space<vmem>>, %arg4: memref<16x128xf32, #tpu.memory_space<vmem>>) attributes {dimension_semantics = [#tpu.dimension_semantics<parallel>], iteration_bounds = array<i64: 1>, scalar_prefetch = 0 : i64, scratch_operands = 0 : i64, tpu.core_type = #tpu.core_type<tc>, window_params = [{transform_indices = @transform_0, window_bounds = array<i64: 16, 128>}, {pipeline_mode = #tpu.pipeline_mode<synchronous>, transform_indices = @transform_1, window_bounds = array<i64: 128, 128>}, {pipeline_mode = #tpu.pipeline_mode<synchronous>, transform_indices = @transform_2, window_bounds = array<i64: 1, 128>}, {transform_indices = @transform_3, window_bounds = array<i64: 16, 128>}]} {
    %c0 = arith.constant 0 : index
    %c0_0 = arith.constant 0 : index
    %0 = vector.load %arg1[%c0, %c0_0] : memref<16x128xbf16, #tpu.memory_space<vmem>>, vector<16x128xbf16>
    %c0_1 = arith.constant 0 : index
    %c0_2 = arith.constant 0 : index
    %1 = vector.load %arg2[%c0_1, %c0_2] : memref<128x128xbf16, #tpu.memory_space<vmem>>, vector<128x128xbf16>
    %cst = arith.constant dense<0.000000e+00> : vector<16x128xf32>
    %2 = tpu.matmul %0, %1, %cst {dimension_numbers = #tpu.dot_dimension_numbers<[1], [0], [0], [1], [0, 0, 1, 1], [], []>} : vector<16x128xbf16>, vector<128x128xbf16>, vector<16x128xf32> -> vector<16x128xf32>
    %c0_3 = arith.constant 0 : index
    %c0_4 = arith.constant 0 : index
    %3 = vector.load %arg3[%c0_3, %c0_4] : memref<1x128xf32, #tpu.memory_space<vmem>>, vector<1x128xf32>
    %4 = vector.broadcast %3 : vector<1x128xf32> to vector<16x128xf32>
    %5 = arith.addf %2, %4 : vector<16x128xf32>
    %c0_5 = arith.constant 0 : index
    %c0_6 = arith.constant 0 : index
    %6 = vector.load %arg4[%c0_5, %c0_6] : memref<16x128xf32, #tpu.memory_space<vmem>>, vector<16x128xf32>
    tpu.vector_store %arg4[%c0_5, %c0_6], %5 {strides = array<i32>} : memref<16x128xf32, #tpu.memory_space<vmem>>, vector<16x128xf32>,
    return
  }
  func.func @transform_0(%arg0: i32) -> (i32, i32) {
    %c0_i32 = arith.constant 0 : i32
    %c0_i32_0 = arith.constant 0 : i32
    return %arg0, %c0_i32 : i32, i32
  }
  func.func @transform_1(%arg0: i32) -> (i32, i32) {
    %c0_i32 = arith.constant 0 : i32
    %c0_i32_0 = arith.constant 0 : i32
    %c0_i32_1 = arith.constant 0 : i32
    return %c0_i32, %c0_i32_0 : i32, i32
  }
  func.func @transform_2(%arg0: i32) -> (i32, i32) {
    %c0_i32 = arith.constant 0 : i32
    %c0_i32_0 = arith.constant 0 : i32
    %c0_i32_1 = arith.constant 0 : i32
    return %c0_i32, %c0_i32_0 : i32, i32
  }
  func.func @transform_3(%arg0: i32) -> (i32, i32) {
    %c0_i32 = arith.constant 0 : i32
    %c0_i32_0 = arith.constant 0 : i32
    return %arg0, %c0_i32 : i32, i32
  }
}

</mosaic_0001>

<llo_original>
// kernel: gru_model_forward.5
$region0: #{gru_model_forward.5}
  #allocation0 [shape = 'u32[]', space=smem, size = 0x4, offset = 0x4, fixed_abs, tag = 'smem constant byte address 0x4 - core index']
  #allocation1 [shape = 'u32[144,128]{1,0:T(1,128)}', space=vmem, size = 0x12000, scoped, tag = 'internal scratch']
  %s0 = inlined_call_operand.vmem [shape: bf16[16,128], index: 0, kind: input, shape index: {}]
  %s1 = inlined_call_operand.vmem [shape: bf16[128,128], index: 1, kind: input, shape index: {}]
  %s2 = inlined_call_operand.vmem [shape: f32[1,128], index: 2, kind: input, shape index: {}]
  %s3 = inlined_call_operand.vmem [shape: f32[16,128], index: 3, kind: output, shape index: {}]
  %s4 = sld [smem:[#allocation0]]
  $region22: #{gru_model_forward.5} parent=0
    _
  %s6 = ssub.s32 1, %s4
  %s7 = scalar_select 0, %s6, %s4
  // Predicated region
  $region2: #{gru_model_forward.5} parent=0 // pred_check
    _
  $region3: #{gru_model_forward.5} parent=0 // pred_check_branch
    %9 = sbr.rel (0) target = $region5
  $region4: #{gru_model_forward.5} parent=0 // pred_region
    _
  $region5: #{gru_model_forward.5} parent=0 // pred_fallthru
    _
  // Predicated region
  $region6: #{gru_model_forward.5} parent=0 // pred_check
    _
  $region7: #{gru_model_forward.5} parent=0 // pred_check_branch
    %11 = sbr.rel (0) target = $region9
  $region8: #{gru_model_forward.5} parent=0 // pred_region
    _
  $region9: #{gru_model_forward.5} parent=0 // pred_fallthru
    _
  // Predicated region
  $region10: #{gru_model_forward.5} parent=0 // pred_check
    _
  $region11: #{gru_model_forward.5} parent=0 // pred_check_branch
    %13 = sbr.rel (0) target = $region13
  $region12: #{gru_model_forward.5} parent=0 // pred_region
    _
  $region13: #{gru_model_forward.5} parent=0 // pred_fallthru
    _
  %v15 = vld [vmem:[%s0] sm:$0xf]
  %v16 = vld [vmem:[%s0 + $0x4] sm:$0xf]
  %v17 = vld [vmem:[%s1] sm:$0xf]
  %v18 = vld [vmem:[%s1 + $0x4] sm:$0xf]
  %v19 = vld [vmem:[%s1 + $0x8] sm:$0xf]
  %v20 = vld [vmem:[%s1 + $0xc] sm:$0xf]
  %v21 = vld [vmem:[%s1 + $0x10] sm:$0xf]
  %v22 = vld [vmem:[%s1 + $0x14] sm:$0xf]
  %v23 = vld [vmem:[%s1 + $0x18] sm:$0xf]
  %v24 = vld [vmem:[%s1 + $0x1c] sm:$0xf]
  %v25 = vld [vmem:[%s1 + $0x20] sm:$0xf]
  %v26 = vld [vmem:[%s1 + $0x24] sm:$0xf]
  %v27 = vld [vmem:[%s1 + $0x28] sm:$0xf]
  %v28 = vld [vmem:[%s1 + $0x2c] sm:$0xf]
  %v29 = vld [vmem:[%s1 + $0x30] sm:$0xf]
  %v30 = vld [vmem:[%s1 + $0x34] sm:$0xf]
  %v31 = vld [vmem:[%s1 + $0x38] sm:$0xf]
  %v32 = vld [vmem:[%s1 + $0x3c] sm:$0xf]
  %v33 = vld [vmem:[%s2] sm:$0x1]
  %v35 = vlaneseq
  %v36 = vshrl.u32 %v35, 7
  %v37 = vsub.s32 0, %v36
  %v38 = vrot.slane %v33, %v37
  %v42 = vunpack.c.l.b16 %v15
  %v43 = vunpack.c.l.b16 %v16
  %v44 = vpack.c.b16 %v43, %v42
  %v62 = vunpack.c.l.b16 %v17
  %v63 = vunpack.c.l.b16 %v18
  %v64 = vunpack.c.l.b16 %v19
  %v65 = vunpack.c.l.b16 %v20
  %v66 = vunpack.c.l.b16 %v21
  %v67 = vunpack.c.l.b16 %v22
  %v68 = vunpack.c.l.b16 %v23
  %v69 = vunpack.c.l.b16 %v24
  %v70 = vunpack.c.l.b16 %v25
  %v71 = vunpack.c.l.b16 %v26
  %v72 = vunpack.c.l.b16 %v27
  %v73 = vunpack.c.l.b16 %v28
  %v74 = vunpack.c.l.b16 %v29
  %v75 = vunpack.c.l.b16 %v30
  %v76 = vunpack.c.l.b16 %v31
  %v77 = vunpack.c.l.b16 %v32
  %v78 = vpack.c.b16 %v63, %v62
  %v79 = vpack.c.b16 %v65, %v64
  %v80 = vpack.c.b16 %v67, %v66
  %v81 = vpack.c.b16 %v69, %v68
  %v82 = vpack.c.b16 %v71, %v70
  %v83 = vpack.c.b16 %v73, %v72
  %v84 = vpack.c.b16 %v75, %v74
  %v85 = vpack.c.b16 %v77, %v76
  %94 = vmatprep.subr.bf16.mxu0 0
  %95 = vmatpush1.bf16.msra.mxu0 %v78
  %96 = vmatprep.subr.bf16.mxu0 0
  %97 = vmatpush1.bf16.msra.mxu0 %v79
  %98 = vmatprep.subr.bf16.mxu0 0
  %99 = vmatpush1.bf16.msra.mxu0 %v80
  %100 = vmatprep.subr.bf16.mxu0 0
  %101 = vmatpush1.bf16.msra.mxu0 %v81
  %102 = vmatprep.subr.bf16.mxu0 0
  %103 = vmatpush1.bf16.msra.mxu0 %v82
  %104 = vmatprep.subr.bf16.mxu0 0
  %105 = vmatpush1.bf16.msra.mxu0 %v83
  %106 = vmatprep.subr.bf16.mxu0 0
  %107 = vmatpush1.bf16.msra.mxu0 %v84
  %108 = vmatprep.subr.bf16.mxu0 0
  %109 = vmatpush1.bf16.msra.mxu0 %v85
  %110 = vmatprep.subr.bf16.mxu0 0
  %111 = vmatpush1.bf16.msra.mxu0 0
  %112 = vmatprep.subr.bf16.mxu0 0
  %113 = vmatpush1.bf16.msra.mxu0 0
  %114 = vmatprep.subr.bf16.mxu0 0
  %115 = vmatpush1.bf16.msra.mxu0 0
  %116 = vmatprep.subr.bf16.mxu0 0
  %117 = vmatpush1.bf16.msra.mxu0 0
  %118 = vmatprep.subr.bf16.mxu0 0
  %119 = vmatpush1.bf16.msra.mxu0 0
  %120 = vmatprep.subr.bf16.mxu0 0
  %121 = vmatpush1.bf16.msra.mxu0 0
  %122 = vmatprep.subr.bf16.mxu0 0
  %123 = vmatpush1.bf16.msra.mxu0 0
  %124 = vmatprep.subr.bf16.mxu0 0
  %125 = vmatpush1.bf16.msra.mxu0 0
  %126 = vmatprep.mubr.bf16.mxu0 0
  %127 = vmatmul.mubr.bf16.gmra.mrb[0].mxu0 %v44
  %v128 = vpop.f32.mrb[0].mxu0
  %v129 = vadd.f32 %v38, %v128
  %v130 = vpop.f32.mrb[0].mxu0
  %v131 = vpop.f32.mrb[0].mxu0
  %v132 = vadd.f32 %v38, %v131
  %v133 = vpop.f32.mrb[0].mxu0
  %134 = vdwg.mxu0
  %135 = vst [vmem:[%s3] sm:$0xff] %v129
  %136 = vst [vmem:[%s3 + $0x8] sm:$0xff] %v132
  // Predicated region
  $region14: #{gru_model_forward.5} parent=0 // pred_check
    _
  $region15: #{gru_model_forward.5} parent=0 // pred_check_branch
    %138 = sbr.rel (0) target = $region17
  $region16: #{gru_model_forward.5} parent=0 // pred_region
    _
  $region17: #{gru_model_forward.5} parent=0 // pred_fallthru
    _
  // Predicated region
  $region18: #{gru_model_forward.5} parent=0 // pred_check
    _
  $region19: #{gru_model_forward.5} parent=0 // pred_check_branch
    %140 = sbr.rel (0) target = $region21
  $region20: #{gru_model_forward.5} parent=0 // pred_region
    _
  $region21: #{gru_model_forward.5} parent=0 // pred_fallthru
    _

// kernel: gru_model_forward.4
$region0: #{gru_model_forward.4}
  #allocation0 [shape = 'u32[]', space=smem, size = 0x4, offset = 0x4, fixed_abs, tag = 'smem constant byte address 0x4 - core index']
  #allocation1 [shape = 'u32[144,128]{1,0:T(1,128)}', space=vmem, size = 0x12000, scoped, tag = 'internal scratch']
  #allocation2 [shape = 'f32[8,128]{1,0:T(8,128)}', space=vmem, size = 0x1000, scoped, tag = 'scratch operand']
  #allocation3 [shape = 'f32[64,384]{1,0:T(8,128)}', space=vmem, size = 0x18000, scoped, tag = 'scratch operand']
  %s0 = inlined_call_operand.vmem [shape: bf16[8,8,128], index: 0, kind: input, shape index: {}]
  %s1 = inlined_call_operand.vmem [shape: bf16[128,384], index: 1, kind: input, shape index: {}]
  %s2 = inlined_call_operand.vmem [shape: f32[1,384], index: 2, kind: input, shape index: {}]
  %s3 = inlined_call_operand.vmem [shape: bf16[128,384], index: 3, kind: input, shape index: {}]
  %s4 = inlined_call_operand.vmem [shape: f32[1,128], index: 4, kind: input, shape index: {}]
  %s5 = inlined_call_operand.vmem [shape: bf16[8,8,128], index: 5, kind: output, shape index: {}]
  %s6 = sld [smem:[#allocation0]]
  $region34: #{gru_model_forward.4} parent=0
    _
  %s8 = ssub.s32 1, %s6
  %s9 = scalar_select 0, %s8, %s6
  // Predicated region
  $region2: #{gru_model_forward.4} parent=0 // pred_check
    _
  $region3: #{gru_model_forward.4} parent=0 // pred_check_branch
    %11 = sbr.rel (0) target = $region5
  $region4: #{gru_model_forward.4} parent=0 // pred_region
    _
  $region5: #{gru_model_forward.4} parent=0 // pred_fallthru
    _
  // Predicated region
  $region6: #{gru_model_forward.4} parent=0 // pred_check
    _
  $region7: #{gru_model_forward.4} parent=0 // pred_check_branch
    %13 = sbr.rel (0) target = $region9
  $region8: #{gru_model_forward.4} parent=0 // pred_region
    _
  $region9: #{gru_model_forward.4} parent=0 // pred_fallthru
    _
  // Predicated region
  $region10: #{gru_model_forward.4} parent=0 // pred_check
    _
  $region11: #{gru_model_forward.4} parent=0 // pred_check_branch
    %15 = sbr.rel (0) target = $region13
  $region12: #{gru_model_forward.4} parent=0 // pred_region
    _
  $region13: #{gru_model_forward.4} parent=0 // pred_fallthru
    _
  // Predicated region
  $region14: #{gru_model_forward.4} parent=0 // pred_check
    _
  $region15: #{gru_model_forward.4} parent=0 // pred_check_branch
    %17 = sbr.rel (0) target = $region17
  $region16: #{gru_model_forward.4} parent=0 // pred_region
    _
  $region17: #{gru_model_forward.4} parent=0 // pred_fallthru
    _
  // Predicated region
  $region18: #{gru_model_forward.4} parent=0 // pred_check
    _
  $region19: #{gru_model_forward.4} parent=0 // pred_check_branch
    %19 = sbr.rel (0) target = $region21
  $region20: #{gru_model_forward.4} parent=0 // pred_region
    _
  $region21: #{gru_model_forward.4} parent=0 // pred_fallthru
    _
  %p21 = scmp.eq.s32.totalorder 0, 0
  // Predicated region
  $region22: #{gru_model_forward.4} parent=0 // pred_check
    %p22 = pneg %p21
  $region23: #{gru_model_forward.4} parent=0 // pred_check_branch
    %24 = sbr.rel (%p22) target = $region25
  $region24: #{gru_model_forward.4} parent=0 // pred_region
    %25 = vst [vmem:[#allocation2] sm:$0xff] 0.0
  $region25: #{gru_model_forward.4} parent=0 // pred_fallthru
    _
  %v26 = vld [vmem:[%s0] sm:$0xf]
  %v27 = vld [vmem:[%s0 + $0x4] sm:$0xf]
  %v28 = vld [vmem:[%s0 + $0x8] sm:$0xf]
  %v29 = vld [vmem:[%s0 + $0xc] sm:$0xf]
  %v30 = vld [vmem:[%s0 + $0x10] sm:$0xf]
  %v31 = vld [vmem:[%s0 + $0x14] sm:$0xf]
  %v32 = vld [vmem:[%s0 + $0x18] sm:$0xf]
  %v33 = vld [vmem:[%s0 + $0x1c] sm:$0xf]
  %v34 = vld [vmem:[%s1] sm:$0xff]
  %v35 = vld [vmem:[%s1 + $0x8] sm:$0xf]
  %v36 = vld [vmem:[%s1 + $0xc] sm:$0xff]
  %v37 = vld [vmem:[%s1 + $0x14] sm:$0xf]
  %v38 = vld [vmem:[%s1 + $0x18] sm:$0xff]
  %v39 = vld [vmem:[%s1 + $0x20] sm:$0xf]
  %v40 = vld [vmem:[%s1 + $0x24] sm:$0xff]
  %v41 = vld [vmem:[%s1 + $0x2c] sm:$0xf]
  %v42 = vld [vmem:[%s1 + $0x30] sm:$0xff]
  %v43 = vld [vmem:[%s1 + $0x38] sm:$0xf]
  %v44 = vld [vmem:[%s1 + $0x3c] sm:$0xff]
  %v45 = vld [vmem:[%s1 + $0x44] sm:$0xf]
  %v46 = vld [vmem:[%s1 + $0x48] sm:$0xff]
  %v47 = vld [vmem:[%s1 + $0x50] sm:$0xf]
  %v48 = vld [vmem:[%s1 + $0x54] sm:$0xff]
  %v49 = vld [vmem:[%s1 + $0x5c] sm:$0xf]
  %v50 = vld [vmem:[%s1 + $0x60] sm:$0xff]
  %v51 = vld [vmem:[%s1 + $0x68] sm:$0xf]
  %v52 = vld [vmem:[%s1 + $0x6c] sm:$0xff]
  %v53 = vld [vmem:[%s1 + $0x74] sm:$0xf]
  %v54 = vld [vmem:[%s1 + $0x78] sm:$0xff]
  %v55 = vld [vmem:[%s1 + $0x80] sm:$0xf]
  %v56 = vld [vmem:[%s1 + $0x84] sm:$0xff]
  %v57 = vld [vmem:[%s1 + $0x8c] sm:$0xf]
  %v58 = vld [vmem:[%s1 + $0x90] sm:$0xff]
  %v59 = vld [vmem:[%s1 + $0x98] sm:$0xf]
  %v60 = vld [vmem:[%s1 + $0x9c] sm:$0xff]
  %v61 = vld [vmem:[%s1 + $0xa4] sm:$0xf]
  %v62 = vld [vmem:[%s1 + $0xa8] sm:$0xff]
  %v63 = vld [vmem:[%s1 + $0xb0] sm:$0xf]
  %v64 = vld [vmem:[%s1 + $0xb4] sm:$0xff]
  %v65 = vld [vmem:[%s1 + $0xbc] sm:$0xf]
  %v66 = vld [vmem:[%s2] sm:$0x7]
  %v68 = vlaneseq
  %v69 = vshrl.u32 %v68, 7
  %v70 = vsub.s32 0, %v69
  %v71 = vrot.slane %v66, %v70
  %v72 = vlaneseq
  %v73 = vshrl.u32 %v72, 7
  %v74 = vsub.s32 1, %v73
  %v75 = vrot.slane %v66, %v74
  %v76 = vlaneseq
  %v77 = vshrl.u32 %v76, 7
  %v78 = vsub.s32 2, %v77
  %v79 = vrot.slane %v66, %v78
  %v91 = vunpack.c.l.b16 %v26
  %v92 = vunpack.c.l.b16 %v27
  %v93 = vunpack.c.l.b16 %v28
  %v94 = vunpack.c.l.b16 %v29
  %v95 = vunpack.c.l.b16 %v30
  %v96 = vunpack.c.l.b16 %v31
  %v97 = vunpack.c.l.b16 %v32
  %v98 = vunpack.c.l.b16 %v33
  %v99 = vpack.c.b16 %v92, %v91
  %v100 = vpack.c.b16 %v94, %v93
  %v101 = vpack.c.b16 %v96, %v95
  %v102 = vpack.c.b16 %v98, %v97
  %v139 = vunpack.c.l.b16 %v34
  %v140 = vunpack.c.h.b16 %v34
  %v141 = vunpack.c.l.b16 %v35
  %v142 = vunpack.c.l.b16 %v36
  %v143 = vunpack.c.h.b16 %v36
  %v144 = vunpack.c.l.b16 %v37
  %v145 = vunpack.c.l.b16 %v38
  %v146 = vunpack.c.h.b16 %v38
  %v147 = vunpack.c.l.b16 %v39
  %v148 = vunpack.c.l.b16 %v40
  %v149 = vunpack.c.h.b16 %v40
  %v150 = vunpack.c.l.b16 %v41
  %v151 = vunpack.c.l.b16 %v42
  %v152 = vunpack.c.h.b16 %v42
  %v153 = vunpack.c.l.b16 %v43
  %v154 = vunpack.c.l.b16 %v44
  %v155 = vunpack.c.h.b16 %v44
  %v156 = vunpack.c.l.b16 %v45
  %v157 = vunpack.c.l.b16 %v46
  %v158 = vunpack.c.h.b16 %v46
  %v159 = vunpack.c.l.b16 %v47
  %v160 = vunpack.c.l.b16 %v48
  %v161 = vunpack.c.h.b16 %v48
  %v162 = vunpack.c.l.b16 %v49
  %v163 = vunpack.c.l.b16 %v50
  %v164 = vunpack.c.h.b16 %v50
  %v165 = vunpack.c.l.b16 %v51
  %v166 = vunpack.c.l.b16 %v52
  %v167 = vunpack.c.h.b16 %v52
  %v168 = vunpack.c.l.b16 %v53
  %v169 = vunpack.c.l.b16 %v54
  %v170 = vunpack.c.h.b16 %v54
  %v171 = vunpack.c.l.b16 %v55
  %v172 = vunpack.c.l.b16 %v56
  %v173 = vunpack.c.h.b16 %v56
  %v174 = vunpack.c.l.b16 %v57
  %v175 = vunpack.c.l.b16 %v58
  %v176 = vunpack.c.h.b16 %v58
  %v177 = vunpack.c.l.b16 %v59
  %v178 = vunpack.c.l.b16 %v60
  %v179 = vunpack.c.h.b16 %v60
  %v180 = vunpack.c.l.b16 %v61
  %v181 = vunpack.c.l.b16 %v62
  %v182 = vunpack.c.h.b16 %v62
  %v183 = vunpack.c.l.b16 %v63
  %v184 = vunpack.c.l.b16 %v64
  %v185 = vunpack.c.h.b16 %v64
  %v186 = vunpack.c.l.b16 %v65
  %v187 = vpack.c.b16 %v142, %v139
  %v188 = vpack.c.b16 %v143, %v140
  %v189 = vpack.c.b16 %v144, %v141
  %v190 = vpack.c.b16 %v148, %v145
  %v191 = vpack.c.b16 %v149, %v146
  %v192 = vpack.c.b16 %v150, %v147
  %v193 = vpack.c.b16 %v154, %v151
  %v194 = vpack.c.b16 %v155, %v152
  %v195 = vpack.c.b16 %v156, %v153
  %v196 = vpack.c.b16 %v160, %v157
  %v197 = vpack.c.b16 %v161, %v158
  %v198 = vpack.c.b16 %v162, %v159
  %v199 = vpack.c.b16 %v166, %v163
  %v200 = vpack.c.b16 %v167, %v164
  %v201 = vpack.c.b16 %v168, %v165
  %v202 = vpack.c.b16 %v172, %v169
  %v203 = vpack.c.b16 %v173, %v170
  %v204 = vpack.c.b16 %v174, %v171
  %v205 = vpack.c.b16 %v178, %v175
  %v206 = vpack.c.b16 %v179, %v176
  %v207 = vpack.c.b16 %v180, %v177
  %v208 = vpack.c.b16 %v184, %v181
  %v209 = vpack.c.b16 %v185, %v182
  %v210 = vpack.c.b16 %v186, %v183
  %235 = vmatprep.subr.bf16.mxu0 %v188
  %236 = vmatpush1.bf16.msra.mxu0 %v187
  %237 = vmatprep.subr.bf16.mxu0 %v191
  %238 = vmatpush1.bf16.msra.mxu0 %v190
  %239 = vmatprep.subr.bf16.mxu0 %v194
  %240 = vmatpush1.bf16.msra.mxu0 %v193
  %241 = vmatprep.subr.bf16.mxu0 %v197
  %242 = vmatpush1.bf16.msra.mxu0 %v196
  %243 = vmatprep.subr.bf16.mxu0 %v200
  %244 = vmatpush1.bf16.msra.mxu0 %v199
  %245 = vmatprep.subr.bf16.mxu0 %v203
  %246 = vmatpush1.bf16.msra.mxu0 %v202
  %247 = vmatprep.subr.bf16.mxu0 %v206
  %248 = vmatpush1.bf16.msra.mxu0 %v205
  %249 = vmatprep.subr.bf16.mxu0 %v209
  %250 = vmatpush1.bf16.msra.mxu0 %v208
  %251 = vmatprep.subr.bf16.mxu0 0
  %252 = vmatpush1.bf16.msra.mxu0 0
  %253 = vmatprep.subr.bf16.mxu0 0
  %254 = vmatpush1.bf16.msra.mxu0 0
  %255 = vmatprep.subr.bf16.mxu0 0
  %256 = vmatpush1.bf16.msra.mxu0 0
  %257 = vmatprep.subr.bf16.mxu0 0
  %258 = vmatpush1.bf16.msra.mxu0 0
  %259 = vmatprep.subr.bf16.mxu0 0
  %260 = vmatpush1.bf16.msra.mxu0 0
  %261 = vmatprep.subr.bf16.mxu0 0
  %262 = vmatpush1.bf16.msra.mxu0 0
  %263 = vmatprep.subr.bf16.mxu0 0
  %264 = vmatpush1.bf16.msra.mxu0 0
  %265 = vmatprep.subr.bf16.mxu0 0
  %266 = vmatpush1.bf16.msra.mxu0 0
  %267 = vmatprep.mubr.bf16.mxu0 0
  %268 = vmatmul.mubr.bf16.gmra.mrb[0].mxu0 %v99
  %v269 = vpop.f32.mrb[0].mxu0
  %v270 = vadd.f32 %v71, %v269
  %v271 = vpop.f32.mrb[0].mxu0
  %v272 = vadd.f32 %v75, %v271
  %v273 = vpop.f32.mrb[0].mxu0
  %v274 = vadd.f32 %v71, %v273
  %v275 = vpop.f32.mrb[0].mxu0
  %v276 = vadd.f32 %v75, %v275
  %277 = vmatprep.mubr.bf16.mxu0 0
  %278 = vmatmul.mubr.bf16.gmra.mrb[0].mxu0 %v100
  %v279 = vpop.f32.mrb[0].mxu0
  %v280 = vadd.f32 %v71, %v279
  %v281 = vpop.f32.mrb[0].mxu0
  %v282 = vadd.f32 %v75, %v281
  %v283 = vpop.f32.mrb[0].mxu0
  %v284 = vadd.f32 %v71, %v283
  %v285 = vpop.f32.mrb[0].mxu0
  %v286 = vadd.f32 %v75, %v285
  %287 = vmatprep.mubr.bf16.mxu0 0
  %288 = vmatmul.mubr.bf16.gmra.mrb[0].mxu0 %v101
  %v289 = vpop.f32.mrb[0].mxu0
  %v290 = vadd.f32 %v71, %v289
  %v291 = vpop.f32.mrb[0].mxu0
  %v292 = vadd.f32 %v75, %v291
  %v293 = vpop.f32.mrb[0].mxu0
  %v294 = vadd.f32 %v71, %v293
  %v295 = vpop.f32.mrb[0].mxu0
  %v296 = vadd.f32 %v75, %v295
  %297 = vmatprep.mubr.bf16.mxu0 0
  %298 = vmatmul.mubr.bf16.gmra.mrb[0].mxu0 %v102
  %v299 = vpop.f32.mrb[0].mxu0
  %v300 = vadd.f32 %v71, %v299
  %v301 = vpop.f32.mrb[0].mxu0
  %v302 = vadd.f32 %v75, %v301
  %v303 = vpop.f32.mrb[0].mxu0
  %v304 = vadd.f32 %v71, %v303
  %v305 = vpop.f32.mrb[0].mxu0
  %v306 = vadd.f32 %v75, %v305
  %307 = vdwg.mxu0
  %308 = vmatprep.subr.bf16.mxu0 0
  %309 = vmatpush1.bf16.msra.mxu0 %v189
  %310 = vmatprep.subr.bf16.mxu0 0
  %311 = vmatpush1.bf16.msra.mxu0 %v192
  %312 = vmatprep.subr.bf16.mxu0 0
  %313 = vmatpush1.bf16.msra.mxu0 %v195
  %314 = vmatprep.subr.bf16.mxu0 0
  %315 = vmatpush1.bf16.msra.mxu0 %v198
  %316 = vmatprep.subr.bf16.mxu0 0
  %317 = vmatpush1.bf16.msra.mxu0 %v201
  %318 = vmatprep.subr.bf16.mxu0 0
  %319 = vmatpush1.bf16.msra.mxu0 %v204
  %320 = vmatprep.subr.bf16.mxu0 0
  %321 = vmatpush1.bf16.msra.mxu0 %v207
  %322 = vmatprep.subr.bf16.mxu0 0
  %323 = vmatpush1.bf16.msra.mxu0 %v210
  %324 = vmatprep.subr.bf16.mxu0 0
  %325 = vmatpush1.bf16.msra.mxu0 0
  %326 = vmatprep.subr.bf16.mxu0 0
  %327 = vmatpush1.bf16.msra.mxu0 0
  %328 = vmatprep.subr.bf16.mxu0 0
  %329 = vmatpush1.bf16.msra.mxu0 0
  %330 = vmatprep.subr.bf16.mxu0 0
  %331 = vmatpush1.bf16.msra.mxu0 0
  %332 = vmatprep.subr.bf16.mxu0 0
  %333 = vmatpush1.bf16.msra.mxu0 0
  %334 = vmatprep.subr.bf16.mxu0 0
  %335 = vmatpush1.bf16.msra.mxu0 0
  %336 = vmatprep.subr.bf16.mxu0 0
  %337 = vmatpush1.bf16.msra.mxu0 0
  %338 = vmatprep.subr.bf16.mxu0 0
  %339 = vmatpush1.bf16.msra.mxu0 0
  %340 = vmatprep.mubr.bf16.mxu0 0
  %341 = vmatmul.mubr.bf16.gmra.mrb[0].mxu0 %v99
  %v342 = vpop.f32.mrb[0].mxu0
  %v343 = vadd.f32 %v79, %v342
  %v344 = vpop.f32.mrb[0].mxu0
  %v345 = vpop.f32.mrb[0].mxu0
  %v346 = vadd.f32 %v79, %v345
  %v347 = vpop.f32.mrb[0].mxu0
  %348 = vmatprep.mubr.bf16.mxu0 0
  %349 = vmatmul.mubr.bf16.gmra.mrb[0].mxu0 %v100
  %v350 = vpop.f32.mrb[0].mxu0
  %v351 = vadd.f32 %v79, %v350
  %v352 = vpop.f32.mrb[0].mxu0
  %v353 = vpop.f32.mrb[0].mxu0
  %v354 = vadd.f32 %v79, %v353
  %v355 = vpop.f32.mrb[0].mxu0
  %356 = vmatprep.mubr.bf16.mxu0 0
  %357 = vmatmul.mubr.bf16.gmra.mrb[0].mxu0 %v101
  %v358 = vpop.f32.mrb[0].mxu0
  %v359 = vadd.f32 %v79, %v358
  %v360 = vpop.f32.mrb[0].mxu0
  %v361 = vpop.f32.mrb[0].mxu0
  %v362 = vadd.f32 %v79, %v361
  %v363 = vpop.f32.mrb[0].mxu0
  %364 = vmatprep.mubr.bf16.mxu0 0
  %365 = vmatmul.mubr.bf16.gmra.mrb[0].mxu0 %v102
  %v366 = vpop.f32.mrb[0].mxu0
  %v367 = vadd.f32 %v79, %v366
  %v368 = vpop.f32.mrb[0].mxu0
  %v369 = vpop.f32.mrb[0].mxu0
  %v370 = vadd.f32 %v79, %v369
  %v371 = vpop.f32.mrb[0].mxu0
  %372 = vdwg.mxu0
  %373 = vst [vmem:[#allocation3] sm:$0xff] %v270
  %374 = vst [vmem:[#allocation3 + $0x8] sm:$0xff] %v272
  %375 = vst [vmem:[#allocation3 + $0x10] sm:$0xff] %v343
  %376 = vst [vmem:[#allocation3 + $0x18] sm:$0xff] %v274
  %377 = vst [vmem:[#allocation3 + $0x20] sm:$0xff] %v276
  %378 = vst [vmem:[#allocation3 + $0x28] sm:$0xff] %v346
  %379 = vst [vmem:[#allocation3 + $0x30] sm:$0xff] %v280
  %380 = vst [vmem:[#allocation3 + $0x38] sm:$0xff] %v282
  %381 = vst [vmem:[#allocation3 + $0x40] sm:$0xff] %v351
  %382 = vst [vmem:[#allocation3 + $0x48] sm:$0xff] %v284
  %383 = vst [vmem:[#allocation3 + $0x50] sm:$0xff] %v286
  %384 = vst [vmem:[#allocation3 + $0x58] sm:$0xff] %v354
  %385 = vst [vmem:[#allocation3 + $0x60] sm:$0xff] %v290
  %386 = vst [vmem:[#allocation3 + $0x68] sm:$0xff] %v292
  %387 = vst [vmem:[#allocation3 + $0x70] sm:$0xff] %v359
  %388 = vst [vmem:[#allocation3 + $0x78] sm:$0xff] %v294
  %389 = vst [vmem:[#allocation3 + $0x80] sm:$0xff] %v296
  %390 = vst [vmem:[#allocation3 + $0x88] sm:$0xff] %v362
  %391 = vst [vmem:[#allocation3 + $0x90] sm:$0xff] %v300
  %392 = vst [vmem:[#allocation3 + $0x98] sm:$0xff] %v302
  %393 = vst [vmem:[#allocation3 + $0xa0] sm:$0xff] %v367
  %394 = vst [vmem:[#allocation3 + $0xa8] sm:$0xff] %v304
  %395 = vst [vmem:[#allocation3 + $0xb0] sm:$0xff] %v306
  %396 = vst [vmem:[#allocation3 + $0xb8] sm:$0xff] %v370
  %v397 = vld [vmem:[%s4] sm:$0x1]
  %v399 = vlaneseq
  %v400 = vshrl.u32 %v399, 7
  %v401 = vsub.s32 0, %v400
  %v402 = vrot.slane %v397, %v401
  %v404 = vld [vmem:[#allocation2] sm:$0xff]
  %s405 = smul.u32 0, 3
  %s406 = smul.addr %s405, 8
  %s407 = scalar_lea.vmem [#allocation3], %s406
  %v408 = vld [vmem:[%s407] sm:$0xff]
  %v409 = vld [vmem:[%s407 + $0x8] sm:$0xff]
  %v410 = vld [vmem:[%s407 + $0x10] sm:$0xff]
  %v411 = vpack.c.bf16 %v404, %v404
  %v412 = vld [vmem:[%s3] sm:$0xff]
  %v413 = vld [vmem:[%s3 + $0x8] sm:$0xf]
  %v414 = vld [vmem:[%s3 + $0xc] sm:$0xff]
  %v415 = vld [vmem:[%s3 + $0x14] sm:$0xf]
  %v416 = vld [vmem:[%s3 + $0x18] sm:$0xff]
  %v417 = vld [vmem:[%s3 + $0x20] sm:$0xf]
  %v418 = vld [vmem:[%s3 + $0x24] sm:$0xff]
  %v419 = vld [vmem:[%s3 + $0x2c] sm:$0xf]
  %v420 = vld [vmem:[%s3 + $0x30] sm:$0xff]
  %v421 = vld [vmem:[%s3 + $0x38] sm:$0xf]
  %v422 = vld [vmem:[%s3 + $0x3c] sm:$0xff]
  %v423 = vld [vmem:[%s3 + $0x44] sm:$0xf]
  %v424 = vld [vmem:[%s3 + $0x48] sm:$0xff]
  %v425 = vld [vmem:[%s3 + $0x50] sm:$0xf]
  %v426 = vld [vmem:[%s3 + $0x54] sm:$0xff]
  %v427 = vld [vmem:[%s3 + $0x5c] sm:$0xf]
  %v428 = vld [vmem:[%s3 + $0x60] sm:$0xff]
  %v429 = vld [vmem:[%s3 + $0x68] sm:$0xf]
  %v430 = vld [vmem:[%s3 + $0x6c] sm:$0xff]
  %v431 = vld [vmem:[%s3 + $0x74] sm:$0xf]
  %v432 = vld [vmem:[%s3 + $0x78] sm:$0xff]
  %v433 = vld [vmem:[%s3 + $0x80] sm:$0xf]
  %v434 = vld [vmem:[%s3 + $0x84] sm:$0xff]
  %v435 = vld [vmem:[%s3 + $0x8c] sm:$0xf]
  %v436 = vld [vmem:[%s3 + $0x90] sm:$0xff]
  %v437 = vld [vmem:[%s3 + $0x98] sm:$0xf]
  %v438 = vld [vmem:[%s3 + $0x9c] sm:$0xff]
  %v439 = vld [vmem:[%s3 + $0xa4] sm:$0xf]
  %v440 = vld [vmem:[%s3 + $0xa8] sm:$0xff]
  %v441 = vld [vmem:[%s3 + $0xb0] sm:$0xf]
  %v442 = vld [vmem:[%s3 + $0xb4] sm:$0xff]
  %v443 = vld [vmem:[%s3 + $0xbc] sm:$0xf]
  %v476 = vunpack.c.l.b16 %v412
  %v477 = vunpack.c.h.b16 %v412
  %v478 = vunpack.c.l.b16 %v413
  %v479 = vunpack.c.l.b16 %v414
  %v480 = vunpack.c.h.b16 %v414
  %v481 = vunpack.c.l.b16 %v415
  %v482 = vunpack.c.l.b16 %v416
  %v483 = vunpack.c.h.b16 %v416
  %v484 = vunpack.c.l.b16 %v417
  %v485 = vunpack.c.l.b16 %v418
  %v486 = vunpack.c.h.b16 %v418
  %v487 = vunpack.c.l.b16 %v419
  %v488 = vunpack.c.l.b16 %v420
  %v489 = vunpack.c.h.b16 %v420
  %v490 = vunpack.c.l.b16 %v421
  %v491 = vunpack.c.l.b16 %v422
  %v492 = vunpack.c.h.b16 %v422
  %v493 = vunpack.c.l.b16 %v423
  %v494 = vunpack.c.l.b16 %v424
  %v495 = vunpack.c.h.b16 %v424
  %v496 = vunpack.c.l.b16 %v425
  %v497 = vunpack.c.l.b16 %v426
  %v498 = vunpack.c.h.b16 %v426
  %v499 = vunpack.c.l.b16 %v427
  %v500 = vunpack.c.l.b16 %v428
  %v501 = vunpack.c.h.b16 %v428
  %v502 = vunpack.c.l.b16 %v429
  %v503 = vunpack.c.l.b16 %v430
  %v504 = vunpack.c.h.b16 %v430
  %v505 = vunpack.c.l.b16 %v431
  %v506 = vunpack.c.l.b16 %v432
  %v507 = vunpack.c.h.b16 %v432
  %v508 = vunpack.c.l.b16 %v433
  %v509 = vunpack.c.l.b16 %v434
  %v510 = vunpack.c.h.b16 %v434
  %v511 = vunpack.c.l.b16 %v435
  %v512 = vunpack.c.l.b16 %v436
  %v513 = vunpack.c.h.b16 %v436
  %v514 = vunpack.c.l.b16 %v437
  %v515 = vunpack.c.l.b16 %v438
  %v516 = vunpack.c.h.b16 %v438
  %v517 = vunpack.c.l.b16 %v439
  %v518 = vunpack.c.l.b16 %v440
  %v519 = vunpack.c.h.b16 %v440
  %v520 = vunpack.c.l.b16 %v441
  %v521 = vunpack.c.l.b16 %v442
  %v522 = vunpack.c.h.b16 %v442
  %v523 = vunpack.c.l.b16 %v443
  %v524 = vpack.c.b16 %v479, %v476
  %v525 = vpack.c.b16 %v480, %v477
  %v526 = vpack.c.b16 %v481, %v478
  %v527 = vpack.c.b16 %v485, %v482
  %v528 = vpack.c.b16 %v486, %v483
  %v529 = vpack.c.b16 %v487, %v484
  %v530 = vpack.c.b16 %v491, %v488
  %v531 = vpack.c.b16 %v492, %v489
  %v532 = vpack.c.b16 %v493, %v490
  %v533 = vpack.c.b16 %v497, %v494
  %v534 = vpack.c.b16 %v498, %v495
  %v535 = vpack.c.b16 %v499, %v496
  %v536 = vpack.c.b16 %v503, %v500
  %v537 = vpack.c.b16 %v504, %v501
  %v538 = vpack.c.b16 %v505, %v502
  %v539 = vpack.c.b16 %v509, %v506
  %v540 = vpack.c.b16 %v510, %v507
  %v541 = vpack.c.b16 %v511, %v508
  %v542 = vpack.c.b16 %v515, %v512
  %v543 = vpack.c.b16 %v516, %v513
  %v544 = vpack.c.b16 %v517, %v514
  %v545 = vpack.c.b16 %v521, %v518
  %v546 = vpack.c.b16 %v522, %v519
  %v547 = vpack.c.b16 %v523, %v520
  %572 = vmatprep.subr.bf16.mxu0 %v525
  %573 = vmatpush1.bf16.msra.mxu0 %v524
  %574 = vmatprep.subr.bf16.mxu0 %v528
  %575 = vmatpush1.bf16.msra.mxu0 %v527
  %576 = vmatprep.subr.bf16.mxu0 %v531
  %577 = vmatpush1.bf16.msra.mxu0 %v530
  %578 = vmatprep.subr.bf16.mxu0 %v534
  %579 = vmatpush1.bf16.msra.mxu0 %v533
  %580 = vmatprep.subr.bf16.mxu0 %v537
  %581 = vmatpush1.bf16.msra.mxu0 %v536
  %582 = vmatprep.subr.bf16.mxu0 %v540
  %583 = vmatpush1.bf16.msra.mxu0 %v539
  %584 = vmatprep.subr.bf16.mxu0 %v543
  %585 = vmatpush1.bf16.msra.mxu0 %v542
  %586 = vmatprep.subr.bf16.mxu0 %v546
  %587 = vmatpush1.bf16.msra.mxu0 %v545
  %588 = vmatprep.subr.bf16.mxu0 0
  %589 = vmatpush1.bf16.msra.mxu0 0
  %590 = vmatprep.subr.bf16.mxu0 0
  %591 = vmatpush1.bf16.msra.mxu0 0
  %592 = vmatprep.subr.bf16.mxu0 0
  %593 = vmatpush1.bf16.msra.mxu0 0
  %594 = vmatprep.subr.bf16.mxu0 0
  %595 = vmatpush1.bf16.msra.mxu0 0
  %596 = vmatprep.subr.bf16.mxu0 0
  %597 = vmatpush1.bf16.msra.mxu0 0
  %598 = vmatprep.subr.bf16.mxu0 0
  %599 = vmatpush1.bf16.msra.mxu0 0
  %600 = vmatprep.subr.bf16.mxu0 0
  %601 = vmatpush1.bf16.msra.mxu0 0
  %602 = vmatprep.subr.bf16.mxu0 0
  %603 = vmatpush1.bf16.msra.mxu0 0
  %604 = vmatprep.mubr.bf16.mxu0 0
  %605 = vmatmul.mubr.bf16.gmra.mrb[0].mxu0 %v411
  %v606 = vpop.f32.mrb[0].mxu0
  %v607 = vadd.f32 0.0, %v606
  %v608 = vpop.f32.mrb[0].mxu0
  %v609 = vadd.f32 0.0, %v608
  %v610 = vpop.f32.mrb[0].mxu0
  %v611 = vpop.f32.mrb[0].mxu0
  %612 = vdwg.mxu0
  %613 = vmatprep.subr.bf16.mxu0 0
  %614 = vmatpush1.bf16.msra.mxu0 %v526
  %615 = vmatprep.subr.bf16.mxu0 0
  %616 = vmatpush1.bf16.msra.mxu0 %v529
  %617 = vmatprep.subr.bf16.mxu0 0
  %618 = vmatpush1.bf16.msra.mxu0 %v532
  %619 = vmatprep.subr.bf16.mxu0 0
  %620 = vmatpush1.bf16.msra.mxu0 %v535
  %621 = vmatprep.subr.bf16.mxu0 0
  %622 = vmatpush1.bf16.msra.mxu0 %v538
  %623 = vmatprep.subr.bf16.mxu0 0
  %624 = vmatpush1.bf16.msra.mxu0 %v541
  %625 = vmatprep.subr.bf16.mxu0 0
  %626 = vmatpush1.bf16.msra.mxu0 %v544
  %627 = vmatprep.subr.bf16.mxu0 0
  %628 = vmatpush1.bf16.msra.mxu0 %v547
  %629 = vmatprep.subr.bf16.mxu0 0
  %630 = vmatpush1.bf16.msra.mxu0 0
  %631 = vmatprep.subr.bf16.mxu0 0
  %632 = vmatpush1.bf16.msra.mxu0 0
  %633 = vmatprep.subr.bf16.mxu0 0
  %634 = vmatpush1.bf16.msra.mxu0 0
  %635 = vmatprep.subr.bf16.mxu0 0
  %636 = vmatpush1.bf16.msra.mxu0 0
  %637 = vmatprep.subr.bf16.mxu0 0
  %638 = vmatpush1.bf16.msra.mxu0 0
  %639 = vmatprep.subr.bf16.mxu0 0
  %640 = vmatpush1.bf16.msra.mxu0 0
  %641 = vmatprep.subr.bf16.mxu0 0
  %642 = vmatpush1.bf16.msra.mxu0 0
  %643 = vmatprep.subr.bf16.mxu0 0
  %644 = vmatpush1.bf16.msra.mxu0 0
  %645 = vmatprep.mubr.bf16.mxu0 0
  %646 = vmatmul.mubr.bf16.gmra.mrb[0].mxu0 %v411
  %v647 = vpop.f32.mrb[0].mxu0
  %v648 = vadd.f32 0.0, %v647
  %v649 = vpop.f32.mrb[0].mxu0
  %v650 = vpop.f32.mrb[0].mxu0
  %v651 = vpop.f32.mrb[0].mxu0
  %652 = vdwg.mxu0
  %v653 = vadd.f32 %v408, %v607
  %v654 = vxor.u32 %v653, 2147483648
  %v655 = vmul.f32 %v654, 1.442695
  %v656 = vpow.pop %v655
  %v657 = vadd.f32 %v656, 1.0
  %v658 = vrcp.pop %v657
  %v659 = vmul.f32 1.0, %v658
  %v660 = vadd.f32 %v409, %v609
  %v661 = vxor.u32 %v660, 2147483648
  %v662 = vmul.f32 %v661, 1.442695
  %v663 = vpow.pop %v662
  %v664 = vadd.f32 %v663, 1.0
  %v665 = vrcp.pop %v664
  %v666 = vmul.f32 1.0, %v665
  %v667 = vadd.f32 %v648, %v402
  %v668 = vmul.f32 %v659, %v667
  %v669 = vadd.f32 %v410, %v668
  %v670 = vtanh.pop %v669
  %v671 = vsub.f32 1.0, %v666
  %v672 = vmul.f32 %v671, %v670
  %v673 = vmul.f32 %v666, %v404
  %v674 = vadd.f32 %v672, %v673
  %v675 = vpack.c.bf16 %v674, %v674
  %676 = vst [vmem:[%s5] sm:$0xf] %v675
  %s677 = smul.u32 1, 3
  %s678 = smul.addr %s677, 8
  %s679 = scalar_lea.vmem [#allocation3], %s678
  %v680 = vld [vmem:[%s679] sm:$0xff]
  %v681 = vld [vmem:[%s679 + $0x8] sm:$0xff]
  %v682 = vld [vmem:[%s679 + $0x10] sm:$0xff]
  %v683 = vld [vmem:[%s3] sm:$0xff]
  %v684 = vld [vmem:[%s3 + $0x8] sm:$0xf]
  %v685 = vld [vmem:[%s3 + $0xc] sm:$0xff]
  %v686 = vld [vmem:[%s3 + $0x14] sm:$0xf]
  %v687 = vld [vmem:[%s3 + $0x18] sm:$0xff]
  %v688 = vld [vmem:[%s3 + $0x20] sm:$0xf]
  %v689 = vld [vmem:[%s3 + $0x24] sm:$0xff]
  %v690 = vld [vmem:[%s3 + $0x2c] sm:$0xf]
  %v691 = vld [vmem:[%s3 + $0x30] sm:$0xff]
  %v692 = vld [vmem:[%s3 + $0x38] sm:$0xf]
  %v693 = vld [vmem:[%s3 + $0x3c] sm:$0xff]
  %v694 = vld [vmem:[%s3 + $0x44] sm:$0xf]
  %v695 = vld [vmem:[%s3 + $0x48] sm:$0xff]
  %v696 = vld [vmem:[%s3 + $0x50] sm:$0xf]
  %v697 = vld [vmem:[%s3 + $0x54] sm:$0xff]
  %v698 = vld [vmem:[%s3 + $0x5c] sm:$0xf]
  %v699 = vld [vmem:[%s3 + $0x60] sm:$0xff]
  %v700 = vld [vmem:[%s3 + $0x68] sm:$0xf]
  %v701 = vld [vmem:[%s3 + $0x6c] sm:$0xff]
  %v702 = vld [vmem:[%s3 + $0x74] sm:$0xf]
  %v703 = vld [vmem:[%s3 + $0x78] sm:$0xff]
  %v704 = vld [vmem:[%s3 + $0x80] sm:$0xf]
  %v705 = vld [vmem:[%s3 + $0x84] sm:$0xff]
  %v706 = vld [vmem:[%s3 + $0x8c] sm:$0xf]
  %v707 = vld [vmem:[%s3 + $0x90] sm:$0xff]
  %v708 = vld [vmem:[%s3 + $0x98] sm:$0xf]
  %v709 = vld [vmem:[%s3 + $0x9c] sm:$0xff]
  %v710 = vld [vmem:[%s3 + $0xa4] sm:$0xf]
  %v711 = vld [vmem:[%s3 + $0xa8] sm:$0xff]
  %v712 = vld [vmem:[%s3 + $0xb0] sm:$0xf]
  %v713 = vld [vmem:[%s3 + $0xb4] sm:$0xff]
  %v714 = vld [vmem:[%s3 + $0xbc] sm:$0xf]
  %v747 = vunpack.c.l.b16 %v683
  %v748 = vunpack.c.h.b16 %v683
  %v749 = vunpack.c.l.b16 %v684
  %v750 = vunpack.c.l.b16 %v685
  %v751 = vunpack.c.h.b16 %v685
  %v752 = vunpack.c.l.b16 %v686
  %v753 = vunpack.c.l.b16 %v687
  %v754 = vunpack.c.h.b16 %v687
  %v755 = vunpack.c.l.b16 %v688
  %v756 = vunpack.c.l.b16 %v689
  %v757 = vunpack.c.h.b16 %v689
  %v758 = vunpack.c.l.b16 %v690
  %v759 = vunpack.c.l.b16 %v691
  %v760 = vunpack.c.h.b16 %v691
  %v761 = vunpack.c.l.b16 %v692
  %v762 = vunpack.c.l.b16 %v693
  %v763 = vunpack.c.h.b16 %v693
  %v764 = vunpack.c.l.b16 %v694
  %v765 = vunpack.c.l.b16 %v695
  %v766 = vunpack.c.h.b16 %v695
  %v767 = vunpack.c.l.b16 %v696
  %v768 = vunpack.c.l.b16 %v697
  %v769 = vunpack.c.h.b16 %v697
  %v770 = vunpack.c.l.b16 %v698
  %v771 = vunpack.c.l.b16 %v699
  %v772 = vunpack.c.h.b16 %v699
  %v773 = vunpack.c.l.b16 %v700
  %v774 = vunpack.c.l.b16 %v701
  %v775 = vunpack.c.h.b16 %v701
  %v776 = vunpack.c.l.b16 %v702
  %v777 = vunpack.c.l.b16 %v703
  %v778 = vunpack.c.h.b16 %v703
  %v779 = vunpack.c.l.b16 %v704
  %v780 = vunpack.c.l.b16 %v705
  %v781 = vunpack.c.h.b16 %v705
  %v782 = vunpack.c.l.b16 %v706
  %v783 = vunpack.c.l.b16 %v707
  %v784 = vunpack.c.h.b16 %v707
  %v785 = vunpack.c.l.b16 %v708
  %v786 = vunpack.c.l.b16 %v709
  %v787 = vunpack.c.h.b16 %v709
  %v788 = vunpack.c.l.b16 %v710
  %v789 = vunpack.c.l.b16 %v711
  %v790 = vunpack.c.h.b16 %v711
  %v791 = vunpack.c.l.b16 %v712
  %v792 = vunpack.c.l.b16 %v713
  %v793 = vunpack.c.h.b16 %v713
  %v794 = vunpack.c.l.b16 %v714
  %v795 = vpack.c.b16 %v750, %v747
  %v796 = vpack.c.b16 %v751, %v748
  %v797 = vpack.c.b16 %v752, %v749
  %v798 = vpack.c.b16 %v756, %v753
  %v799 = vpack.c.b16 %v757, %v754
  %v800 = vpack.c.b16 %v758, %v755
  %v801 = vpack.c.b16 %v762, %v759
  %v802 = vpack.c.b16 %v763, %v760
  %v803 = vpack.c.b16 %v764, %v761
  %v804 = vpack.c.b16 %v768, %v765
  %v805 = vpack.c.b16 %v769, %v766
  %v806 = vpack.c.b16 %v770, %v767
  %v807 = vpack.c.b16 %v774, %v771
  %v808 = vpack.c.b16 %v775, %v772
  %v809 = vpack.c.b16 %v776, %v773
  %v810 = vpack.c.b16 %v780, %v777
  %v811 = vpack.c.b16 %v781, %v778
  %v812 = vpack.c.b16 %v782, %v779
  %v813 = vpack.c.b16 %v786, %v783
  %v814 = vpack.c.b16 %v787, %v784
  %v815 = vpack.c.b16 %v788, %v785
  %v816 = vpack.c.b16 %v792, %v789
  %v817 = vpack.c.b16 %v793, %v790
  %v818 = vpack.c.b16 %v794, %v791
  %843 = vmatprep.subr.bf16.mxu0 %v796
  %844 = vmatpush1.bf16.msra.mxu0 %v795
  %845 = vmatprep.subr.bf16.mxu0 %v799
  %846 = vmatpush1.bf16.msra.mxu0 %v798
  %847 = vmatprep.subr.bf16.mxu0 %v802
  %848 = vmatpush1.bf16.msra.mxu0 %v801
  %849 = vmatprep.subr.bf16.mxu0 %v805
  %850 = vmatpush1.bf16.msra.mxu0 %v804
  %851 = vmatprep.subr.bf16.mxu0 %v808
  %852 = vmatpush1.bf16.msra.mxu0 %v807
  %853 = vmatprep.subr.bf16.mxu0 %v811
  %854 = vmatpush1.bf16.msra.mxu0 %v810
  %855 = vmatprep.subr.bf16.mxu0 %v814
  %856 = vmatpush1.bf16.msra.mxu0 %v813
  %857 = vmatprep.subr.bf16.mxu0 %v817
  %858 = vmatpush1.bf16.msra.mxu0 %v816
  %859 = vmatprep.subr.bf16.mxu0 0
  %860 = vmatpush1.bf16.msra.mxu0 0
  %861 = vmatprep.subr.bf16.mxu0 0
  %862 = vmatpush1.bf16.msra.mxu0 0
  %863 = vmatprep.subr.bf16.mxu0 0
  %864 = vmatpush1.bf16.msra.mxu0 0
  %865 = vmatprep.subr.bf16.mxu0 0
  %866 = vmatpush1.bf16.msra.mxu0 0
  %867 = vmatprep.subr.bf16.mxu0 0
  %868 = vmatpush1.bf16.msra.mxu0 0
  %869 = vmatprep.subr.bf16.mxu0 0
  %870 = vmatpush1.bf16.msra.mxu0 0
  %871 = vmatprep.subr.bf16.mxu0 0
  %872 = vmatpush1.bf16.msra.mxu0 0
  %873 = vmatprep.subr.bf16.mxu0 0
  %874 = vmatpush1.bf16.msra.mxu0 0
  %875 = vmatprep.mubr.bf16.mxu0 0
  %876 = vmatmul.mubr.bf16.gmra.mrb[0].mxu0 %v675
  %v877 = vpop.f32.mrb[0].mxu0
  %v878 = vadd.f32 0.0, %v877
  %v879 = vpop.f32.mrb[0].mxu0
  %v880 = vadd.f32 0.0, %v879
  %v881 = vpop.f32.mrb[0].mxu0
  %v882 = vpop.f32.mrb[0].mxu0
  %883 = vdwg.mxu0
  %884 = vmatprep.subr.bf16.mxu0 0
  %885 = vmatpush1.bf16.msra.mxu0 %v797
  %886 = vmatprep.subr.bf16.mxu0 0
  %887 = vmatpush1.bf16.msra.mxu0 %v800
  %888 = vmatprep.subr.bf16.mxu0 0
  %889 = vmatpush1.bf16.msra.mxu0 %v803
  %890 = vmatprep.subr.bf16.mxu0 0
  %891 = vmatpush1.bf16.msra.mxu0 %v806
  %892 = vmatprep.subr.bf16.mxu0 0
  %893 = vmatpush1.bf16.msra.mxu0 %v809
  %894 = vmatprep.subr.bf16.mxu0 0
  %895 = vmatpush1.bf16.msra.mxu0 %v812
  %896 = vmatprep.subr.bf16.mxu0 0
  %897 = vmatpush1.bf16.msra.mxu0 %v815
  %898 = vmatprep.subr.bf16.mxu0 0
  %899 = vmatpush1.bf16.msra.mxu0 %v818
  %900 = vmatprep.subr.bf16.mxu0 0
  %901 = vmatpush1.bf16.msra.mxu0 0
  %902 = vmatprep.subr.bf16.mxu0 0
  %903 = vmatpush1.bf16.msra.mxu0 0
  %904 = vmatprep.subr.bf16.mxu0 0
  %905 = vmatpush1.bf16.msra.mxu0 0
  %906 = vmatprep.subr.bf16.mxu0 0
  %907 = vmatpush1.bf16.msra.mxu0 0
  %908 = vmatprep.subr.bf16.mxu0 0
  %909 = vmatpush1.bf16.msra.mxu0 0
  %910 = vmatprep.subr.bf16.mxu0 0
  %911 = vmatpush1.bf16.msra.mxu0 0
  %912 = vmatprep.subr.bf16.mxu0 0
  %913 = vmatpush1.bf16.msra.mxu0 0
  %914 = vmatprep.subr.bf16.mxu0 0
  %915 = vmatpush1.bf16.msra.mxu0 0
  %916 = vmatprep.mubr.bf16.mxu0 0
  %917 = vmatmul.mubr.bf16.gmra.mrb[0].mxu0 %v675
  %v918 = vpop.f32.mrb[0].mxu0
  %v919 = vadd.f32 0.0, %v918
  %v920 = vpop.f32.mrb[0].mxu0
  %v921 = vpop.f32.mrb[0].mxu0
  %v922 = vpop.f32.mrb[0].mxu0
  %923 = vdwg.mxu0
  %v924 = vadd.f32 %v680, %v878
  %v925 = vxor.u32 %v924, 2147483648
  %v926 = vmul.f32 %v925, 1.442695
  %v927 = vpow.pop %v926
  %v928 = vadd.f32 %v927, 1.0
  %v929 = vrcp.pop %v928
  %v930 = vmul.f32 1.0, %v929
  %v931 = vadd.f32 %v681, %v880
  %v932 = vxor.u32 %v931, 2147483648
  %v933 = vmul.f32 %v932, 1.442695
  %v934 = vpow.pop %v933
  %v935 = vadd.f32 %v934, 1.0
  %v936 = vrcp.pop %v935
  %v937 = vmul.f32 1.0, %v936
  %v938 = vadd.f32 %v919, %v402
  %v939 = vmul.f32 %v930, %v938
  %v940 = vadd.f32 %v682, %v939
  %v941 = vtanh.pop %v940
  %v942 = vsub.f32 1.0, %v937
  %v943 = vmul.f32 %v942, %v941
  %v944 = vmul.f32 %v937, %v674
  %v945 = vadd.f32 %v943, %v944
  %v946 = vpack.c.bf16 %v945, %v945
  %s947 = scalar_lea.vmem %s5, 4
  %948 = vst [vmem:[%s947] sm:$0xf] %v946
  %s949 = smul.u32 2, 3
  %s950 = smul.addr %s949, 8
  %s951 = scalar_lea.vmem [#allocation3], %s950
  %v952 = vld [vmem:[%s951] sm:$0xff]
  %v953 = vld [vmem:[%s951 + $0x8] sm:$0xff]
  %v954 = vld [vmem:[%s951 + $0x10] sm:$0xff]
  %v955 = vld [vmem:[%s3] sm:$0xff]
  %v956 = vld [vmem:[%s3 + $0x8] sm:$0xf]
  %v957 = vld [vmem:[%s3 + $0xc] sm:$0xff]
  %v958 = vld [vmem:[%s3 + $0x14] sm:$0xf]
  %v959 = vld [vmem:[%s3 + $0x18] sm:$0xff]
  %v960 = vld [vmem:[%s3 + $0x20] sm:$0xf]
  %v961 = vld [vmem:[%s3 + $0x24] sm:$0xff]
  %v962 = vld [vmem:[%s3 + $0x2c] sm:$0xf]
  %v963 = vld [vmem:[%s3 + $0x30] sm:$0xff]
  %v964 = vld [vmem:[%s3 + $0x38] sm:$0xf]
  %v965 = vld [vmem:[%s3 + $0x3c] sm:$0xff]
  %v966 = vld [vmem:[%s3 + $0x44] sm:$0xf]
  %v967 = vld [vmem:[%s3 + $0x48] sm:$0xff]
  %v968 = vld [vmem:[%s3 + $0x50] sm:$0xf]
  %v969 = vld [vmem:[%s3 + $0x54] sm:$0xff]
  %v970 = vld [vmem:[%s3 + $0x5c] sm:$0xf]
  %v971 = vld [vmem:[%s3 + $0x60] sm:$0xff]
  %v972 = vld [vmem:[%s3 + $0x68] sm:$0xf]
  %v973 = vld [vmem:[%s3 + $0x6c] sm:$0xff]
  %v974 = vld [vmem:[%s3 + $0x74] sm:$0xf]
  %v975 = vld [vmem:[%s3 + $0x78] sm:$0xff]
  %v976 = vld [vmem:[%s3 + $0x80] sm:$0xf]
  %v977 = vld [vmem:[%s3 + $0x84] sm:$0xff]
  %v978 = vld [vmem:[%s3 + $0x8c] sm:$0xf]
  %v979 = vld [vmem:[%s3 + $0x90] sm:$0xff]
  %v980 = vld [vmem:[%s3 + $0x98] sm:$0xf]
  %v981 = vld [vmem:[%s3 + $0x9c] sm:$0xff]
  %v982 = vld [vmem:[%s3 + $0xa4] sm:$0xf]
  %v983 = vld [vmem:[%s3 + $0xa8] sm:$0xff]
  %v984 = vld [vmem:[%s3 + $0xb0] sm:$0xf]
  %v985 = vld [vmem:[%s3 + $0xb4] sm:$0xff]
  %v986 = vld [vmem:[%s3 + $0xbc] sm:$0xf]
  %v1019 = vunpack.c.l.b16 %v955
  %v1020 = vunpack.c.h.b16 %v955
  %v1021 = vunpack.c.l.b16 %v956
  %v1022 = vunpack.c.l.b16 %v957
  %v1023 = vunpack.c.h.b16 %v957
  %v1024 = vunpack.c.l.b16 %v958
  %v1025 = vunpack.c.l.b16 %v959
  %v1026 = vunpack.c.h.b16 %v959
  %v1027 = vunpack.c.l.b16 %v960
  %v1028 = vunpack.c.l.b16 %v961
  %v1029 = vunpack.c.h.b16 %v961
  %v1030 = vunpack.c.l.b16 %v962
  %v1031 = vunpack.c.l.b16 %v963
  %v1032 = vunpack.c.h.b16 %v963
  %v1033 = vunpack.c.l.b16 %v964
  %v1034 = vunpack.c.l.b16 %v965
  %v1035 = vunpack.c.h.b16 %v965
  %v1036 = vunpack.c.l.b16 %v966
  %v1037 = vunpack.c.l.b16 %v967
  %v1038 = vunpack.c.h.b16 %v967
  %v1039 = vunpack.c.l.b16 %v968
  %v1040 = vunpack.c.l.b16 %v969
  %v1041 = vunpack.c.h.b16 %v969
  %v1042 = vunpack.c.l.b16 %v970
  %v1043 = vunpack.c.l.b16 %v971
  %v1044 = vunpack.c.h.b16 %v971
  %v1045 = vunpack.c.l.b16 %v972
  %v1046 = vunpack.c.l.b16 %v973
  %v1047 = vunpack.c.h.b16 %v973
  %v1048 = vunpack.c.l.b16 %v974
  %v1049 = vunpack.c.l.b16 %v975
  %v1050 = vunpack.c.h.b16 %v975
  %v1051 = vunpack.c.l.b16 %v976
  %v1052 = vunpack.c.l.b16 %v977
  %v1053 = vunpack.c.h.b16 %v977
  %v1054 = vunpack.c.l.b16 %v978
  %v1055 = vunpack.c.l.b16 %v979
  %v1056 = vunpack.c.h.b16 %v979
  %v1057 = vunpack.c.l.b16 %v980
  %v1058 = vunpack.c.l.b16 %v981
  %v1059 = vunpack.c.h.b16 %v981
  %v1060 = vunpack.c.l.b16 %v982
  %v1061 = vunpack.c.l.b16 %v983
  %v1062 = vunpack.c.h.b16 %v983
  %v1063 = vunpack.c.l.b16 %v984
  %v1064 = vunpack.c.l.b16 %v985
  %v1065 = vunpack.c.h.b16 %v985
  %v1066 = vunpack.c.l.b16 %v986
  %v1067 = vpack.c.b16 %v1022, %v1019
  %v1068 = vpack.c.b16 %v1023, %v1020
  %v1069 = vpack.c.b16 %v1024, %v1021
  %v1070 = vpack.c.b16 %v1028, %v1025
  %v1071 = vpack.c.b16 %v1029, %v1026
  %v1072 = vpack.c.b16 %v1030, %v1027
  %v1073 = vpack.c.b16 %v1034, %v1031
  %v1074 = vpack.c.b16 %v1035, %v1032
  %v1075 = vpack.c.b16 %v1036, %v1033
  %v1076 = vpack.c.b16 %v1040, %v1037
  %v1077 = vpack.c.b16 %v1041, %v1038
  %v1078 = vpack.c.b16 %v1042, %v1039
  %v1079 = vpack.c.b16 %v1046, %v1043
  %v1080 = vpack.c.b16 %v1047, %v1044
  %v1081 = vpack.c.b16 %v1048, %v1045
  %v1082 = vpack.c.b16 %v1052, %v1049
  %v1083 = vpack.c.b16 %v1053, %v1050
  %v1084 = vpack.c.b16 %v1054, %v1051
  %v1085 = vpack.c.b16 %v1058, %v1055
  %v1086 = vpack.c.b16 %v1059, %v1056
  %v1087 = vpack.c.b16 %v1060, %v1057
  %v1088 = vpack.c.b16 %v1064, %v1061
  %v1089 = vpack.c.b16 %v1065, %v1062
  %v1090 = vpack.c.b16 %v1066, %v1063
  %1115 = vmatprep.subr.bf16.mxu0 %v1068
  %1116 = vmatpush1.bf16.msra.mxu0 %v1067
  %1117 = vmatprep.subr.bf16.mxu0 %v1071
  %1118 = vmatpush1.bf16.msra.mxu0 %v1070
  %1119 = vmatprep.subr.bf16.mxu0 %v1074
  %1120 = vmatpush1.bf16.msra.mxu0 %v1073
  %1121 = vmatprep.subr.bf16.mxu0 %v1077
  %1122 = vmatpush1.bf16.msra.mxu0 %v1076
  %1123 = vmatprep.subr.bf16.mxu0 %v1080
  %1124 = vmatpush1.bf16.msra.mxu0 %v1079
  %1125 = vmatprep.subr.bf16.mxu0 %v1083
  %1126 = vmatpush1.bf16.msra.mxu0 %v1082
  %1127 = vmatprep.subr.bf16.mxu0 %v1086
  %1128 = vmatpush1.bf16.msra.mxu0 %v1085
  %1129 = vmatprep.subr.bf16.mxu0 %v1089
  %1130 = vmatpush1.bf16.msra.mxu0 %v1088
  %1131 = vmatprep.subr.bf16.mxu0 0
  %1132 = vmatpush1.bf16.msra.mxu0 0
  %1133 = vmatprep.subr.bf16.mxu0 0
  %1134 = vmatpush1.bf16.msra.mxu0 0
  %1135 = vmatprep.subr.bf16.mxu0 0
  %1136 = vmatpush1.bf16.msra.mxu0 0
  %1137 = vmatprep.subr.bf16.mxu0 0
  %1138 = vmatpush1.bf16.msra.mxu0 0
  %1139 = vmatprep.subr.bf16.mxu0 0
  %1140 = vmatpush1.bf16.msra.mxu0 0
  %1141 = vmatprep.subr.bf16.mxu0 0
  %1142 = vmatpush1.bf16.msra.mxu0 0
  %1143 = vmatprep.subr.bf16.mxu0 0
  %1144 = vmatpush1.bf16.msra.mxu0 0
  %1145 = vmatprep.subr.bf16.mxu0 0
  %1146 = vmatpush1.bf16.msra.mxu0 0
  %1147 = vmatprep.mubr.bf16.mxu0 0
  %1148 = vmatmul.mubr.bf16.gmra.mrb[0].mxu0 %v946
  %v1149 = vpop.f32.mrb[0].mxu0
  %v1150 = vadd.f32 0.0, %v1149
  %v1151 = vpop.f32.mrb[0].mxu0
  %v1152 = vadd.f32 0.0, %v1151
  %v1153 = vpop.f32.mrb[0].mxu0
  %v1154 = vpop.f32.mrb[0].mxu0
  %1155 = vdwg.mxu0
  %1156 = vmatprep.subr.bf16.mxu0 0
  %1157 = vmatpush1.bf16.msra.mxu0 %v1069
  %1158 = vmatprep.subr.bf16.mxu0 0
  %1159 = vmatpush1.bf16.msra.mxu0 %v1072
  %1160 = vmatprep.subr.bf16.mxu0 0
  %1161 = vmatpush1.bf16.msra.mxu0 %v1075
  %1162 = vmatprep.subr.bf16.mxu0 0
  %1163 = vmatpush1.bf16.msra.mxu0 %v1078
  %1164 = vmatprep.subr.bf16.mxu0 0
  %1165 = vmatpush1.bf16.msra.mxu0 %v1081
  %1166 = vmatprep.subr.bf16.mxu0 0
  %1167 = vmatpush1.bf16.msra.mxu0 %v1084
  %1168 = vmatprep.subr.bf16.mxu0 0
  %1169 = vmatpush1.bf16.msra.mxu0 %v1087
  %1170 = vmatprep.subr.bf16.mxu0 0
  %1171 = vmatpush1.bf16.msra.mxu0 %v1090
  %1172 = vmatprep.subr.bf16.mxu0 0
  %1173 = vmatpush1.bf16.msra.mxu0 0
  %1174 = vmatprep.subr.bf16.mxu0 0
  %1175 = vmatpush1.bf16.msra.mxu0 0
  %1176 = vmatprep.subr.bf16.mxu0 0
  %1177 = vmatpush1.bf16.msra.mxu0 0
  %1178 = vmatprep.subr.bf16.mxu0 0
  %1179 = vmatpush1.bf16.msra.mxu0 0
  %1180 = vmatprep.subr.bf16.mxu0 0
  %1181 = vmatpush1.bf16.msra.mxu0 0
  %1182 = vmatprep.subr.bf16.mxu0 0
  %1183 = vmatpush1.bf16.msra.mxu0 0
  %1184 = vmatprep.subr.bf16.mxu0 0
  %1185 = vmatpush1.bf16.msra.mxu0 0
  %1186 = vmatprep.subr.bf16.mxu0 0
  %1187 = vmatpush1.bf16.msra.mxu0 0
  %1188 = vmatprep.mubr.bf16.mxu0 0
  %1189 = vmatmul.mubr.bf16.gmra.mrb[0].mxu0 %v946
  %v1190 = vpop.f32.mrb[0].mxu0
  %v1191 = vadd.f32 0.0, %v1190
  %v1192 = vpop.f32.mrb[0].mxu0
  %v1193 = vpop.f32.mrb[0].mxu0
  %v1194 = vpop.f32.mrb[0].mxu0
  %1195 = vdwg.mxu0
  %v1196 = vadd.f32 %v952, %v1150
  %v1197 = vxor.u32 %v1196, 2147483648
  %v1198 = vmul.f32 %v1197, 1.442695
  %v1199 = vpow.pop %v1198
  %v1200 = vadd.f32 %v1199, 1.0
  %v1201 = vrcp.pop %v1200
  %v1202 = vmul.f32 1.0, %v1201
  %v1203 = vadd.f32 %v953, %v1152
  %v1204 = vxor.u32 %v1203, 2147483648
  %v1205 = vmul.f32 %v1204, 1.442695
  %v1206 = vpow.pop %v1205
  %v1207 = vadd.f32 %v1206, 1.0
  %v1208 = vrcp.pop %v1207
  %v1209 = vmul.f32 1.0, %v1208
  %v1210 = vadd.f32 %v1191, %v402
  %v1211 = vmul.f32 %v1202, %v1210
  %v1212 = vadd.f32 %v954, %v1211
  %v1213 = vtanh.pop %v1212
  %v1214 = vsub.f32 1.0, %v1209
  %v1215 = vmul.f32 %v1214, %v1213
  %v1216 = vmul.f32 %v1209, %v945
  %v1217 = vadd.f32 %v1215, %v1216
  %v1218 = vpack.c.bf16 %v1217, %v1217
  %s1219 = scalar_lea.vmem %s5, 8
  %1220 = vst [vmem:[%s1219] sm:$0xf] %v1218
  %s1221 = smul.u32 3, 3
  %s1222 = smul.addr %s1221, 8
  %s1223 = scalar_lea.vmem [#allocation3], %s1222
  %v1224 = vld [vmem:[%s1223] sm:$0xff]
  %v1225 = vld [vmem:[%s1223 + $0x8] sm:$0xff]
  %v1226 = vld [vmem:[%s1223 + $0x10] sm:$0xff]
  %v1227 = vld [vmem:[%s3] sm:$0xff]
  %v1228 = vld [vmem:[%s3 + $0x8] sm:$0xf]
  %v1229 = vld [vmem:[%s3 + $0xc] sm:$0xff]
  %v1230 = vld [vmem:[%s3 + $0x14] sm:$0xf]
  %v1231 = vld [vmem:[%s3 + $0x18] sm:$0xff]
  %v1232 = vld [vmem:[%s3 + $0x20] sm:$0xf]
  %v1233 = vld [vmem:[%s3 + $0x24] sm:$0xff]
  %v1234 = vld [vmem:[%s3 + $0x2c] sm:$0xf]
  %v1235 = vld [vmem:[%s3 + $0x30] sm:$0xff]
  %v1236 = vld [vmem:[%s3 + $0x38] sm:$0xf]
  %v1237 = vld [vmem:[%s3 + $0x3c] sm:$0xff]
  %v1238 = vld [vmem:[%s3 + $0x44] sm:$0xf]
  %v1239 = vld [vmem:[%s3 + $0x48] sm:$0xff]
  %v1240 = vld [vmem:[%s3 + $0x50] sm:$0xf]
  %v1241 = vld [vmem:[%s3 + $0x54] sm:$0xff]
  %v1242 = vld [vmem:[%s3 + $0x5c] sm:$0xf]
  %v1243 = vld [vmem:[%s3 + $0x60] sm:$0xff]
  %v1244 = vld [vmem:[%s3 + $0x68] sm:$0xf]
  %v1245 = vld [vmem:[%s3 + $0x6c] sm:$0xff]
  %v1246 = vld [vmem:[%s3 + $0x74] sm:$0xf]
  %v1247 = vld [vmem:[%s3 + $0x78] sm:$0xff]
  %v1248 = vld [vmem:[%s3 + $0x80] sm:$0xf]
  %v1249 = vld [vmem:[%s3 + $0x84] sm:$0xff]
  %v1250 = vld [vmem:[%s3 + $0x8c] sm:$0xf]
  %v1251 = vld [vmem:[%s3 + $0x90] sm:$0xff]
  %v1252 = vld [vmem:[%s3 + $0x98] sm:$0xf]
  %v1253 = vld [vmem:[%s3 + $0x9c] sm:$0xff]
  %v1254 = vld [vmem:[%s3 + $0xa4] sm:$0xf]
  %v1255 = vld [vmem:[%s3 + $0xa8] sm:$0xff]
  %v1256 = vld [vmem:[%s3 + $0xb0] sm:$0xf]
  %v1257 = vld [vmem:[%s3 + $0xb4] sm:$0xff]
  %v1258 = vld [vmem:[%s3 + $0xbc] sm:$0xf]
  %v1291 = vunpack.c.l.b16 %v1227
  %v1292 = vunpack.c.h.b16 %v1227
  %v1293 = vunpack.c.l.b16 %v1228
  %v1294 = vunpack.c.l.b16 %v1229
  %v1295 = vunpack.c.h.b16 %v1229
  %v1296 = vunpack.c.l.b16 %v1230
  %v1297 = vunpack.c.l.b16 %v1231
  %v1298 = vunpack.c.h.b16 %v1231
  %v1299 = vunpack.c.l.b16 %v1232
  %v1300 = vunpack.c.l.b16 %v1233
  %v1301 = vunpack.c.h.b16 %v1233
  %v1302 = vunpack.c.l.b16 %v1234
  %v1303 = vunpack.c.l.b16 %v1235
  %v1304 = vunpack.c.h.b16 %v1235
  %v1305 = vunpack.c.l.b16 %v1236
  %v1306 = vunpack.c.l.b16 %v1237
  %v1307 = vunpack.c.h.b16 %v1237
  %v1308 = vunpack.c.l.b16 %v1238
  %v1309 = vunpack.c.l.b16 %v1239
  %v1310 = vunpack.c.h.b16 %v1239
  %v1311 = vunpack.c.l.b16 %v1240
  %v1312 = vunpack.c.l.b16 %v1241
  %v1313 = vunpack.c.h.b16 %v1241
  %v1314 = vunpack.c.l.b16 %v1242
  %v1315 = vunpack.c.l.b16 %v1243
  %v1316 = vunpack.c.h.b16 %v1243
  %v1317 = vunpack.c.l.b16 %v1244
  %v1318 = vunpack.c.l.b16 %v1245
  %v1319 = vunpack.c.h.b16 %v1245
  %v1320 = vunpack.c.l.b16 %v1246
  %v1321 = vunpack.c.l.b16 %v1247
  %v1322 = vunpack.c.h.b16 %v1247
  %v1323 = vunpack.c.l.b16 %v1248
  %v1324 = vunpack.c.l.b16 %v1249
  %v1325 = vunpack.c.h.b16 %v1249
  %v1326 = vunpack.c.l.b16 %v1250
  %v1327 = vunpack.c.l.b16 %v1251
  %v1328 = vunpack.c.h.b16 %v1251
  %v1329 = vunpack.c.l.b16 %v1252
  %v1330 = vunpack.c.l.b16 %v1253
  %v1331 = vunpack.c.h.b16 %v1253
  %v1332 = vunpack.c.l.b16 %v1254
  %v1333 = vunpack.c.l.b16 %v1255
  %v1334 = vunpack.c.h.b16 %v1255
  %v1335 = vunpack.c.l.b16 %v1256
  %v1336 = vunpack.c.l.b16 %v1257
  %v1337 = vunpack.c.h.b16 %v1257
  %v1338 = vunpack.c.l.b16 %v1258
  %v1339 = vpack.c.b16 %v1294, %v1291
  %v1340 = vpack.c.b16 %v1295, %v1292
  %v1341 = vpack.c.b16 %v1296, %v1293
  %v1342 = vpack.c.b16 %v1300, %v1297
  %v1343 = vpack.c.b16 %v1301, %v1298
  %v1344 = vpack.c.b16 %v1302, %v1299
  %v1345 = vpack.c.b16 %v1306, %v1303
  %v1346 = vpack.c.b16 %v1307, %v1304
  %v1347 = vpack.c.b16 %v1308, %v1305
  %v1348 = vpack.c.b16 %v1312, %v1309
  %v1349 = vpack.c.b16 %v1313, %v1310
  %v1350 = vpack.c.b16 %v1314, %v1311
  %v1351 = vpack.c.b16 %v1318, %v1315
  %v1352 = vpack.c.b16 %v1319, %v1316
  %v1353 = vpack.c.b16 %v1320, %v1317
  %v1354 = vpack.c.b16 %v1324, %v1321
  %v1355 = vpack.c.b16 %v1325, %v1322
  %v1356 = vpack.c.b16 %v1326, %v1323
  %v1357 = vpack.c.b16 %v1330, %v1327
  %v1358 = vpack.c.b16 %v1331, %v1328
  %v1359 = vpack.c.b16 %v1332, %v1329
  %v1360 = vpack.c.b16 %v1336, %v1333
  %v1361 = vpack.c.b16 %v1337, %v1334
  %v1362 = vpack.c.b16 %v1338, %v1335
  %1387 = vmatprep.subr.bf16.mxu0 %v1340
  %1388 = vmatpush1.bf16.msra.mxu0 %v1339
  %1389 = vmatprep.subr.bf16.mxu0 %v1343
  %1390 = vmatpush1.bf16.msra.mxu0 %v1342
  %1391 = vmatprep.subr.bf16.mxu0 %v1346
  %1392 = vmatpush1.bf16.msra.mxu0 %v1345
  %1393 = vmatprep.subr.bf16.mxu0 %v1349
  %1394 = vmatpush1.bf16.msra.mxu0 %v1348
  %1395 = vmatprep.subr.bf16.mxu0 %v1352
  %1396 = vmatpush1.bf16.msra.mxu0 %v1351
  %1397 = vmatprep.subr.bf16.mxu0 %v1355
  %1398 = vmatpush1.bf16.msra.mxu0 %v1354
  %1399 = vmatprep.subr.bf16.mxu0 %v1358
  %1400 = vmatpush1.bf16.msra.mxu0 %v1357
  %1401 = vmatprep.subr.bf16.mxu0 %v1361
  %1402 = vmatpush1.bf16.msra.mxu0 %v1360
  %1403 = vmatprep.subr.bf16.mxu0 0
  %1404 = vmatpush1.bf16.msra.mxu0 0
  %1405 = vmatprep.subr.bf16.mxu0 0
  %1406 = vmatpush1.bf16.msra.mxu0 0
  %1407 = vmatprep.subr.bf16.mxu0 0
  %1408 = vmatpush1.bf16.msra.mxu0 0
  %1409 = vmatprep.subr.bf16.mxu0 0
  %1410 = vmatpush1.bf16.msra.mxu0 0
  %1411 = vmatprep.subr.bf16.mxu0 0
  %1412 = vmatpush1.bf16.msra.mxu0 0
  %1413 = vmatprep.subr.bf16.mxu0 0
  %1414 = vmatpush1.bf16.msra.mxu0 0
  %1415 = vmatprep.subr.bf16.mxu0 0
  %1416 = vmatpush1.bf16.msra.mxu0 0
  %1417 = vmatprep.subr.bf16.mxu0 0
  %1418 = vmatpush1.bf16.msra.mxu0 0
  %1419 = vmatprep.mubr.bf16.mxu0 0
  %1420 = vmatmul.mubr.bf16.gmra.mrb[0].mxu0 %v1218
  %v1421 = vpop.f32.mrb[0].mxu0
  %v1422 = vadd.f32 0.0, %v1421
  %v1423 = vpop.f32.mrb[0].mxu0
  %v1424 = vadd.f32 0.0, %v1423
  %v1425 = vpop.f32.mrb[0].mxu0
  %v1426 = vpop.f32.mrb[0].mxu0
  %1427 = vdwg.mxu0
  %1428 = vmatprep.subr.bf16.mxu0 0
  %1429 = vmatpush1.bf16.msra.mxu0 %v1341
  %1430 = vmatprep.subr.bf16.mxu0 0
  %1431 = vmatpush1.bf16.msra.mxu0 %v1344
  %1432 = vmatprep.subr.bf16.mxu0 0
  %1433 = vmatpush1.bf16.msra.mxu0 %v1347
  %1434 = vmatprep.subr.bf16.mxu0 0
  %1435 = vmatpush1.bf16.msra.mxu0 %v1350
  %1436 = vmatprep.subr.bf16.mxu0 0
  %1437 = vmatpush1.bf16.msra.mxu0 %v1353
  %1438 = vmatprep.subr.bf16.mxu0 0
  %1439 = vmatpush1.bf16.msra.mxu0 %v1356
  %1440 = vmatprep.subr.bf16.mxu0 0
  %1441 = vmatpush1.bf16.msra.mxu0 %v1359
  %1442 = vmatprep.subr.bf16.mxu0 0
  %1443 = vmatpush1.bf16.msra.mxu0 %v1362
  %1444 = vmatprep.subr.bf16.mxu0 0
  %1445 = vmatpush1.bf16.msra.mxu0 0
  %1446 = vmatprep.subr.bf16.mxu0 0
  %1447 = vmatpush1.bf16.msra.mxu0 0
  %1448 = vmatprep.subr.bf16.mxu0 0
  %1449 = vmatpush1.bf16.msra.mxu0 0
  %1450 = vmatprep.subr.bf16.mxu0 0
  %1451 = vmatpush1.bf16.msra.mxu0 0
  %1452 = vmatprep.subr.bf16.mxu0 0
  %1453 = vmatpush1.bf16.msra.mxu0 0
  %1454 = vmatprep.subr.bf16.mxu0 0
  %1455 = vmatpush1.bf16.msra.mxu0 0
  %1456 = vmatprep.subr.bf16.mxu0 0
  %1457 = vmatpush1.bf16.msra.mxu0 0
  %1458 = vmatprep.subr.bf16.mxu0 0
  %1459 = vmatpush1.bf16.msra.mxu0 0
  %1460 = vmatprep.mubr.bf16.mxu0 0
  %1461 = vmatmul.mubr.bf16.gmra.mrb[0].mxu0 %v1218
  %v1462 = vpop.f32.mrb[0].mxu0
  %v1463 = vadd.f32 0.0, %v1462
  %v1464 = vpop.f32.mrb[0].mxu0
  %v1465 = vpop.f32.mrb[0].mxu0
  %v1466 = vpop.f32.mrb[0].mxu0
  %1467 = vdwg.mxu0
  %v1468 = vadd.f32 %v1224, %v1422
  %v1469 = vxor.u32 %v1468, 2147483648
  %v1470 = vmul.f32 %v1469, 1.442695
  %v1471 = vpow.pop %v1470
  %v1472 = vadd.f32 %v1471, 1.0
  %v1473 = vrcp.pop %v1472
  %v1474 = vmul.f32 1.0, %v1473
  %v1475 = vadd.f32 %v1225, %v1424
  %v1476 = vxor.u32 %v1475, 2147483648
  %v1477 = vmul.f32 %v1476, 1.442695
  %v1478 = vpow.pop %v1477
  %v1479 = vadd.f32 %v1478, 1.0
  %v1480 = vrcp.pop %v1479
  %v1481 = vmul.f32 1.0, %v1480
  %v1482 = vadd.f32 %v1463, %v402
  %v1483 = vmul.f32 %v1474, %v1482
  %v1484 = vadd.f32 %v1226, %v1483
  %v1485 = vtanh.pop %v1484
  %v1486 = vsub.f32 1.0, %v1481
  %v1487 = vmul.f32 %v1486, %v1485
  %v1488 = vmul.f32 %v1481, %v1217
  %v1489 = vadd.f32 %v1487, %v1488
  %v1490 = vpack.c.bf16 %v1489, %v1489
  %s1491 = scalar_lea.vmem %s5, 12
  %1492 = vst [vmem:[%s1491] sm:$0xf] %v1490
  %s1493 = smul.u32 4, 3
  %s1494 = smul.addr %s1493, 8
  %s1495 = scalar_lea.vmem [#allocation3], %s1494
  %v1496 = vld [vmem:[%s1495] sm:$0xff]
  %v1497 = vld [vmem:[%s1495 + $0x8] sm:$0xff]
  %v1498 = vld [vmem:[%s1495 + $0x10] sm:$0xff]
  %v1499 = vld [vmem:[%s3] sm:$0xff]
  %v1500 = vld [vmem:[%s3 + $0x8] sm:$0xf]
  %v1501 = vld [vmem:[%s3 + $0xc] sm:$0xff]
  %v1502 = vld [vmem:[%s3 + $0x14] sm:$0xf]
  %v1503 = vld [vmem:[%s3 + $0x18] sm:$0xff]
  %v1504 = vld [vmem:[%s3 + $0x20] sm:$0xf]
  %v1505 = vld [vmem:[%s3 + $0x24] sm:$0xff]
  %v1506 = vld [vmem:[%s3 + $0x2c] sm:$0xf]
  %v1507 = vld [vmem:[%s3 + $0x30] sm:$0xff]
  %v1508 = vld [vmem:[%s3 + $0x38] sm:$0xf]
  %v1509 = vld [vmem:[%s3 + $0x3c] sm:$0xff]
  %v1510 = vld [vmem:[%s3 + $0x44] sm:$0xf]
  %v1511 = vld [vmem:[%s3 + $0x48] sm:$0xff]
  %v1512 = vld [vmem:[%s3 + $0x50] sm:$0xf]
  %v1513 = vld [vmem:[%s3 + $0x54] sm:$0xff]
  %v1514 = vld [vmem:[%s3 + $0x5c] sm:$0xf]
  %v1515 = vld [vmem:[%s3 + $0x60] sm:$0xff]
  %v1516 = vld [vmem:[%s3 + $0x68] sm:$0xf]
  %v1517 = vld [vmem:[%s3 + $0x6c] sm:$0xff]
  %v1518 = vld [vmem:[%s3 + $0x74] sm:$0xf]
  %v1519 = vld [vmem:[%s3 + $0x78] sm:$0xff]
  %v1520 = vld [vmem:[%s3 + $0x80] sm:$0xf]
  %v1521 = vld [vmem:[%s3 + $0x84] sm:$0xff]
  %v1522 = vld [vmem:[%s3 + $0x8c] sm:$0xf]
  %v1523 = vld [vmem:[%s3 + $0x90] sm:$0xff]
  %v1524 = vld [vmem:[%s3 + $0x98] sm:$0xf]
  %v1525 = vld [vmem:[%s3 + $0x9c] sm:$0xff]
  %v1526 = vld [vmem:[%s3 + $0xa4] sm:$0xf]
  %v1527 = vld [vmem:[%s3 + $0xa8] sm:$0xff]
  %v1528 = vld [vmem:[%s3 + $0xb0] sm:$0xf]
  %v1529 = vld [vmem:[%s3 + $0xb4] sm:$0xff]
  %v1530 = vld [vmem:[%s3 + $0xbc] sm:$0xf]
  %v1563 = vunpack.c.l.b16 %v1499
  %v1564 = vunpack.c.h.b16 %v1499
  %v1565 = vunpack.c.l.b16 %v1500
  %v1566 = vunpack.c.l.b16 %v1501
  %v1567 = vunpack.c.h.b16 %v1501
  %v1568 = vunpack.c.l.b16 %v1502
  %v1569 = vunpack.c.l.b16 %v1503
  %v1570 = vunpack.c.h.b16 %v1503
  %v1571 = vunpack.c.l.b16 %v1504
  %v1572 = vunpack.c.l.b16 %v1505
  %v1573 = vunpack.c.h.b16 %v1505
  %v1574 = vunpack.c.l.b16 %v1506
  %v1575 = vunpack.c.l.b16 %v1507
  %v1576 = vunpack.c.h.b16 %v1507
  %v1577 = vunpack.c.l.b16 %v1508
  %v1578 = vunpack.c.l.b16 %v1509
  %v1579 = vunpack.c.h.b16 %v1509
  %v1580 = vunpack.c.l.b16 %v1510
  %v1581 = vunpack.c.l.b16 %v1511
  %v1582 = vunpack.c.h.b16 %v1511
  %v1583 = vunpack.c.l.b16 %v1512
  %v1584 = vunpack.c.l.b16 %v1513
  %v1585 = vunpack.c.h.b16 %v1513
  %v1586 = vunpack.c.l.b16 %v1514
  %v1587 = vunpack.c.l.b16 %v1515
  %v1588 = vunpack.c.h.b16 %v1515
  %v1589 = vunpack.c.l.b16 %v1516
  %v1590 = vunpack.c.l.b16 %v1517
  %v1591 = vunpack.c.h.b16 %v1517
  %v1592 = vunpack.c.l.b16 %v1518
  %v1593 = vunpack.c.l.b16 %v1519
  %v1594 = vunpack.c.h.b16 %v1519
  %v1595 = vunpack.c.l.b16 %v1520
  %v1596 = vunpack.c.l.b16 %v1521
  %v1597 = vunpack.c.h.b16 %v1521
  %v1598 = vunpack.c.l.b16 %v1522
  %v1599 = vunpack.c.l.b16 %v1523
  %v1600 = vunpack.c.h.b16 %v1523
  %v1601 = vunpack.c.l.b16 %v1524
  %v1602 = vunpack.c.l.b16 %v1525
  %v1603 = vunpack.c.h.b16 %v1525
  %v1604 = vunpack.c.l.b16 %v1526
  %v1605 = vunpack.c.l.b16 %v1527
  %v1606 = vunpack.c.h.b16 %v1527
  %v1607 = vunpack.c.l.b16 %v1528
  %v1608 = vunpack.c.l.b16 %v1529
  %v1609 = vunpack.c.h.b16 %v1529
  %v1610 = vunpack.c.l.b16 %v1530
  %v1611 = vpack.c.b16 %v1566, %v1563
  %v1612 = vpack.c.b16 %v1567, %v1564
  %v1613 = vpack.c.b16 %v1568, %v1565
  %v1614 = vpack.c.b16 %v1572, %v1569
  %v1615 = vpack.c.b16 %v1573, %v1570
  %v1616 = vpack.c.b16 %v1574, %v1571
  %v1617 = vpack.c.b16 %v1578, %v1575
  %v1618 = vpack.c.b16 %v1579, %v1576
  %v1619 = vpack.c.b16 %v1580, %v1577
  %v1620 = vpack.c.b16 %v1584, %v1581
  %v1621 = vpack.c.b16 %v1585, %v1582
  %v1622 = vpack.c.b16 %v1586, %v1583
  %v1623 = vpack.c.b16 %v1590, %v1587
  %v1624 = vpack.c.b16 %v1591, %v1588
  %v1625 = vpack.c.b16 %v1592, %v1589
  %v1626 = vpack.c.b16 %v1596, %v1593
  %v1627 = vpack.c.b16 %v1597, %v1594
  %v1628 = vpack.c.b16 %v1598, %v1595
  %v1629 = vpack.c.b16 %v1602, %v1599
  %v1630 = vpack.c.b16 %v1603, %v1600
  %v1631 = vpack.c.b16 %v1604, %v1601
  %v1632 = vpack.c.b16 %v1608, %v1605
  %v1633 = vpack.c.b16 %v1609, %v1606
  %v1634 = vpack.c.b16 %v1610, %v1607
  %1659 = vmatprep.subr.bf16.mxu0 %v1612
  %1660 = vmatpush1.bf16.msra.mxu0 %v1611
  %1661 = vmatprep.subr.bf16.mxu0 %v1615
  %1662 = vmatpush1.bf16.msra.mxu0 %v1614
  %1663 = vmatprep.subr.bf16.mxu0 %v1618
  %1664 = vmatpush1.bf16.msra.mxu0 %v1617
  %1665 = vmatprep.subr.bf16.mxu0 %v1621
  %1666 = vmatpush1.bf16.msra.mxu0 %v1620
  %1667 = vmatprep.subr.bf16.mxu0 %v1624
  %1668 = vmatpush1.bf16.msra.mxu0 %v1623
  %1669 = vmatprep.subr.bf16.mxu0 %v1627
  %1670 = vmatpush1.bf16.msra.mxu0 %v1626
  %1671 = vmatprep.subr.bf16.mxu0 %v1630
  %1672 = vmatpush1.bf16.msra.mxu0 %v1629
  %1673 = vmatprep.subr.bf16.mxu0 %v1633
  %1674 = vmatpush1.bf16.msra.mxu0 %v1632
  %1675 = vmatprep.subr.bf16.mxu0 0
  %1676 = vmatpush1.bf16.msra.mxu0 0
  %1677 = vmatprep.subr.bf16.mxu0 0
  %1678 = vmatpush1.bf16.msra.mxu0 0
  %1679 = vmatprep.subr.bf16.mxu0 0
  %1680 = vmatpush1.bf16.msra.mxu0 0
  %1681 = vmatprep.subr.bf16.mxu0 0
  %1682 = vmatpush1.bf16.msra.mxu0 0
  %1683 = vmatprep.subr.bf16.mxu0 0
  %1684 = vmatpush1.bf16.msra.mxu0 0
  %1685 = vmatprep.subr.bf16.mxu0 0
  %1686 = vmatpush1.bf16.msra.mxu0 0
  %1687 = vmatprep.subr.bf16.mxu0 0
  %1688 = vmatpush1.bf16.msra.mxu0 0
  %1689 = vmatprep.subr.bf16.mxu0 0
  %1690 = vmatpush1.bf16.msra.mxu0 0
  %1691 = vmatprep.mubr.bf16.mxu0 0
  %1692 = vmatmul.mubr.bf16.gmra.mrb[0].mxu0 %v1490
  %v1693 = vpop.f32.mrb[0].mxu0
  %v1694 = vadd.f32 0.0, %v1693
  %v1695 = vpop.f32.mrb[0].mxu0
  %v1696 = vadd.f32 0.0, %v1695
  %v1697 = vpop.f32.mrb[0].mxu0
  %v1698 = vpop.f32.mrb[0].mxu0
  %1699 = vdwg.mxu0
  %1700 = vmatprep.subr.bf16.mxu0 0
  %1701 = vmatpush1.bf16.msra.mxu0 %v1613
  %1702 = vmatprep.subr.bf16.mxu0 0
  %1703 = vmatpush1.bf16.msra.mxu0 %v1616
  %1704 = vmatprep.subr.bf16.mxu0 0
  %1705 = vmatpush1.bf16.msra.mxu0 %v1619
  %1706 = vmatprep.subr.bf16.mxu0 0
  %1707 = vmatpush1.bf16.msra.mxu0 %v1622
  %1708 = vmatprep.subr.bf16.mxu0 0
  %1709 = vmatpush1.bf16.msra.mxu0 %v1625
  %1710 = vmatprep.subr.bf16.mxu0 0
  %1711 = vmatpush1.bf16.msra.mxu0 %v1628
  %1712 = vmatprep.subr.bf16.mxu0 0
  %1713 = vmatpush1.bf16.msra.mxu0 %v1631
  %1714 = vmatprep.subr.bf16.mxu0 0
  %1715 = vmatpush1.bf16.msra.mxu0 %v1634
  %1716 = vmatprep.subr.bf16.mxu0 0
  %1717 = vmatpush1.bf16.msra.mxu0 0
  %1718 = vmatprep.subr.bf16.mxu0 0
  %1719 = vmatpush1.bf16.msra.mxu0 0
  %1720 = vmatprep.subr.bf16.mxu0 0
  %1721 = vmatpush1.bf16.msra.mxu0 0
  %1722 = vmatprep.subr.bf16.mxu0 0
  %1723 = vmatpush1.bf16.msra.mxu0 0
  %1724 = vmatprep.subr.bf16.mxu0 0
  %1725 = vmatpush1.bf16.msra.mxu0 0
  %1726 = vmatprep.subr.bf16.mxu0 0
  %1727 = vmatpush1.bf16.msra.mxu0 0
  %1728 = vmatprep.subr.bf16.mxu0 0
  %1729 = vmatpush1.bf16.msra.mxu0 0
  %1730 = vmatprep.subr.bf16.mxu0 0
  %1731 = vmatpush1.bf16.msra.mxu0 0
  %1732 = vmatprep.mubr.bf16.mxu0 0
  %1733 = vmatmul.mubr.bf16.gmra.mrb[0].mxu0 %v1490
  %v1734 = vpop.f32.mrb[0].mxu0
  %v1735 = vadd.f32 0.0, %v1734
  %v1736 = vpop.f32.mrb[0].mxu0
  %v1737 = vpop.f32.mrb[0].mxu0
  %v1738 = vpop.f32.mrb[0].mxu0
  %1739 = vdwg.mxu0
  %v1740 = vadd.f32 %v1496, %v1694
  %v1741 = vxor.u32 %v1740, 2147483648
  %v1742 = vmul.f32 %v1741, 1.442695
  %v1743 = vpow.pop %v1742
  %v1744 = vadd.f32 %v1743, 1.0
  %v1745 = vrcp.pop %v1744
  %v1746 = vmul.f32 1.0, %v1745
  %v1747 = vadd.f32 %v1497, %v1696
  %v1748 = vxor.u32 %v1747, 2147483648
  %v1749 = vmul.f32 %v1748, 1.442695
  %v1750 = vpow.pop %v1749
  %v1751 = vadd.f32 %v1750, 1.0
  %v1752 = vrcp.pop %v1751
  %v1753 = vmul.f32 1.0, %v1752
  %v1754 = vadd.f32 %v1735, %v402
  %v1755 = vmul.f32 %v1746, %v1754
  %v1756 = vadd.f32 %v1498, %v1755
  %v1757 = vtanh.pop %v1756
  %v1758 = vsub.f32 1.0, %v1753
  %v1759 = vmul.f32 %v1758, %v1757
  %v1760 = vmul.f32 %v1753, %v1489
  %v1761 = vadd.f32 %v1759, %v1760
  %v1762 = vpack.c.bf16 %v1761, %v1761
  %s1763 = scalar_lea.vmem %s5, 16
  %1764 = vst [vmem:[%s1763] sm:$0xf] %v1762
  %s1765 = smul.u32 5, 3
  %s1766 = smul.addr %s1765, 8
  %s1767 = scalar_lea.vmem [#allocation3], %s1766
  %v1768 = vld [vmem:[%s1767] sm:$0xff]
  %v1769 = vld [vmem:[%s1767 + $0x8] sm:$0xff]
  %v1770 = vld [vmem:[%s1767 + $0x10] sm:$0xff]
  %v1771 = vld [vmem:[%s3] sm:$0xff]
  %v1772 = vld [vmem:[%s3 + $0x8] sm:$0xf]
  %v1773 = vld [vmem:[%s3 + $0xc] sm:$0xff]
  %v1774 = vld [vmem:[%s3 + $0x14] sm:$0xf]
  %v1775 = vld [vmem:[%s3 + $0x18] sm:$0xff]
  %v1776 = vld [vmem:[%s3 + $0x20] sm:$0xf]
  %v1777 = vld [vmem:[%s3 + $0x24] sm:$0xff]
  %v1778 = vld [vmem:[%s3 + $0x2c] sm:$0xf]
  %v1779 = vld [vmem:[%s3 + $0x30] sm:$0xff]
  %v1780 = vld [vmem:[%s3 + $0x38] sm:$0xf]
  %v1781 = vld [vmem:[%s3 + $0x3c] sm:$0xff]
  %v1782 = vld [vmem:[%s3 + $0x44] sm:$0xf]
  %v1783 = vld [vmem:[%s3 + $0x48] sm:$0xff]
  %v1784 = vld [vmem:[%s3 + $0x50] sm:$0xf]
  %v1785 = vld [vmem:[%s3 + $0x54] sm:$0xff]
  %v1786 = vld [vmem:[%s3 + $0x5c] sm:$0xf]
  %v1787 = vld [vmem:[%s3 + $0x60] sm:$0xff]
  %v1788 = vld [vmem:[%s3 + $0x68] sm:$0xf]
  %v1789 = vld [vmem:[%s3 + $0x6c] sm:$0xff]
  %v1790 = vld [vmem:[%s3 + $0x74] sm:$0xf]
  %v1791 = vld [vmem:[%s3 + $0x78] sm:$0xff]
  %v1792 = vld [vmem:[%s3 + $0x80] sm:$0xf]
  %v1793 = vld [vmem:[%s3 + $0x84] sm:$0xff]
  %v1794 = vld [vmem:[%s3 + $0x8c] sm:$0xf]
  %v1795 = vld [vmem:[%s3 + $0x90] sm:$0xff]
  %v1796 = vld [vmem:[%s3 + $0x98] sm:$0xf]
  %v1797 = vld [vmem:[%s3 + $0x9c] sm:$0xff]
  %v1798 = vld [vmem:[%s3 + $0xa4] sm:$0xf]
  %v1799 = vld [vmem:[%s3 + $0xa8] sm:$0xff]
  %v1800 = vld [vmem:[%s3 + $0xb0] sm:$0xf]
  %v1801 = vld [vmem:[%s3 + $0xb4] sm:$0xff]
  %v1802 = vld [vmem:[%s3 + $0xbc] sm:$0xf]
  %v1835 = vunpack.c.l.b16 %v1771
  %v1836 = vunpack.c.h.b16 %v1771
  %v1837 = vunpack.c.l.b16 %v1772
  %v1838 = vunpack.c.l.b16 %v1773
  %v1839 = vunpack.c.h.b16 %v1773
  %v1840 = vunpack.c.l.b16 %v1774
  %v1841 = vunpack.c.l.b16 %v1775
  %v1842 = vunpack.c.h.b16 %v1775
  %v1843 = vunpack.c.l.b16 %v1776
  %v1844 = vunpack.c.l.b16 %v1777
  %v1845 = vunpack.c.h.b16 %v1777
  %v1846 = vunpack.c.l.b16 %v1778
  %v1847 = vunpack.c.l.b16 %v1779
  %v1848 = vunpack.c.h.b16 %v1779
  %v1849 = vunpack.c.l.b16 %v1780
  %v1850 = vunpack.c.l.b16 %v1781
  %v1851 = vunpack.c.h.b16 %v1781
  %v1852 = vunpack.c.l.b16 %v1782
  %v1853 = vunpack.c.l.b16 %v1783
  %v1854 = vunpack.c.h.b16 %v1783
  %v1855 = vunpack.c.l.b16 %v1784
  %v1856 = vunpack.c.l.b16 %v1785
  %v1857 = vunpack.c.h.b16 %v1785
  %v1858 = vunpack.c.l.b16 %v1786
  %v1859 = vunpack.c.l.b16 %v1787
  %v1860 = vunpack.c.h.b16 %v1787
  %v1861 = vunpack.c.l.b16 %v1788
  %v1862 = vunpack.c.l.b16 %v1789
  %v1863 = vunpack.c.h.b16 %v1789
  %v1864 = vunpack.c.l.b16 %v1790
  %v1865 = vunpack.c.l.b16 %v1791
  %v1866 = vunpack.c.h.b16 %v1791
  %v1867 = vunpack.c.l.b16 %v1792
  %v1868 = vunpack.c.l.b16 %v1793
  %v1869 = vunpack.c.h.b16 %v1793
  %v1870 = vunpack.c.l.b16 %v1794
  %v1871 = vunpack.c.l.b16 %v1795
  %v1872 = vunpack.c.h.b16 %v1795
  %v1873 = vunpack.c.l.b16 %v1796
  %v1874 = vunpack.c.l.b16 %v1797
  %v1875 = vunpack.c.h.b16 %v1797
  %v1876 = vunpack.c.l.b16 %v1798
  %v1877 = vunpack.c.l.b16 %v1799
  %v1878 = vunpack.c.h.b16 %v1799
  %v1879 = vunpack.c.l.b16 %v1800
  %v1880 = vunpack.c.l.b16 %v1801
  %v1881 = vunpack.c.h.b16 %v1801
  %v1882 = vunpack.c.l.b16 %v1802
  %v1883 = vpack.c.b16 %v1838, %v1835
  %v1884 = vpack.c.b16 %v1839, %v1836
  %v1885 = vpack.c.b16 %v1840, %v1837
  %v1886 = vpack.c.b16 %v1844, %v1841
  %v1887 = vpack.c.b16 %v1845, %v1842
  %v1888 = vpack.c.b16 %v1846, %v1843
  %v1889 = vpack.c.b16 %v1850, %v1847
  %v1890 = vpack.c.b16 %v1851, %v1848
  %v1891 = vpack.c.b16 %v1852, %v1849
  %v1892 = vpack.c.b16 %v1856, %v1853
  %v1893 = vpack.c.b16 %v1857, %v1854
  %v1894 = vpack.c.b16 %v1858, %v1855
  %v1895 = vpack.c.b16 %v1862, %v1859
  %v1896 = vpack.c.b16 %v1863, %v1860
  %v1897 = vpack.c.b16 %v1864, %v1861
  %v1898 = vpack.c.b16 %v1868, %v1865
  %v1899 = vpack.c.b16 %v1869, %v1866
  %v1900 = vpack.c.b16 %v1870, %v1867
  %v1901 = vpack.c.b16 %v1874, %v1871
  %v1902 = vpack.c.b16 %v1875, %v1872
  %v1903 = vpack.c.b16 %v1876, %v1873
  %v1904 = vpack.c.b16 %v1880, %v1877
  %v1905 = vpack.c.b16 %v1881, %v1878
  %v1906 = vpack.c.b16 %v1882, %v1879
  %1931 = vmatprep.subr.bf16.mxu0 %v1884
  %1932 = vmatpush1.bf16.msra.mxu0 %v1883
  %1933 = vmatprep.subr.bf16.mxu0 %v1887
  %1934 = vmatpush1.bf16.msra.mxu0 %v1886
  %1935 = vmatprep.subr.bf16.mxu0 %v1890
  %1936 = vmatpush1.bf16.msra.mxu0 %v1889
  %1937 = vmatprep.subr.bf16.mxu0 %v1893
  %1938 = vmatpush1.bf16.msra.mxu0 %v1892
  %1939 = vmatprep.subr.bf16.mxu0 %v1896
  %1940 = vmatpush1.bf16.msra.mxu0 %v1895
  %1941 = vmatprep.subr.bf16.mxu0 %v1899
  %1942 = vmatpush1.bf16.msra.mxu0 %v1898
  %1943 = vmatprep.subr.bf16.mxu0 %v1902
  %1944 = vmatpush1.bf16.msra.mxu0 %v1901
  %1945 = vmatprep.subr.bf16.mxu0 %v1905
  %1946 = vmatpush1.bf16.msra.mxu0 %v1904
  %1947 = vmatprep.subr.bf16.mxu0 0
  %1948 = vmatpush1.bf16.msra.mxu0 0
  %1949 = vmatprep.subr.bf16.mxu0 0
  %1950 = vmatpush1.bf16.msra.mxu0 0
  %1951 = vmatprep.subr.bf16.mxu0 0
  %1952 = vmatpush1.bf16.msra.mxu0 0
  %1953 = vmatprep.subr.bf16.mxu0 0
  %1954 = vmatpush1.bf16.msra.mxu0 0
  %1955 = vmatprep.subr.bf16.mxu0 0
  %1956 = vmatpush1.bf16.msra.mxu0 0
  %1957 = vmatprep.subr.bf16.mxu0 0
  %1958 = vmatpush1.bf16.msra.mxu0 0
  %1959 = vmatprep.subr.bf16.mxu0 0
  %1960 = vmatpush1.bf16.msra.mxu0 0
  %1961 = vmatprep.subr.bf16.mxu0 0
  %1962 = vmatpush1.bf16.msra.mxu0 0
  %1963 = vmatprep.mubr.bf16.mxu0 0
  %1964 = vmatmul.mubr.bf16.gmra.mrb[0].mxu0 %v1762
  %v1965 = vpop.f32.mrb[0].mxu0
  %v1966 = vadd.f32 0.0, %v1965
  %v1967 = vpop.f32.mrb[0].mxu0
  %v1968 = vadd.f32 0.0, %v1967
  %v1969 = vpop.f32.mrb[0].mxu0
  %v1970 = vpop.f32.mrb[0].mxu0
  %1971 = vdwg.mxu0
  %1972 = vmatprep.subr.bf16.mxu0 0
  %1973 = vmatpush1.bf16.msra.mxu0 %v1885
  %1974 = vmatprep.subr.bf16.mxu0 0
  %1975 = vmatpush1.bf16.msra.mxu0 %v1888
  %1976 = vmatprep.subr.bf16.mxu0 0
  %1977 = vmatpush1.bf16.msra.mxu0 %v1891
  %1978 = vmatprep.subr.bf16.mxu0 0
  %1979 = vmatpush1.bf16.msra.mxu0 %v1894
  %1980 = vmatprep.subr.bf16.mxu0 0
  %1981 = vmatpush1.bf16.msra.mxu0 %v1897
  %1982 = vmatprep.subr.bf16.mxu0 0
  %1983 = vmatpush1.bf16.msra.mxu0 %v1900
  %1984 = vmatprep.subr.bf16.mxu0 0
  %1985 = vmatpush1.bf16.msra.mxu0 %v1903
  %1986 = vmatprep.subr.bf16.mxu0 0
  %1987 = vmatpush1.bf16.msra.mxu0 %v1906
  %1988 = vmatprep.subr.bf16.mxu0 0
  %1989 = vmatpush1.bf16.msra.mxu0 0
  %1990 = vmatprep.subr.bf16.mxu0 0
  %1991 = vmatpush1.bf16.msra.mxu0 0
  %1992 = vmatprep.subr.bf16.mxu0 0
  %1993 = vmatpush1.bf16.msra.mxu0 0
  %1994 = vmatprep.subr.bf16.mxu0 0
  %1995 = vmatpush1.bf16.msra.mxu0 0
  %1996 = vmatprep.subr.bf16.mxu0 0
  %1997 = vmatpush1.bf16.msra.mxu0 0
  %1998 = vmatprep.subr.bf16.mxu0 0
  %1999 = vmatpush1.bf16.msra.mxu0 0
  %2000 = vmatprep.subr.bf16.mxu0 0
  %2001 = vmatpush1.bf16.msra.mxu0 0
  %2002 = vmatprep.subr.bf16.mxu0 0
  %2003 = vmatpush1.bf16.msra.mxu0 0
  %2004 = vmatprep.mubr.bf16.mxu0 0
  %2005 = vmatmul.mubr.bf16.gmra.mrb[0].mxu0 %v1762
  %v2006 = vpop.f32.mrb[0].mxu0
  %v2007 = vadd.f32 0.0, %v2006
  %v2008 = vpop.f32.mrb[0].mxu0
  %v2009 = vpop.f32.mrb[0].mxu0
  %v2010 = vpop.f32.mrb[0].mxu0
  %2011 = vdwg.mxu0
  %v2012 = vadd.f32 %v1768, %v1966
  %v2013 = vxor.u32 %v2012, 2147483648
  %v2014 = vmul.f32 %v2013, 1.442695
  %v2015 = vpow.pop %v2014
  %v2016 = vadd.f32 %v2015, 1.0
  %v2017 = vrcp.pop %v2016
  %v2018 = vmul.f32 1.0, %v2017
  %v2019 = vadd.f32 %v1769, %v1968
  %v2020 = vxor.u32 %v2019, 2147483648
  %v2021 = vmul.f32 %v2020, 1.442695
  %v2022 = vpow.pop %v2021
  %v2023 = vadd.f32 %v2022, 1.0
  %v2024 = vrcp.pop %v2023
  %v2025 = vmul.f32 1.0, %v2024
  %v2026 = vadd.f32 %v2007, %v402
  %v2027 = vmul.f32 %v2018, %v2026
  %v2028 = vadd.f32 %v1770, %v2027
  %v2029 = vtanh.pop %v2028
  %v2030 = vsub.f32 1.0, %v2025
  %v2031 = vmul.f32 %v2030, %v2029
  %v2032 = vmul.f32 %v2025, %v1761
  %v2033 = vadd.f32 %v2031, %v2032
  %v2034 = vpack.c.bf16 %v2033, %v2033
  %s2035 = scalar_lea.vmem %s5, 20
  %2036 = vst [vmem:[%s2035] sm:$0xf] %v2034
  %s2037 = smul.u32 6, 3
  %s2038 = smul.addr %s2037, 8
  %s2039 = scalar_lea.vmem [#allocation3], %s2038
  %v2040 = vld [vmem:[%s2039] sm:$0xff]
  %v2041 = vld [vmem:[%s2039 + $0x8] sm:$0xff]
  %v2042 = vld [vmem:[%s2039 + $0x10] sm:$0xff]
  %v2043 = vld [vmem:[%s3] sm:$0xff]
  %v2044 = vld [vmem:[%s3 + $0x8] sm:$0xf]
  %v2045 = vld [vmem:[%s3 + $0xc] sm:$0xff]
  %v2046 = vld [vmem:[%s3 + $0x14] sm:$0xf]
  %v2047 = vld [vmem:[%s3 + $0x18] sm:$0xff]
  %v2048 = vld [vmem:[%s3 + $0x20] sm:$0xf]
  %v2049 = vld [vmem:[%s3 + $0x24] sm:$0xff]
  %v2050 = vld [vmem:[%s3 + $0x2c] sm:$0xf]
  %v2051 = vld [vmem:[%s3 + $0x30] sm:$0xff]
  %v2052 = vld [vmem:[%s3 + $0x38] sm:$0xf]
  %v2053 = vld [vmem:[%s3 + $0x3c] sm:$0xff]
  %v2054 = vld [vmem:[%s3 + $0x44] sm:$0xf]
  %v2055 = vld [vmem:[%s3 + $0x48] sm:$0xff]
  %v2056 = vld [vmem:[%s3 + $0x50] sm:$0xf]
  %v2057 = vld [vmem:[%s3 + $0x54] sm:$0xff]
  %v2058 = vld [vmem:[%s3 + $0x5c] sm:$0xf]
  %v2059 = vld [vmem:[%s3 + $0x60] sm:$0xff]
  %v2060 = vld [vmem:[%s3 + $0x68] sm:$0xf]
  %v2061 = vld [vmem:[%s3 + $0x6c] sm:$0xff]
  %v2062 = vld [vmem:[%s3 + $0x74] sm:$0xf]
  %v2063 = vld [vmem:[%s3 + $0x78] sm:$0xff]
  %v2064 = vld [vmem:[%s3 + $0x80] sm:$0xf]
  %v2065 = vld [vmem:[%s3 + $0x84] sm:$0xff]
  %v2066 = vld [vmem:[%s3 + $0x8c] sm:$0xf]
  %v2067 = vld [vmem:[%s3 + $0x90] sm:$0xff]
  %v2068 = vld [vmem:[%s3 + $0x98] sm:$0xf]
  %v2069 = vld [vmem:[%s3 + $0x9c] sm:$0xff]
  %v2070 = vld [vmem:[%s3 + $0xa4] sm:$0xf]
  %v2071 = vld [vmem:[%s3 + $0xa8] sm:$0xff]
  %v2072 = vld [vmem:[%s3 + $0xb0] sm:$0xf]
  %v2073 = vld [vmem:[%s3 + $0xb4] sm:$0xff]
  %v2074 = vld [vmem:[%s3 + $0xbc] sm:$0xf]
  %v2107 = vunpack.c.l.b16 %v2043
  %v2108 = vunpack.c.h.b16 %v2043
  %v2109 = vunpack.c.l.b16 %v2044
  %v2110 = vunpack.c.l.b16 %v2045
  %v2111 = vunpack.c.h.b16 %v2045
  %v2112 = vunpack.c.l.b16 %v2046
  %v2113 = vunpack.c.l.b16 %v2047
  %v2114 = vunpack.c.h.b16 %v2047
  %v2115 = vunpack.c.l.b16 %v2048
  %v2116 = vunpack.c.l.b16 %v2049
  %v2117 = vunpack.c.h.b16 %v2049
  %v2118 = vunpack.c.l.b16 %v2050
  %v2119 = vunpack.c.l.b16 %v2051
  %v2120 = vunpack.c.h.b16 %v2051
  %v2121 = vunpack.c.l.b16 %v2052
  %v2122 = vunpack.c.l.b16 %v2053
  %v2123 = vunpack.c.h.b16 %v2053
  %v2124 = vunpack.c.l.b16 %v2054
  %v2125 = vunpack.c.l.b16 %v2055
  %v2126 = vunpack.c.h.b16 %v2055
  %v2127 = vunpack.c.l.b16 %v2056
  %v2128 = vunpack.c.l.b16 %v2057
  %v2129 = vunpack.c.h.b16 %v2057
  %v2130 = vunpack.c.l.b16 %v2058
  %v2131 = vunpack.c.l.b16 %v2059
  %v2132 = vunpack.c.h.b16 %v2059
  %v2133 = vunpack.c.l.b16 %v2060
  %v2134 = vunpack.c.l.b16 %v2061
  %v2135 = vunpack.c.h.b16 %v2061
  %v2136 = vunpack.c.l.b16 %v2062
  %v2137 = vunpack.c.l.b16 %v2063
  %v2138 = vunpack.c.h.b16 %v2063
  %v2139 = vunpack.c.l.b16 %v2064
  %v2140 = vunpack.c.l.b16 %v2065
  %v2141 = vunpack.c.h.b16 %v2065
  %v2142 = vunpack.c.l.b16 %v2066
  %v2143 = vunpack.c.l.b16 %v2067
  %v2144 = vunpack.c.h.b16 %v2067
  %v2145 = vunpack.c.l.b16 %v2068
  %v2146 = vunpack.c.l.b16 %v2069
  %v2147 = vunpack.c.h.b16 %v2069
  %v2148 = vunpack.c.l.b16 %v2070
  %v2149 = vunpack.c.l.b16 %v2071
  %v2150 = vunpack.c.h.b16 %v2071
  %v2151 = vunpack.c.l.b16 %v2072
  %v2152 = vunpack.c.l.b16 %v2073
  %v2153 = vunpack.c.h.b16 %v2073
  %v2154 = vunpack.c.l.b16 %v2074
  %v2155 = vpack.c.b16 %v2110, %v2107
  %v2156 = vpack.c.b16 %v2111, %v2108
  %v2157 = vpack.c.b16 %v2112, %v2109
  %v2158 = vpack.c.b16 %v2116, %v2113
  %v2159 = vpack.c.b16 %v2117, %v2114
  %v2160 = vpack.c.b16 %v2118, %v2115
  %v2161 = vpack.c.b16 %v2122, %v2119
  %v2162 = vpack.c.b16 %v2123, %v2120
  %v2163 = vpack.c.b16 %v2124, %v2121
  %v2164 = vpack.c.b16 %v2128, %v2125
  %v2165 = vpack.c.b16 %v2129, %v2126
  %v2166 = vpack.c.b16 %v2130, %v2127
  %v2167 = vpack.c.b16 %v2134, %v2131
  %v2168 = vpack.c.b16 %v2135, %v2132
  %v2169 = vpack.c.b16 %v2136, %v2133
  %v2170 = vpack.c.b16 %v2140, %v2137
  %v2171 = vpack.c.b16 %v2141, %v2138
  %v2172 = vpack.c.b16 %v2142, %v2139
  %v2173 = vpack.c.b16 %v2146, %v2143
  %v2174 = vpack.c.b16 %v2147, %v2144
  %v2175 = vpack.c.b16 %v2148, %v2145
  %v2176 = vpack.c.b16 %v2152, %v2149
  %v2177 = vpack.c.b16 %v2153, %v2150
  %v2178 = vpack.c.b16 %v2154, %v2151
  %2203 = vmatprep.subr.bf16.mxu0 %v2156
  %2204 = vmatpush1.bf16.msra.mxu0 %v2155
  %2205 = vmatprep.subr.bf16.mxu0 %v2159
  %2206 = vmatpush1.bf16.msra.mxu0 %v2158
  %2207 = vmatprep.subr.bf16.mxu0 %v2162
  %2208 = vmatpush1.bf16.msra.mxu0 %v2161
  %2209 = vmatprep.subr.bf16.mxu0 %v2165
  %2210 = vmatpush1.bf16.msra.mxu0 %v2164
  %2211 = vmatprep.subr.bf16.mxu0 %v2168
  %2212 = vmatpush1.bf16.msra.mxu0 %v2167
  %2213 = vmatprep.subr.bf16.mxu0 %v2171
  %2214 = vmatpush1.bf16.msra.mxu0 %v2170
  %2215 = vmatprep.subr.bf16.mxu0 %v2174
  %2216 = vmatpush1.bf16.msra.mxu0 %v2173
  %2217 = vmatprep.subr.bf16.mxu0 %v2177
  %2218 = vmatpush1.bf16.msra.mxu0 %v2176
  %2219 = vmatprep.subr.bf16.mxu0 0
  %2220 = vmatpush1.bf16.msra.mxu0 0
  %2221 = vmatprep.subr.bf16.mxu0 0
  %2222 = vmatpush1.bf16.msra.mxu0 0
  %2223 = vmatprep.subr.bf16.mxu0 0
  %2224 = vmatpush1.bf16.msra.mxu0 0
  %2225 = vmatprep.subr.bf16.mxu0 0
  %2226 = vmatpush1.bf16.msra.mxu0 0
  %2227 = vmatprep.subr.bf16.mxu0 0
  %2228 = vmatpush1.bf16.msra.mxu0 0
  %2229 = vmatprep.subr.bf16.mxu0 0
  %2230 = vmatpush1.bf16.msra.mxu0 0
  %2231 = vmatprep.subr.bf16.mxu0 0
  %2232 = vmatpush1.bf16.msra.mxu0 0
  %2233 = vmatprep.subr.bf16.mxu0 0
  %2234 = vmatpush1.bf16.msra.mxu0 0
  %2235 = vmatprep.mubr.bf16.mxu0 0
  %2236 = vmatmul.mubr.bf16.gmra.mrb[0].mxu0 %v2034
  %v2237 = vpop.f32.mrb[0].mxu0
  %v2238 = vadd.f32 0.0, %v2237
  %v2239 = vpop.f32.mrb[0].mxu0
  %v2240 = vadd.f32 0.0, %v2239
  %v2241 = vpop.f32.mrb[0].mxu0
  %v2242 = vpop.f32.mrb[0].mxu0
  %2243 = vdwg.mxu0
  %2244 = vmatprep.subr.bf16.mxu0 0
  %2245 = vmatpush1.bf16.msra.mxu0 %v2157
  %2246 = vmatprep.subr.bf16.mxu0 0
  %2247 = vmatpush1.bf16.msra.mxu0 %v2160
  %2248 = vmatprep.subr.bf16.mxu0 0
  %2249 = vmatpush1.bf16.msra.mxu0 %v2163
  %2250 = vmatprep.subr.bf16.mxu0 0
  %2251 = vmatpush1.bf16.msra.mxu0 %v2166
  %2252 = vmatprep.subr.bf16.mxu0 0
  %2253 = vmatpush1.bf16.msra.mxu0 %v2169
  %2254 = vmatprep.subr.bf16.mxu0 0
  %2255 = vmatpush1.bf16.msra.mxu0 %v2172
  %2256 = vmatprep.subr.bf16.mxu0 0
  %2257 = vmatpush1.bf16.msra.mxu0 %v2175
  %2258 = vmatprep.subr.bf16.mxu0 0
  %2259 = vmatpush1.bf16.msra.mxu0 %v2178
  %2260 = vmatprep.subr.bf16.mxu0 0
  %2261 = vmatpush1.bf16.msra.mxu0 0
  %2262 = vmatprep.subr.bf16.mxu0 0
  %2263 = vmatpush1.bf16.msra.mxu0 0
  %2264 = vmatprep.subr.bf16.mxu0 0
  %2265 = vmatpush1.bf16.msra.mxu0 0
  %2266 = vmatprep.subr.bf16.mxu0 0
  %2267 = vmatpush1.bf16.msra.mxu0 0
  %2268 = vmatprep.subr.bf16.mxu0 0
  %2269 = vmatpush1.bf16.msra.mxu0 0
  %2270 = vmatprep.subr.bf16.mxu0 0
  %2271 = vmatpush1.bf16.msra.mxu0 0
  %2272 = vmatprep.subr.bf16.mxu0 0
  %2273 = vmatpush1.bf16.msra.mxu0 0
  %2274 = vmatprep.subr.bf16.mxu0 0
  %2275 = vmatpush1.bf16.msra.mxu0 0
  %2276 = vmatprep.mubr.bf16.mxu0 0
  %2277 = vmatmul.mubr.bf16.gmra.mrb[0].mxu0 %v2034
  %v2278 = vpop.f32.mrb[0].mxu0
  %v2279 = vadd.f32 0.0, %v2278
  %v2280 = vpop.f32.mrb[0].mxu0
  %v2281 = vpop.f32.mrb[0].mxu0
  %v2282 = vpop.f32.mrb[0].mxu0
  %2283 = vdwg.mxu0
  %v2284 = vadd.f32 %v2040, %v2238
  %v2285 = vxor.u32 %v2284, 2147483648
  %v2286 = vmul.f32 %v2285, 1.442695
  %v2287 = vpow.pop %v2286
  %v2288 = vadd.f32 %v2287, 1.0
  %v2289 = vrcp.pop %v2288
  %v2290 = vmul.f32 1.0, %v2289
  %v2291 = vadd.f32 %v2041, %v2240
  %v2292 = vxor.u32 %v2291, 2147483648
  %v2293 = vmul.f32 %v2292, 1.442695
  %v2294 = vpow.pop %v2293
  %v2295 = vadd.f32 %v2294, 1.0
  %v2296 = vrcp.pop %v2295
  %v2297 = vmul.f32 1.0, %v2296
  %v2298 = vadd.f32 %v2279, %v402
  %v2299 = vmul.f32 %v2290, %v2298
  %v2300 = vadd.f32 %v2042, %v2299
  %v2301 = vtanh.pop %v2300
  %v2302 = vsub.f32 1.0, %v2297
  %v2303 = vmul.f32 %v2302, %v2301
  %v2304 = vmul.f32 %v2297, %v2033
  %v2305 = vadd.f32 %v2303, %v2304
  %v2306 = vpack.c.bf16 %v2305, %v2305
  %s2307 = scalar_lea.vmem %s5, 24
  %2308 = vst [vmem:[%s2307] sm:$0xf] %v2306
  %s2309 = smul.u32 7, 3
  %s2310 = smul.addr %s2309, 8
  %s2311 = scalar_lea.vmem [#allocation3], %s2310
  %v2312 = vld [vmem:[%s2311] sm:$0xff]
  %v2313 = vld [vmem:[%s2311 + $0x8] sm:$0xff]
  %v2314 = vld [vmem:[%s2311 + $0x10] sm:$0xff]
  %v2315 = vld [vmem:[%s3] sm:$0xff]
  %v2316 = vld [vmem:[%s3 + $0x8] sm:$0xf]
  %v2317 = vld [vmem:[%s3 + $0xc] sm:$0xff]
  %v2318 = vld [vmem:[%s3 + $0x14] sm:$0xf]
  %v2319 = vld [vmem:[%s3 + $0x18] sm:$0xff]
  %v2320 = vld [vmem:[%s3 + $0x20] sm:$0xf]
  %v2321 = vld [vmem:[%s3 + $0x24] sm:$0xff]
  %v2322 = vld [vmem:[%s3 + $0x2c] sm:$0xf]
  %v2323 = vld [vmem:[%s3 + $0x30] sm:$0xff]
  %v2324 = vld [vmem:[%s3 + $0x38] sm:$0xf]
  %v2325 = vld [vmem:[%s3 + $0x3c] sm:$0xff]
  %v2326 = vld [vmem:[%s3 + $0x44] sm:$0xf]
  %v2327 = vld [vmem:[%s3 + $0x48] sm:$0xff]
  %v2328 = vld [vmem:[%s3 + $0x50] sm:$0xf]
  %v2329 = vld [vmem:[%s3 + $0x54] sm:$0xff]
  %v2330 = vld [vmem:[%s3 + $0x5c] sm:$0xf]
  %v2331 = vld [vmem:[%s3 + $0x60] sm:$0xff]
  %v2332 = vld [vmem:[%s3 + $0x68] sm:$0xf]
  %v2333 = vld [vmem:[%s3 + $0x6c] sm:$0xff]
  %v2334 = vld [vmem:[%s3 + $0x74] sm:$0xf]
  %v2335 = vld [vmem:[%s3 + $0x78] sm:$0xff]
  %v2336 = vld [vmem:[%s3 + $0x80] sm:$0xf]
  %v2337 = vld [vmem:[%s3 + $0x84] sm:$0xff]
  %v2338 = vld [vmem:[%s3 + $0x8c] sm:$0xf]
  %v2339 = vld [vmem:[%s3 + $0x90] sm:$0xff]
  %v2340 = vld [vmem:[%s3 + $0x98] sm:$0xf]
  %v2341 = vld [vmem:[%s3 + $0x9c] sm:$0xff]
  %v2342 = vld [vmem:[%s3 + $0xa4] sm:$0xf]
  %v2343 = vld [vmem:[%s3 + $0xa8] sm:$0xff]
  %v2344 = vld [vmem:[%s3 + $0xb0] sm:$0xf]
  %v2345 = vld [vmem:[%s3 + $0xb4] sm:$0xff]
  %v2346 = vld [vmem:[%s3 + $0xbc] sm:$0xf]
  %v2379 = vunpack.c.l.b16 %v2315
  %v2380 = vunpack.c.h.b16 %v2315
  %v2381 = vunpack.c.l.b16 %v2316
  %v2382 = vunpack.c.l.b16 %v2317
  %v2383 = vunpack.c.h.b16 %v2317
  %v2384 = vunpack.c.l.b16 %v2318
  %v2385 = vunpack.c.l.b16 %v2319
  %v2386 = vunpack.c.h.b16 %v2319
  %v2387 = vunpack.c.l.b16 %v2320
  %v2388 = vunpack.c.l.b16 %v2321
  %v2389 = vunpack.c.h.b16 %v2321
  %v2390 = vunpack.c.l.b16 %v2322
  %v2391 = vunpack.c.l.b16 %v2323
  %v2392 = vunpack.c.h.b16 %v2323
  %v2393 = vunpack.c.l.b16 %v2324
  %v2394 = vunpack.c.l.b16 %v2325
  %v2395 = vunpack.c.h.b16 %v2325
  %v2396 = vunpack.c.l.b16 %v2326
  %v2397 = vunpack.c.l.b16 %v2327
  %v2398 = vunpack.c.h.b16 %v2327
  %v2399 = vunpack.c.l.b16 %v2328
  %v2400 = vunpack.c.l.b16 %v2329
  %v2401 = vunpack.c.h.b16 %v2329
  %v2402 = vunpack.c.l.b16 %v2330
  %v2403 = vunpack.c.l.b16 %v2331
  %v2404 = vunpack.c.h.b16 %v2331
  %v2405 = vunpack.c.l.b16 %v2332
  %v2406 = vunpack.c.l.b16 %v2333
  %v2407 = vunpack.c.h.b16 %v2333
  %v2408 = vunpack.c.l.b16 %v2334
  %v2409 = vunpack.c.l.b16 %v2335
  %v2410 = vunpack.c.h.b16 %v2335
  %v2411 = vunpack.c.l.b16 %v2336
  %v2412 = vunpack.c.l.b16 %v2337
  %v2413 = vunpack.c.h.b16 %v2337
  %v2414 = vunpack.c.l.b16 %v2338
  %v2415 = vunpack.c.l.b16 %v2339
  %v2416 = vunpack.c.h.b16 %v2339
  %v2417 = vunpack.c.l.b16 %v2340
  %v2418 = vunpack.c.l.b16 %v2341
  %v2419 = vunpack.c.h.b16 %v2341
  %v2420 = vunpack.c.l.b16 %v2342
  %v2421 = vunpack.c.l.b16 %v2343
  %v2422 = vunpack.c.h.b16 %v2343
  %v2423 = vunpack.c.l.b16 %v2344
  %v2424 = vunpack.c.l.b16 %v2345
  %v2425 = vunpack.c.h.b16 %v2345
  %v2426 = vunpack.c.l.b16 %v2346
  %v2427 = vpack.c.b16 %v2382, %v2379
  %v2428 = vpack.c.b16 %v2383, %v2380
  %v2429 = vpack.c.b16 %v2384, %v2381
  %v2430 = vpack.c.b16 %v2388, %v2385
  %v2431 = vpack.c.b16 %v2389, %v2386
  %v2432 = vpack.c.b16 %v2390, %v2387
  %v2433 = vpack.c.b16 %v2394, %v2391
  %v2434 = vpack.c.b16 %v2395, %v2392
  %v2435 = vpack.c.b16 %v2396, %v2393
  %v2436 = vpack.c.b16 %v2400, %v2397
  %v2437 = vpack.c.b16 %v2401, %v2398
  %v2438 = vpack.c.b16 %v2402, %v2399
  %v2439 = vpack.c.b16 %v2406, %v2403
  %v2440 = vpack.c.b16 %v2407, %v2404
  %v2441 = vpack.c.b16 %v2408, %v2405
  %v2442 = vpack.c.b16 %v2412, %v2409
  %v2443 = vpack.c.b16 %v2413, %v2410
  %v2444 = vpack.c.b16 %v2414, %v2411
  %v2445 = vpack.c.b16 %v2418, %v2415
  %v2446 = vpack.c.b16 %v2419, %v2416
  %v2447 = vpack.c.b16 %v2420, %v2417
  %v2448 = vpack.c.b16 %v2424, %v2421
  %v2449 = vpack.c.b16 %v2425, %v2422
  %v2450 = vpack.c.b16 %v2426, %v2423
  %2475 = vmatprep.subr.bf16.mxu0 %v2428
  %2476 = vmatpush1.bf16.msra.mxu0 %v2427
  %2477 = vmatprep.subr.bf16.mxu0 %v2431
  %2478 = vmatpush1.bf16.msra.mxu0 %v2430
  %2479 = vmatprep.subr.bf16.mxu0 %v2434
  %2480 = vmatpush1.bf16.msra.mxu0 %v2433
  %2481 = vmatprep.subr.bf16.mxu0 %v2437
  %2482 = vmatpush1.bf16.msra.mxu0 %v2436
  %2483 = vmatprep.subr.bf16.mxu0 %v2440
  %2484 = vmatpush1.bf16.msra.mxu0 %v2439
  %2485 = vmatprep.subr.bf16.mxu0 %v2443
  %2486 = vmatpush1.bf16.msra.mxu0 %v2442
  %2487 = vmatprep.subr.bf16.mxu0 %v2446
  %2488 = vmatpush1.bf16.msra.mxu0 %v2445
  %2489 = vmatprep.subr.bf16.mxu0 %v2449
  %2490 = vmatpush1.bf16.msra.mxu0 %v2448
  %2491 = vmatprep.subr.bf16.mxu0 0
  %2492 = vmatpush1.bf16.msra.mxu0 0
  %2493 = vmatprep.subr.bf16.mxu0 0
  %2494 = vmatpush1.bf16.msra.mxu0 0
  %2495 = vmatprep.subr.bf16.mxu0 0
  %2496 = vmatpush1.bf16.msra.mxu0 0
  %2497 = vmatprep.subr.bf16.mxu0 0
  %2498 = vmatpush1.bf16.msra.mxu0 0
  %2499 = vmatprep.subr.bf16.mxu0 0
  %2500 = vmatpush1.bf16.msra.mxu0 0
  %2501 = vmatprep.subr.bf16.mxu0 0
  %2502 = vmatpush1.bf16.msra.mxu0 0
  %2503 = vmatprep.subr.bf16.mxu0 0
  %2504 = vmatpush1.bf16.msra.mxu0 0
  %2505 = vmatprep.subr.bf16.mxu0 0
  %2506 = vmatpush1.bf16.msra.mxu0 0
  %2507 = vmatprep.mubr.bf16.mxu0 0
  %2508 = vmatmul.mubr.bf16.gmra.mrb[0].mxu0 %v2306
  %v2509 = vpop.f32.mrb[0].mxu0
  %v2510 = vadd.f32 0.0, %v2509
  %v2511 = vpop.f32.mrb[0].mxu0
  %v2512 = vadd.f32 0.0, %v2511
  %v2513 = vpop.f32.mrb[0].mxu0
  %v2514 = vpop.f32.mrb[0].mxu0
  %2515 = vdwg.mxu0
  %2516 = vmatprep.subr.bf16.mxu0 0
  %2517 = vmatpush1.bf16.msra.mxu0 %v2429
  %2518 = vmatprep.subr.bf16.mxu0 0
  %2519 = vmatpush1.bf16.msra.mxu0 %v2432
  %2520 = vmatprep.subr.bf16.mxu0 0
  %2521 = vmatpush1.bf16.msra.mxu0 %v2435
  %2522 = vmatprep.subr.bf16.mxu0 0
  %2523 = vmatpush1.bf16.msra.mxu0 %v2438
  %2524 = vmatprep.subr.bf16.mxu0 0
  %2525 = vmatpush1.bf16.msra.mxu0 %v2441
  %2526 = vmatprep.subr.bf16.mxu0 0
  %2527 = vmatpush1.bf16.msra.mxu0 %v2444
  %2528 = vmatprep.subr.bf16.mxu0 0
  %2529 = vmatpush1.bf16.msra.mxu0 %v2447
  %2530 = vmatprep.subr.bf16.mxu0 0
  %2531 = vmatpush1.bf16.msra.mxu0 %v2450
  %2532 = vmatprep.subr.bf16.mxu0 0
  %2533 = vmatpush1.bf16.msra.mxu0 0
  %2534 = vmatprep.subr.bf16.mxu0 0
  %2535 = vmatpush1.bf16.msra.mxu0 0
  %2536 = vmatprep.subr.bf16.mxu0 0
  %2537 = vmatpush1.bf16.msra.mxu0 0
  %2538 = vmatprep.subr.bf16.mxu0 0
  %2539 = vmatpush1.bf16.msra.mxu0 0
  %2540 = vmatprep.subr.bf16.mxu0 0
  %2541 = vmatpush1.bf16.msra.mxu0 0
  %2542 = vmatprep.subr.bf16.mxu0 0
  %2543 = vmatpush1.bf16.msra.mxu0 0
  %2544 = vmatprep.subr.bf16.mxu0 0
  %2545 = vmatpush1.bf16.msra.mxu0 0
  %2546 = vmatprep.subr.bf16.mxu0 0
  %2547 = vmatpush1.bf16.msra.mxu0 0
  %2548 = vmatprep.mubr.bf16.mxu0 0
  %2549 = vmatmul.mubr.bf16.gmra.mrb[0].mxu0 %v2306
  %v2550 = vpop.f32.mrb[0].mxu0
  %v2551 = vadd.f32 0.0, %v2550
  %v2552 = vpop.f32.mrb[0].mxu0
  %v2553 = vpop.f32.mrb[0].mxu0
  %v2554 = vpop.f32.mrb[0].mxu0
  %2555 = vdwg.mxu0
  %v2556 = vadd.f32 %v2312, %v2510
  %v2557 = vxor.u32 %v2556, 2147483648
  %v2558 = vmul.f32 %v2557, 1.442695
  %v2559 = vpow.pop %v2558
  %v2560 = vadd.f32 %v2559, 1.0
  %v2561 = vrcp.pop %v2560
  %v2562 = vmul.f32 1.0, %v2561
  %v2563 = vadd.f32 %v2313, %v2512
  %v2564 = vxor.u32 %v2563, 2147483648
  %v2565 = vmul.f32 %v2564, 1.442695
  %v2566 = vpow.pop %v2565
  %v2567 = vadd.f32 %v2566, 1.0
  %v2568 = vrcp.pop %v2567
  %v2569 = vmul.f32 1.0, %v2568
  %v2570 = vadd.f32 %v2551, %v402
  %v2571 = vmul.f32 %v2562, %v2570
  %v2572 = vadd.f32 %v2314, %v2571
  %v2573 = vtanh.pop %v2572
  %v2574 = vsub.f32 1.0, %v2569
  %v2575 = vmul.f32 %v2574, %v2573
  %v2576 = vmul.f32 %v2569, %v2305
  %v2577 = vadd.f32 %v2575, %v2576
  %v2578 = vpack.c.bf16 %v2577, %v2577
  %s2579 = scalar_lea.vmem %s5, 28
  %2580 = vst [vmem:[%s2579] sm:$0xf] %v2578
  %2581 = vst [vmem:[#allocation2] sm:$0xff] %v2577
  // Predicated region
  $region26: #{gru_model_forward.4} parent=0 // pred_check
    _
  $region27: #{gru_model_forward.4} parent=0 // pred_check_branch
    %2583 = sbr.rel (0) target = $region29
  $region28: #{gru_model_forward.4} parent=0 // pred_region
    _
  $region29: #{gru_model_forward.4} parent=0 // pred_fallthru
    _
  // Predicated region
  $region30: #{gru_model_forward.4} parent=0 // pred_check
    _
  $region31: #{gru_model_forward.4} parent=0 // pred_check_branch
    %2585 = sbr.rel (0) target = $region33
  $region32: #{gru_model_forward.4} parent=0 // pred_region
    _
  $region33: #{gru_model_forward.4} parent=0 // pred_fallthru
    _

// kernel: gru_model_forward.3
$region0: #{gru_model_forward.3}
  #allocation0 [shape = 'u32[]', space=smem, size = 0x4, offset = 0x4, fixed_abs, tag = 'smem constant byte address 0x4 - core index']
  #allocation1 [shape = 'u32[144,128]{1,0:T(1,128)}', space=vmem, size = 0x12000, scoped, tag = 'internal scratch']
  #allocation2 [shape = 'f32[8,128]{1,0:T(8,128)}', space=vmem, size = 0x1000, scoped, tag = 'scratch operand']
  #allocation3 [shape = 'f32[64,384]{1,0:T(8,128)}', space=vmem, size = 0x18000, scoped, tag = 'scratch operand']
  %s0 = inlined_call_operand.vmem [shape: bf16[8,8,16], index: 0, kind: input, shape index: {}]
  %s1 = inlined_call_operand.vmem [shape: bf16[16,384], index: 1, kind: input, shape index: {}]
  %s2 = inlined_call_operand.vmem [shape: f32[1,384], index: 2, kind: input, shape index: {}]
  %s3 = inlined_call_operand.hbm [shape: bf16[128,384], index: 3, kind: input, shape index: {}]
  %s4 = inlined_call_operand.vmem [shape: f32[1,128], index: 4, kind: input, shape index: {}]
  %s5 = inlined_call_operand.vmem [shape: bf16[8,8,128], index: 5, kind: output, shape index: {}]
  %s6 = sld [smem:[#allocation0]]
  $region38: #{gru_model_forward.3} parent=0
    _
  %s8 = ssub.s32 1, %s6
  %s9 = scalar_select 0, %s8, %s6
  $region1: #{gru_model_forward.3} parent=0
    #allocation4 [shape = 'u8[98304]{0}', space=vmem, size = 0x18000, scoped, tag = 'input window, operand 3, single buffered']
    #allocation5 [shape = 's32[1]{0}', space=sflag, size = 0x4, scoped, tag = 'scoped memory for gru_model_forward.3']
    %10 = vsyncpa [#allocation5], 0
    // Predicated region
    $region2: #{gru_model_forward.3} parent=1 // pred_check
      _
    $region3: #{gru_model_forward.3} parent=1 // pred_check_branch
      %12 = sbr.rel (0) target = $region5
    $region4: #{gru_model_forward.3} parent=1 // pred_region
      _
    $region5: #{gru_model_forward.3} parent=1 // pred_fallthru
      _
    // Predicated region
    $region6: #{gru_model_forward.3} parent=1 // pred_check
      _
    $region7: #{gru_model_forward.3} parent=1 // pred_check_branch
      %14 = sbr.rel (0) target = $region9
    $region8: #{gru_model_forward.3} parent=1 // pred_region
      _
    $region9: #{gru_model_forward.3} parent=1 // pred_fallthru
      _
    // Predicated region
    $region10: #{gru_model_forward.3} parent=1 // pred_check
      _
    $region11: #{gru_model_forward.3} parent=1 // pred_check_branch
      %16 = sbr.rel (0) target = $region13
    $region12: #{gru_model_forward.3} parent=1 // pred_region
      _
    $region13: #{gru_model_forward.3} parent=1 // pred_fallthru
      _
    // Predicated region
    $region14: #{gru_model_forward.3} parent=1 // pred_check
      _
    $region15: #{gru_model_forward.3} parent=1 // pred_check_branch
      %18 = sbr.rel (0) target = $region17
    $region16: #{gru_model_forward.3} parent=1 // pred_region
      %s20 = ssub.s32 3072, 3072
      %21 = vsyncadd [#allocation5], %s20
      %s22 = sshll.u32 [#allocation4], 4
      %s23 = int_to_ptr.vmem [resolvable:$true] %s22
      %28 = dma.hbm_to_vmem [thread:$0]  %s3, 3072, %s23, [#allocation5], 192, 192, 12
    $region17: #{gru_model_forward.3} parent=1 // pred_fallthru
      _
    // Predicated region
    $region18: #{gru_model_forward.3} parent=1 // pred_check
      _
    $region19: #{gru_model_forward.3} parent=1 // pred_check_branch
      %30 = sbr.rel (0) target = $region21
    $region20: #{gru_model_forward.3} parent=1 // pred_region
      _
    $region21: #{gru_model_forward.3} parent=1 // pred_fallthru
      _
    // Predicated region
    $region22: #{gru_model_forward.3} parent=1 // pred_check
      _
    $region23: #{gru_model_forward.3} parent=1 // pred_check_branch
      %32 = sbr.rel (0) target = $region25
    $region24: #{gru_model_forward.3} parent=1 // pred_region
      %33 = dma.done [#allocation5], 3072
    $region25: #{gru_model_forward.3} parent=1 // pred_fallthru
      _
    %p35 = scmp.eq.s32.totalorder 0, 0
    // Predicated region
    $region26: #{gru_model_forward.3} parent=1 // pred_check
      %p36 = pneg %p35
    $region27: #{gru_model_forward.3} parent=1 // pred_check_branch
      %38 = sbr.rel (%p36) target = $region29
    $region28: #{gru_model_forward.3} parent=1 // pred_region
      %39 = vst [vmem:[#allocation2] sm:$0xff] 0.0
    $region29: #{gru_model_forward.3} parent=1 // pred_fallthru
      _
    %v40 = vld [vmem:[%s0] sm:$0xf]
    %v41 = vld [vmem:[%s0 + $0x4] sm:$0xf]
    %v42 = vld [vmem:[%s0 + $0x8] sm:$0xf]
    %v43 = vld [vmem:[%s0 + $0xc] sm:$0xf]
    %v44 = vld [vmem:[%s0 + $0x10] sm:$0xf]
    %v45 = vld [vmem:[%s0 + $0x14] sm:$0xf]
    %v46 = vld [vmem:[%s0 + $0x18] sm:$0xf]
    %v47 = vld [vmem:[%s0 + $0x1c] sm:$0xf]
    %v48 = vld [vmem:[%s1] sm:$0xff]
    %v49 = vld [vmem:[%s1 + $0x8] sm:$0xf]
    %v50 = vld [vmem:[%s1 + $0xc] sm:$0xff]
    %v51 = vld [vmem:[%s1 + $0x14] sm:$0xf]
    %v52 = vld [vmem:[%s2] sm:$0x7]
    %v54 = vlaneseq
    %v55 = vshrl.u32 %v54, 7
    %v56 = vsub.s32 0, %v55
    %v57 = vrot.slane %v52, %v56
    %v58 = vlaneseq
    %v59 = vshrl.u32 %v58, 7
    %v60 = vsub.s32 1, %v59
    %v61 = vrot.slane %v52, %v60
    %v62 = vlaneseq
    %v63 = vshrl.u32 %v62, 7
    %v64 = vsub.s32 2, %v63
    %v65 = vrot.slane %v52, %v64
    %v77 = vunpack.c.l.b16 %v40
    %v78 = vunpack.c.l.b16 %v41
    %v79 = vunpack.c.l.b16 %v42
    %v80 = vunpack.c.l.b16 %v43
    %v81 = vunpack.c.l.b16 %v44
    %v82 = vunpack.c.l.b16 %v45
    %v83 = vunpack.c.l.b16 %v46
    %v84 = vunpack.c.l.b16 %v47
    %v85 = vpack.c.b16 %v78, %v77
    %v86 = vpack.c.b16 %v80, %v79
    %v87 = vpack.c.b16 %v82, %v81
    %v88 = vpack.c.b16 %v84, %v83
    %v93 = vunpack.c.l.b16 %v48
    %v94 = vunpack.c.h.b16 %v48
    %v95 = vunpack.c.l.b16 %v49
    %v96 = vunpack.c.l.b16 %v50
    %v97 = vunpack.c.h.b16 %v50
    %v98 = vunpack.c.l.b16 %v51
    %v99 = vpack.c.b16 %v96, %v93
    %v100 = vpack.c.b16 %v97, %v94
    %v101 = vpack.c.b16 %v98, %v95
    %vm105 = vcmask 130048
    %v107 = vsel %vm105, %v85, 0
    %v110 = vsel %vm105, %v86, 0
    %v113 = vsel %vm105, %v87, 0
    %v116 = vsel %vm105, %v88, 0
    %118 = vmatprep.subr.bf16.mxu0 %v100
    %119 = vmatpush1.bf16.msra.mxu0 %v99
    %120 = vmatprep.subr.bf16.mxu0 0
    %121 = vmatpush1.bf16.msra.mxu0 0
    %122 = vmatprep.subr.bf16.mxu0 0
    %123 = vmatpush1.bf16.msra.mxu0 0
    %124 = vmatprep.subr.bf16.mxu0 0
    %125 = vmatpush1.bf16.msra.mxu0 0
    %126 = vmatprep.subr.bf16.mxu0 0
    %127 = vmatpush1.bf16.msra.mxu0 0
    %128 = vmatprep.subr.bf16.mxu0 0
    %129 = vmatpush1.bf16.msra.mxu0 0
    %130 = vmatprep.subr.bf16.mxu0 0
    %131 = vmatpush1.bf16.msra.mxu0 0
    %132 = vmatprep.subr.bf16.mxu0 0
    %133 = vmatpush1.bf16.msra.mxu0 0
    %134 = vmatprep.subr.bf16.mxu0 0
    %135 = vmatpush1.bf16.msra.mxu0 0
    %136 = vmatprep.subr.bf16.mxu0 0
    %137 = vmatpush1.bf16.msra.mxu0 0
    %138 = vmatprep.subr.bf16.mxu0 0
    %139 = vmatpush1.bf16.msra.mxu0 0
    %140 = vmatprep.subr.bf16.mxu0 0
    %141 = vmatpush1.bf16.msra.mxu0 0
    %142 = vmatprep.subr.bf16.mxu0 0
    %143 = vmatpush1.bf16.msra.mxu0 0
    %144 = vmatprep.subr.bf16.mxu0 0
    %145 = vmatpush1.bf16.msra.mxu0 0
    %146 = vmatprep.subr.bf16.mxu0 0
    %147 = vmatpush1.bf16.msra.mxu0 0
    %148 = vmatprep.subr.bf16.mxu0 0
    %149 = vmatpush1.bf16.msra.mxu0 0
    %150 = vmatprep.mubr.bf16.mxu0 0
    %151 = vmatmul.mubr.bf16.gmra.mrb[0].mxu0 %v107
    %v152 = vpop.f32.mrb[0].mxu0
    %v153 = vadd.f32 %v57, %v152
    %v154 = vpop.f32.mrb[0].mxu0
    %v155 = vadd.f32 %v61, %v154
    %v156 = vpop.f32.mrb[0].mxu0
    %v157 = vadd.f32 %v57, %v156
    %v158 = vpop.f32.mrb[0].mxu0
    %v159 = vadd.f32 %v61, %v158
    %160 = vmatprep.mubr.bf16.mxu0 0
    %161 = vmatmul.mubr.bf16.gmra.mrb[0].mxu0 %v110
    %v162 = vpop.f32.mrb[0].mxu0
    %v163 = vadd.f32 %v57, %v162
    %v164 = vpop.f32.mrb[0].mxu0
    %v165 = vadd.f32 %v61, %v164
    %v166 = vpop.f32.mrb[0].mxu0
    %v167 = vadd.f32 %v57, %v166
    %v168 = vpop.f32.mrb[0].mxu0
    %v169 = vadd.f32 %v61, %v168
    %170 = vmatprep.mubr.bf16.mxu0 0
    %171 = vmatmul.mubr.bf16.gmra.mrb[0].mxu0 %v113
    %v172 = vpop.f32.mrb[0].mxu0
    %v173 = vadd.f32 %v57, %v172
    %v174 = vpop.f32.mrb[0].mxu0
    %v175 = vadd.f32 %v61, %v174
    %v176 = vpop.f32.mrb[0].mxu0
    %v177 = vadd.f32 %v57, %v176
    %v178 = vpop.f32.mrb[0].mxu0
    %v179 = vadd.f32 %v61, %v178
    %180 = vmatprep.mubr.bf16.mxu0 0
    %181 = vmatmul.mubr.bf16.gmra.mrb[0].mxu0 %v116
    %v182 = vpop.f32.mrb[0].mxu0
    %v183 = vadd.f32 %v57, %v182
    %v184 = vpop.f32.mrb[0].mxu0
    %v185 = vadd.f32 %v61, %v184
    %v186 = vpop.f32.mrb[0].mxu0
    %v187 = vadd.f32 %v57, %v186
    %v188 = vpop.f32.mrb[0].mxu0
    %v189 = vadd.f32 %v61, %v188
    %190 = vdwg.mxu0
    %191 = vmatprep.subr.bf16.mxu0 0
    %192 = vmatpush1.bf16.msra.mxu0 %v101
    %193 = vmatprep.subr.bf16.mxu0 0
    %194 = vmatpush1.bf16.msra.mxu0 0
    %195 = vmatprep.subr.bf16.mxu0 0
    %196 = vmatpush1.bf16.msra.mxu0 0
    %197 = vmatprep.subr.bf16.mxu0 0
    %198 = vmatpush1.bf16.msra.mxu0 0
    %199 = vmatprep.subr.bf16.mxu0 0
    %200 = vmatpush1.bf16.msra.mxu0 0
    %201 = vmatprep.subr.bf16.mxu0 0
    %202 = vmatpush1.bf16.msra.mxu0 0
    %203 = vmatprep.subr.bf16.mxu0 0
    %204 = vmatpush1.bf16.msra.mxu0 0
    %205 = vmatprep.subr.bf16.mxu0 0
    %206 = vmatpush1.bf16.msra.mxu0 0
    %207 = vmatprep.subr.bf16.mxu0 0
    %208 = vmatpush1.bf16.msra.mxu0 0
    %209 = vmatprep.subr.bf16.mxu0 0
    %210 = vmatpush1.bf16.msra.mxu0 0
    %211 = vmatprep.subr.bf16.mxu0 0
    %212 = vmatpush1.bf16.msra.mxu0 0
    %213 = vmatprep.subr.bf16.mxu0 0
    %214 = vmatpush1.bf16.msra.mxu0 0
    %215 = vmatprep.subr.bf16.mxu0 0
    %216 = vmatpush1.bf16.msra.mxu0 0
    %217 = vmatprep.subr.bf16.mxu0 0
    %218 = vmatpush1.bf16.msra.mxu0 0
    %219 = vmatprep.subr.bf16.mxu0 0
    %220 = vmatpush1.bf16.msra.mxu0 0
    %221 = vmatprep.subr.bf16.mxu0 0
    %222 = vmatpush1.bf16.msra.mxu0 0
    %223 = vmatprep.mubr.bf16.mxu0 0
    %224 = vmatmul.mubr.bf16.gmra.mrb[0].mxu0 %v107
    %v225 = vpop.f32.mrb[0].mxu0
    %v226 = vadd.f32 %v65, %v225
    %v227 = vpop.f32.mrb[0].mxu0
    %v228 = vpop.f32.mrb[0].mxu0
    %v229 = vadd.f32 %v65, %v228
    %v230 = vpop.f32.mrb[0].mxu0
    %231 = vmatprep.mubr.bf16.mxu0 0
    %232 = vmatmul.mubr.bf16.gmra.mrb[0].mxu0 %v110
    %v233 = vpop.f32.mrb[0].mxu0
    %v234 = vadd.f32 %v65, %v233
    %v235 = vpop.f32.mrb[0].mxu0
    %v236 = vpop.f32.mrb[0].mxu0
    %v237 = vadd.f32 %v65, %v236
    %v238 = vpop.f32.mrb[0].mxu0
    %239 = vmatprep.mubr.bf16.mxu0 0
    %240 = vmatmul.mubr.bf16.gmra.mrb[0].mxu0 %v113
    %v241 = vpop.f32.mrb[0].mxu0
    %v242 = vadd.f32 %v65, %v241
    %v243 = vpop.f32.mrb[0].mxu0
    %v244 = vpop.f32.mrb[0].mxu0
    %v245 = vadd.f32 %v65, %v244
    %v246 = vpop.f32.mrb[0].mxu0
    %247 = vmatprep.mubr.bf16.mxu0 0
    %248 = vmatmul.mubr.bf16.gmra.mrb[0].mxu0 %v116
    %v249 = vpop.f32.mrb[0].mxu0
    %v250 = vadd.f32 %v65, %v249
    %v251 = vpop.f32.mrb[0].mxu0
    %v252 = vpop.f32.mrb[0].mxu0
    %v253 = vadd.f32 %v65, %v252
    %v254 = vpop.f32.mrb[0].mxu0
    %255 = vdwg.mxu0
    %256 = vst [vmem:[#allocation3] sm:$0xff] %v153
    %257 = vst [vmem:[#allocation3 + $0x8] sm:$0xff] %v155
    %258 = vst [vmem:[#allocation3 + $0x10] sm:$0xff] %v226
    %259 = vst [vmem:[#allocation3 + $0x18] sm:$0xff] %v157
    %260 = vst [vmem:[#allocation3 + $0x20] sm:$0xff] %v159
    %261 = vst [vmem:[#allocation3 + $0x28] sm:$0xff] %v229
    %262 = vst [vmem:[#allocation3 + $0x30] sm:$0xff] %v163
    %263 = vst [vmem:[#allocation3 + $0x38] sm:$0xff] %v165
    %264 = vst [vmem:[#allocation3 + $0x40] sm:$0xff] %v234
    %265 = vst [vmem:[#allocation3 + $0x48] sm:$0xff] %v167
    %266 = vst [vmem:[#allocation3 + $0x50] sm:$0xff] %v169
    %267 = vst [vmem:[#allocation3 + $0x58] sm:$0xff] %v237
    %268 = vst [vmem:[#allocation3 + $0x60] sm:$0xff] %v173
    %269 = vst [vmem:[#allocation3 + $0x68] sm:$0xff] %v175
    %270 = vst [vmem:[#allocation3 + $0x70] sm:$0xff] %v242
    %271 = vst [vmem:[#allocation3 + $0x78] sm:$0xff] %v177
    %272 = vst [vmem:[#allocation3 + $0x80] sm:$0xff] %v179
    %273 = vst [vmem:[#allocation3 + $0x88] sm:$0xff] %v245
    %274 = vst [vmem:[#allocation3 + $0x90] sm:$0xff] %v183
    %275 = vst [vmem:[#allocation3 + $0x98] sm:$0xff] %v185
    %276 = vst [vmem:[#allocation3 + $0xa0] sm:$0xff] %v250
    %277 = vst [vmem:[#allocation3 + $0xa8] sm:$0xff] %v187
    %278 = vst [vmem:[#allocation3 + $0xb0] sm:$0xff] %v189
    %279 = vst [vmem:[#allocation3 + $0xb8] sm:$0xff] %v253
    %v280 = vld [vmem:[%s4] sm:$0x1]
    %v282 = vlaneseq
    %v283 = vshrl.u32 %v282, 7
    %v284 = vsub.s32 0, %v283
    %v285 = vrot.slane %v280, %v284
    %v287 = vld [vmem:[#allocation2] sm:$0xff]
    %s288 = smul.u32 0, 3
    %s289 = smul.addr %s288, 8
    %s290 = scalar_lea.vmem [#allocation3], %s289
    %v291 = vld [vmem:[%s290] sm:$0xff]
    %v292 = vld [vmem:[%s290 + $0x8] sm:$0xff]
    %v293 = vld [vmem:[%s290 + $0x10] sm:$0xff]
    %v294 = vpack.c.bf16 %v287, %v287
    %v295 = vld [vmem:[#allocation4] sm:$0xff]
    %v296 = vld [vmem:[#allocation4 + $0x8] sm:$0xf]
    %v297 = vld [vmem:[#allocation4 + $0xc] sm:$0xff]
    %v298 = vld [vmem:[#allocation4 + $0x14] sm:$0xf]
    %v299 = vld [vmem:[#allocation4 + $0x18] sm:$0xff]
    %v300 = vld [vmem:[#allocation4 + $0x20] sm:$0xf]
    %v301 = vld [vmem:[#allocation4 + $0x24] sm:$0xff]
    %v302 = vld [vmem:[#allocation4 + $0x2c] sm:$0xf]
    %v303 = vld [vmem:[#allocation4 + $0x30] sm:$0xff]
    %v304 = vld [vmem:[#allocation4 + $0x38] sm:$0xf]
    %v305 = vld [vmem:[#allocation4 + $0x3c] sm:$0xff]
    %v306 = vld [vmem:[#allocation4 + $0x44] sm:$0xf]
    %v307 = vld [vmem:[#allocation4 + $0x48] sm:$0xff]
    %v308 = vld [vmem:[#allocation4 + $0x50] sm:$0xf]
    %v309 = vld [vmem:[#allocation4 + $0x54] sm:$0xff]
    %v310 = vld [vmem:[#allocation4 + $0x5c] sm:$0xf]
    %v311 = vld [vmem:[#allocation4 + $0x60] sm:$0xff]
    %v312 = vld [vmem:[#allocation4 + $0x68] sm:$0xf]
    %v313 = vld [vmem:[#allocation4 + $0x6c] sm:$0xff]
    %v314 = vld [vmem:[#allocation4 + $0x74] sm:$0xf]
    %v315 = vld [vmem:[#allocation4 + $0x78] sm:$0xff]
    %v316 = vld [vmem:[#allocation4 + $0x80] sm:$0xf]
    %v317 = vld [vmem:[#allocation4 + $0x84] sm:$0xff]
    %v318 = vld [vmem:[#allocation4 + $0x8c] sm:$0xf]
    %v319 = vld [vmem:[#allocation4 + $0x90] sm:$0xff]
    %v320 = vld [vmem:[#allocation4 + $0x98] sm:$0xf]
    %v321 = vld [vmem:[#allocation4 + $0x9c] sm:$0xff]
    %v322 = vld [vmem:[#allocation4 + $0xa4] sm:$0xf]
    %v323 = vld [vmem:[#allocation4 + $0xa8] sm:$0xff]
    %v324 = vld [vmem:[#allocation4 + $0xb0] sm:$0xf]
    %v325 = vld [vmem:[#allocation4 + $0xb4] sm:$0xff]
    %v326 = vld [vmem:[#allocation4 + $0xbc] sm:$0xf]
    %v359 = vunpack.c.l.b16 %v295
    %v360 = vunpack.c.h.b16 %v295
    %v361 = vunpack.c.l.b16 %v296
    %v362 = vunpack.c.l.b16 %v297
    %v363 = vunpack.c.h.b16 %v297
    %v364 = vunpack.c.l.b16 %v298
    %v365 = vunpack.c.l.b16 %v299
    %v366 = vunpack.c.h.b16 %v299
    %v367 = vunpack.c.l.b16 %v300
    %v368 = vunpack.c.l.b16 %v301
    %v369 = vunpack.c.h.b16 %v301
    %v370 = vunpack.c.l.b16 %v302
    %v371 = vunpack.c.l.b16 %v303
    %v372 = vunpack.c.h.b16 %v303
    %v373 = vunpack.c.l.b16 %v304
    %v374 = vunpack.c.l.b16 %v305
    %v375 = vunpack.c.h.b16 %v305
    %v376 = vunpack.c.l.b16 %v306
    %v377 = vunpack.c.l.b16 %v307
    %v378 = vunpack.c.h.b16 %v307
    %v379 = vunpack.c.l.b16 %v308
    %v380 = vunpack.c.l.b16 %v309
    %v381 = vunpack.c.h.b16 %v309
    %v382 = vunpack.c.l.b16 %v310
    %v383 = vunpack.c.l.b16 %v311
    %v384 = vunpack.c.h.b16 %v311
    %v385 = vunpack.c.l.b16 %v312
    %v386 = vunpack.c.l.b16 %v313
    %v387 = vunpack.c.h.b16 %v313
    %v388 = vunpack.c.l.b16 %v314
    %v389 = vunpack.c.l.b16 %v315
    %v390 = vunpack.c.h.b16 %v315
    %v391 = vunpack.c.l.b16 %v316
    %v392 = vunpack.c.l.b16 %v317
    %v393 = vunpack.c.h.b16 %v317
    %v394 = vunpack.c.l.b16 %v318
    %v395 = vunpack.c.l.b16 %v319
    %v396 = vunpack.c.h.b16 %v319
    %v397 = vunpack.c.l.b16 %v320
    %v398 = vunpack.c.l.b16 %v321
    %v399 = vunpack.c.h.b16 %v321
    %v400 = vunpack.c.l.b16 %v322
    %v401 = vunpack.c.l.b16 %v323
    %v402 = vunpack.c.h.b16 %v323
    %v403 = vunpack.c.l.b16 %v324
    %v404 = vunpack.c.l.b16 %v325
    %v405 = vunpack.c.h.b16 %v325
    %v406 = vunpack.c.l.b16 %v326
    %v407 = vpack.c.b16 %v362, %v359
    %v408 = vpack.c.b16 %v363, %v360
    %v409 = vpack.c.b16 %v364, %v361
    %v410 = vpack.c.b16 %v368, %v365
    %v411 = vpack.c.b16 %v369, %v366
    %v412 = vpack.c.b16 %v370, %v367
    %v413 = vpack.c.b16 %v374, %v371
    %v414 = vpack.c.b16 %v375, %v372
    %v415 = vpack.c.b16 %v376, %v373
    %v416 = vpack.c.b16 %v380, %v377
    %v417 = vpack.c.b16 %v381, %v378
    %v418 = vpack.c.b16 %v382, %v379
    %v419 = vpack.c.b16 %v386, %v383
    %v420 = vpack.c.b16 %v387, %v384
    %v421 = vpack.c.b16 %v388, %v385
    %v422 = vpack.c.b16 %v392, %v389
    %v423 = vpack.c.b16 %v393, %v390
    %v424 = vpack.c.b16 %v394, %v391
    %v425 = vpack.c.b16 %v398, %v395
    %v426 = vpack.c.b16 %v399, %v396
    %v427 = vpack.c.b16 %v400, %v397
    %v428 = vpack.c.b16 %v404, %v401
    %v429 = vpack.c.b16 %v405, %v402
    %v430 = vpack.c.b16 %v406, %v403
    %455 = vmatprep.subr.bf16.mxu0 %v408
    %456 = vmatpush1.bf16.msra.mxu0 %v407
    %457 = vmatprep.subr.bf16.mxu0 %v411
    %458 = vmatpush1.bf16.msra.mxu0 %v410
    %459 = vmatprep.subr.bf16.mxu0 %v414
    %460 = vmatpush1.bf16.msra.mxu0 %v413
    %461 = vmatprep.subr.bf16.mxu0 %v417
    %462 = vmatpush1.bf16.msra.mxu0 %v416
    %463 = vmatprep.subr.bf16.mxu0 %v420
    %464 = vmatpush1.bf16.msra.mxu0 %v419
    %465 = vmatprep.subr.bf16.mxu0 %v423
    %466 = vmatpush1.bf16.msra.mxu0 %v422
    %467 = vmatprep.subr.bf16.mxu0 %v426
    %468 = vmatpush1.bf16.msra.mxu0 %v425
    %469 = vmatprep.subr.bf16.mxu0 %v429
    %470 = vmatpush1.bf16.msra.mxu0 %v428
    %471 = vmatprep.subr.bf16.mxu0 0
    %472 = vmatpush1.bf16.msra.mxu0 0
    %473 = vmatprep.subr.bf16.mxu0 0
    %474 = vmatpush1.bf16.msra.mxu0 0
    %475 = vmatprep.subr.bf16.mxu0 0
    %476 = vmatpush1.bf16.msra.mxu0 0
    %477 = vmatprep.subr.bf16.mxu0 0
    %478 = vmatpush1.bf16.msra.mxu0 0
    %479 = vmatprep.subr.bf16.mxu0 0
    %480 = vmatpush1.bf16.msra.mxu0 0
    %481 = vmatprep.subr.bf16.mxu0 0
    %482 = vmatpush1.bf16.msra.mxu0 0
    %483 = vmatprep.subr.bf16.mxu0 0
    %484 = vmatpush1.bf16.msra.mxu0 0
    %485 = vmatprep.subr.bf16.mxu0 0
    %486 = vmatpush1.bf16.msra.mxu0 0
    %487 = vmatprep.mubr.bf16.mxu0 0
    %488 = vmatmul.mubr.bf16.gmra.mrb[0].mxu0 %v294
    %v489 = vpop.f32.mrb[0].mxu0
    %v490 = vadd.f32 0.0, %v489
    %v491 = vpop.f32.mrb[0].mxu0
    %v492 = vadd.f32 0.0, %v491
    %v493 = vpop.f32.mrb[0].mxu0
    %v494 = vpop.f32.mrb[0].mxu0
    %495 = vdwg.mxu0
    %496 = vmatprep.subr.bf16.mxu0 0
    %497 = vmatpush1.bf16.msra.mxu0 %v409
    %498 = vmatprep.subr.bf16.mxu0 0
    %499 = vmatpush1.bf16.msra.mxu0 %v412
    %500 = vmatprep.subr.bf16.mxu0 0
    %501 = vmatpush1.bf16.msra.mxu0 %v415
    %502 = vmatprep.subr.bf16.mxu0 0
    %503 = vmatpush1.bf16.msra.mxu0 %v418
    %504 = vmatprep.subr.bf16.mxu0 0
    %505 = vmatpush1.bf16.msra.mxu0 %v421
    %506 = vmatprep.subr.bf16.mxu0 0
    %507 = vmatpush1.bf16.msra.mxu0 %v424
    %508 = vmatprep.subr.bf16.mxu0 0
    %509 = vmatpush1.bf16.msra.mxu0 %v427
    %510 = vmatprep.subr.bf16.mxu0 0
    %511 = vmatpush1.bf16.msra.mxu0 %v430
    %512 = vmatprep.subr.bf16.mxu0 0
    %513 = vmatpush1.bf16.msra.mxu0 0
    %514 = vmatprep.subr.bf16.mxu0 0
    %515 = vmatpush1.bf16.msra.mxu0 0
    %516 = vmatprep.subr.bf16.mxu0 0
    %517 = vmatpush1.bf16.msra.mxu0 0
    %518 = vmatprep.subr.bf16.mxu0 0
    %519 = vmatpush1.bf16.msra.mxu0 0
    %520 = vmatprep.subr.bf16.mxu0 0
    %521 = vmatpush1.bf16.msra.mxu0 0
    %522 = vmatprep.subr.bf16.mxu0 0
    %523 = vmatpush1.bf16.msra.mxu0 0
    %524 = vmatprep.subr.bf16.mxu0 0
    %525 = vmatpush1.bf16.msra.mxu0 0
    %526 = vmatprep.subr.bf16.mxu0 0
    %527 = vmatpush1.bf16.msra.mxu0 0
    %528 = vmatprep.mubr.bf16.mxu0 0
    %529 = vmatmul.mubr.bf16.gmra.mrb[0].mxu0 %v294
    %v530 = vpop.f32.mrb[0].mxu0
    %v531 = vadd.f32 0.0, %v530
    %v532 = vpop.f32.mrb[0].mxu0
    %v533 = vpop.f32.mrb[0].mxu0
    %v534 = vpop.f32.mrb[0].mxu0
    %535 = vdwg.mxu0
    %v536 = vadd.f32 %v291, %v490
    %v537 = vxor.u32 %v536, 2147483648
    %v538 = vmul.f32 %v537, 1.442695
    %v539 = vpow.pop %v538
    %v540 = vadd.f32 %v539, 1.0
    %v541 = vrcp.pop %v540
    %v542 = vmul.f32 1.0, %v541
    %v543 = vadd.f32 %v292, %v492
    %v544 = vxor.u32 %v543, 2147483648
    %v545 = vmul.f32 %v544, 1.442695
    %v546 = vpow.pop %v545
    %v547 = vadd.f32 %v546, 1.0
    %v548 = vrcp.pop %v547
    %v549 = vmul.f32 1.0, %v548
    %v550 = vadd.f32 %v531, %v285
    %v551 = vmul.f32 %v542, %v550
    %v552 = vadd.f32 %v293, %v551
    %v553 = vtanh.pop %v552
    %v554 = vsub.f32 1.0, %v549
    %v555 = vmul.f32 %v554, %v553
    %v556 = vmul.f32 %v549, %v287
    %v557 = vadd.f32 %v555, %v556
    %v558 = vpack.c.bf16 %v557, %v557
    %559 = vst [vmem:[%s5] sm:$0xf] %v558
    %s560 = smul.u32 1, 3
    %s561 = smul.addr %s560, 8
    %s562 = scalar_lea.vmem [#allocation3], %s561
    %v563 = vld [vmem:[%s562] sm:$0xff]
    %v564 = vld [vmem:[%s562 + $0x8] sm:$0xff]
    %v565 = vld [vmem:[%s562 + $0x10] sm:$0xff]
    %v566 = vld [vmem:[#allocation4] sm:$0xff]
    %v567 = vld [vmem:[#allocation4 + $0x8] sm:$0xf]
    %v568 = vld [vmem:[#allocation4 + $0xc] sm:$0xff]
    %v569 = vld [vmem:[#allocation4 + $0x14] sm:$0xf]
    %v570 = vld [vmem:[#allocation4 + $0x18] sm:$0xff]
    %v571 = vld [vmem:[#allocation4 + $0x20] sm:$0xf]
    %v572 = vld [vmem:[#allocation4 + $0x24] sm:$0xff]
    %v573 = vld [vmem:[#allocation4 + $0x2c] sm:$0xf]
    %v574 = vld [vmem:[#allocation4 + $0x30] sm:$0xff]
    %v575 = vld [vmem:[#allocation4 + $0x38] sm:$0xf]
    %v576 = vld [vmem:[#allocation4 + $0x3c] sm:$0xff]
    %v577 = vld [vmem:[#allocation4 + $0x44] sm:$0xf]
    %v578 = vld [vmem:[#allocation4 + $0x48] sm:$0xff]
    %v579 = vld [vmem:[#allocation4 + $0x50] sm:$0xf]
    %v580 = vld [vmem:[#allocation4 + $0x54] sm:$0xff]
    %v581 = vld [vmem:[#allocation4 + $0x5c] sm:$0xf]
    %v582 = vld [vmem:[#allocation4 + $0x60] sm:$0xff]
    %v583 = vld [vmem:[#allocation4 + $0x68] sm:$0xf]
    %v584 = vld [vmem:[#allocation4 + $0x6c] sm:$0xff]
    %v585 = vld [vmem:[#allocation4 + $0x74] sm:$0xf]
    %v586 = vld [vmem:[#allocation4 + $0x78] sm:$0xff]
    %v587 = vld [vmem:[#allocation4 + $0x80] sm:$0xf]
    %v588 = vld [vmem:[#allocation4 + $0x84] sm:$0xff]
    %v589 = vld [vmem:[#allocation4 + $0x8c] sm:$0xf]
    %v590 = vld [vmem:[#allocation4 + $0x90] sm:$0xff]
    %v591 = vld [vmem:[#allocation4 + $0x98] sm:$0xf]
    %v592 = vld [vmem:[#allocation4 + $0x9c] sm:$0xff]
    %v593 = vld [vmem:[#allocation4 + $0xa4] sm:$0xf]
    %v594 = vld [vmem:[#allocation4 + $0xa8] sm:$0xff]
    %v595 = vld [vmem:[#allocation4 + $0xb0] sm:$0xf]
    %v596 = vld [vmem:[#allocation4 + $0xb4] sm:$0xff]
    %v597 = vld [vmem:[#allocation4 + $0xbc] sm:$0xf]
    %v630 = vunpack.c.l.b16 %v566
    %v631 = vunpack.c.h.b16 %v566
    %v632 = vunpack.c.l.b16 %v567
    %v633 = vunpack.c.l.b16 %v568
    %v634 = vunpack.c.h.b16 %v568
    %v635 = vunpack.c.l.b16 %v569
    %v636 = vunpack.c.l.b16 %v570
    %v637 = vunpack.c.h.b16 %v570
    %v638 = vunpack.c.l.b16 %v571
    %v639 = vunpack.c.l.b16 %v572
    %v640 = vunpack.c.h.b16 %v572
    %v641 = vunpack.c.l.b16 %v573
    %v642 = vunpack.c.l.b16 %v574
    %v643 = vunpack.c.h.b16 %v574
    %v644 = vunpack.c.l.b16 %v575
    %v645 = vunpack.c.l.b16 %v576
    %v646 = vunpack.c.h.b16 %v576
    %v647 = vunpack.c.l.b16 %v577
    %v648 = vunpack.c.l.b16 %v578
    %v649 = vunpack.c.h.b16 %v578
    %v650 = vunpack.c.l.b16 %v579
    %v651 = vunpack.c.l.b16 %v580
    %v652 = vunpack.c.h.b16 %v580
    %v653 = vunpack.c.l.b16 %v581
    %v654 = vunpack.c.l.b16 %v582
    %v655 = vunpack.c.h.b16 %v582
    %v656 = vunpack.c.l.b16 %v583
    %v657 = vunpack.c.l.b16 %v584
    %v658 = vunpack.c.h.b16 %v584
    %v659 = vunpack.c.l.b16 %v585
    %v660 = vunpack.c.l.b16 %v586
    %v661 = vunpack.c.h.b16 %v586
    %v662 = vunpack.c.l.b16 %v587
    %v663 = vunpack.c.l.b16 %v588
    %v664 = vunpack.c.h.b16 %v588
    %v665 = vunpack.c.l.b16 %v589
    %v666 = vunpack.c.l.b16 %v590
    %v667 = vunpack.c.h.b16 %v590
    %v668 = vunpack.c.l.b16 %v591
    %v669 = vunpack.c.l.b16 %v592
    %v670 = vunpack.c.h.b16 %v592
    %v671 = vunpack.c.l.b16 %v593
    %v672 = vunpack.c.l.b16 %v594
    %v673 = vunpack.c.h.b16 %v594
    %v674 = vunpack.c.l.b16 %v595
    %v675 = vunpack.c.l.b16 %v596
    %v676 = vunpack.c.h.b16 %v596
    %v677 = vunpack.c.l.b16 %v597
    %v678 = vpack.c.b16 %v633, %v630
    %v679 = vpack.c.b16 %v634, %v631
    %v680 = vpack.c.b16 %v635, %v632
    %v681 = vpack.c.b16 %v639, %v636
    %v682 = vpack.c.b16 %v640, %v637
    %v683 = vpack.c.b16 %v641, %v638
    %v684 = vpack.c.b16 %v645, %v642
    %v685 = vpack.c.b16 %v646, %v643
    %v686 = vpack.c.b16 %v647, %v644
    %v687 = vpack.c.b16 %v651, %v648
    %v688 = vpack.c.b16 %v652, %v649
    %v689 = vpack.c.b16 %v653, %v650
    %v690 = vpack.c.b16 %v657, %v654
    %v691 = vpack.c.b16 %v658, %v655
    %v692 = vpack.c.b16 %v659, %v656
    %v693 = vpack.c.b16 %v663, %v660
    %v694 = vpack.c.b16 %v664, %v661
    %v695 = vpack.c.b16 %v665, %v662
    %v696 = vpack.c.b16 %v669, %v666
    %v697 = vpack.c.b16 %v670, %v667
    %v698 = vpack.c.b16 %v671, %v668
    %v699 = vpack.c.b16 %v675, %v672
    %v700 = vpack.c.b16 %v676, %v673
    %v701 = vpack.c.b16 %v677, %v674
    %726 = vmatprep.subr.bf16.mxu0 %v679
    %727 = vmatpush1.bf16.msra.mxu0 %v678
    %728 = vmatprep.subr.bf16.mxu0 %v682
    %729 = vmatpush1.bf16.msra.mxu0 %v681
    %730 = vmatprep.subr.bf16.mxu0 %v685
    %731 = vmatpush1.bf16.msra.mxu0 %v684
    %732 = vmatprep.subr.bf16.mxu0 %v688
    %733 = vmatpush1.bf16.msra.mxu0 %v687
    %734 = vmatprep.subr.bf16.mxu0 %v691
    %735 = vmatpush1.bf16.msra.mxu0 %v690
    %736 = vmatprep.subr.bf16.mxu0 %v694
    %737 = vmatpush1.bf16.msra.mxu0 %v693
    %738 = vmatprep.subr.bf16.mxu0 %v697
    %739 = vmatpush1.bf16.msra.mxu0 %v696
    %740 = vmatprep.subr.bf16.mxu0 %v700
    %741 = vmatpush1.bf16.msra.mxu0 %v699
    %742 = vmatprep.subr.bf16.mxu0 0
    %743 = vmatpush1.bf16.msra.mxu0 0
    %744 = vmatprep.subr.bf16.mxu0 0
    %745 = vmatpush1.bf16.msra.mxu0 0
    %746 = vmatprep.subr.bf16.mxu0 0
    %747 = vmatpush1.bf16.msra.mxu0 0
    %748 = vmatprep.subr.bf16.mxu0 0
    %749 = vmatpush1.bf16.msra.mxu0 0
    %750 = vmatprep.subr.bf16.mxu0 0
    %751 = vmatpush1.bf16.msra.mxu0 0
    %752 = vmatprep.subr.bf16.mxu0 0
    %753 = vmatpush1.bf16.msra.mxu0 0
    %754 = vmatprep.subr.bf16.mxu0 0
    %755 = vmatpush1.bf16.msra.mxu0 0
    %756 = vmatprep.subr.bf16.mxu0 0
    %757 = vmatpush1.bf16.msra.mxu0 0
    %758 = vmatprep.mubr.bf16.mxu0 0
    %759 = vmatmul.mubr.bf16.gmra.mrb[0].mxu0 %v558
    %v760 = vpop.f32.mrb[0].mxu0
    %v761 = vadd.f32 0.0, %v760
    %v762 = vpop.f32.mrb[0].mxu0
    %v763 = vadd.f32 0.0, %v762
    %v764 = vpop.f32.mrb[0].mxu0
    %v765 = vpop.f32.mrb[0].mxu0
    %766 = vdwg.mxu0
    %767 = vmatprep.subr.bf16.mxu0 0
    %768 = vmatpush1.bf16.msra.mxu0 %v680
    %769 = vmatprep.subr.bf16.mxu0 0
    %770 = vmatpush1.bf16.msra.mxu0 %v683
    %771 = vmatprep.subr.bf16.mxu0 0
    %772 = vmatpush1.bf16.msra.mxu0 %v686
    %773 = vmatprep.subr.bf16.mxu0 0
    %774 = vmatpush1.bf16.msra.mxu0 %v689
    %775 = vmatprep.subr.bf16.mxu0 0
    %776 = vmatpush1.bf16.msra.mxu0 %v692
    %777 = vmatprep.subr.bf16.mxu0 0
    %778 = vmatpush1.bf16.msra.mxu0 %v695
    %779 = vmatprep.subr.bf16.mxu0 0
    %780 = vmatpush1.bf16.msra.mxu0 %v698
    %781 = vmatprep.subr.bf16.mxu0 0
    %782 = vmatpush1.bf16.msra.mxu0 %v701
    %783 = vmatprep.subr.bf16.mxu0 0
    %784 = vmatpush1.bf16.msra.mxu0 0
    %785 = vmatprep.subr.bf16.mxu0 0
    %786 = vmatpush1.bf16.msra.mxu0 0
    %787 = vmatprep.subr.bf16.mxu0 0
    %788 = vmatpush1.bf16.msra.mxu0 0
    %789 = vmatprep.subr.bf16.mxu0 0
    %790 = vmatpush1.bf16.msra.mxu0 0
    %791 = vmatprep.subr.bf16.mxu0 0
    %792 = vmatpush1.bf16.msra.mxu0 0
    %793 = vmatprep.subr.bf16.mxu0 0
    %794 = vmatpush1.bf16.msra.mxu0 0
    %795 = vmatprep.subr.bf16.mxu0 0
    %796 = vmatpush1.bf16.msra.mxu0 0
    %797 = vmatprep.subr.bf16.mxu0 0
    %798 = vmatpush1.bf16.msra.mxu0 0
    %799 = vmatprep.mubr.bf16.mxu0 0
    %800 = vmatmul.mubr.bf16.gmra.mrb[0].mxu0 %v558
    %v801 = vpop.f32.mrb[0].mxu0
    %v802 = vadd.f32 0.0, %v801
    %v803 = vpop.f32.mrb[0].mxu0
    %v804 = vpop.f32.mrb[0].mxu0
    %v805 = vpop.f32.mrb[0].mxu0
    %806 = vdwg.mxu0
    %v807 = vadd.f32 %v563, %v761
    %v808 = vxor.u32 %v807, 2147483648
    %v809 = vmul.f32 %v808, 1.442695
    %v810 = vpow.pop %v809
    %v811 = vadd.f32 %v810, 1.0
    %v812 = vrcp.pop %v811
    %v813 = vmul.f32 1.0, %v812
    %v814 = vadd.f32 %v564, %v763
    %v815 = vxor.u32 %v814, 2147483648
    %v816 = vmul.f32 %v815, 1.442695
    %v817 = vpow.pop %v816
    %v818 = vadd.f32 %v817, 1.0
    %v819 = vrcp.pop %v818
    %v820 = vmul.f32 1.0, %v819
    %v821 = vadd.f32 %v802, %v285
    %v822 = vmul.f32 %v813, %v821
    %v823 = vadd.f32 %v565, %v822
    %v824 = vtanh.pop %v823
    %v825 = vsub.f32 1.0, %v820
    %v826 = vmul.f32 %v825, %v824
    %v827 = vmul.f32 %v820, %v557
    %v828 = vadd.f32 %v826, %v827
    %v829 = vpack.c.bf16 %v828, %v828
    %s830 = scalar_lea.vmem %s5, 4
    %831 = vst [vmem:[%s830] sm:$0xf] %v829
    %s832 = smul.u32 2, 3
    %s833 = smul.addr %s832, 8
    %s834 = scalar_lea.vmem [#allocation3], %s833
    %v835 = vld [vmem:[%s834] sm:$0xff]
    %v836 = vld [vmem:[%s834 + $0x8] sm:$0xff]
    %v837 = vld [vmem:[%s834 + $0x10] sm:$0xff]
    %v838 = vld [vmem:[#allocation4] sm:$0xff]
    %v839 = vld [vmem:[#allocation4 + $0x8] sm:$0xf]
    %v840 = vld [vmem:[#allocation4 + $0xc] sm:$0xff]
    %v841 = vld [vmem:[#allocation4 + $0x14] sm:$0xf]
    %v842 = vld [vmem:[#allocation4 + $0x18] sm:$0xff]
    %v843 = vld [vmem:[#allocation4 + $0x20] sm:$0xf]
    %v844 = vld [vmem:[#allocation4 + $0x24] sm:$0xff]
    %v845 = vld [vmem:[#allocation4 + $0x2c] sm:$0xf]
    %v846 = vld [vmem:[#allocation4 + $0x30] sm:$0xff]
    %v847 = vld [vmem:[#allocation4 + $0x38] sm:$0xf]
    %v848 = vld [vmem:[#allocation4 + $0x3c] sm:$0xff]
    %v849 = vld [vmem:[#allocation4 + $0x44] sm:$0xf]
    %v850 = vld [vmem:[#allocation4 + $0x48] sm:$0xff]
    %v851 = vld [vmem:[#allocation4 + $0x50] sm:$0xf]
    %v852 = vld [vmem:[#allocation4 + $0x54] sm:$0xff]
    %v853 = vld [vmem:[#allocation4 + $0x5c] sm:$0xf]
    %v854 = vld [vmem:[#allocation4 + $0x60] sm:$0xff]
    %v855 = vld [vmem:[#allocation4 + $0x68] sm:$0xf]
    %v856 = vld [vmem:[#allocation4 + $0x6c] sm:$0xff]
    %v857 = vld [vmem:[#allocation4 + $0x74] sm:$0xf]
    %v858 = vld [vmem:[#allocation4 + $0x78] sm:$0xff]
    %v859 = vld [vmem:[#allocation4 + $0x80] sm:$0xf]
    %v860 = vld [vmem:[#allocation4 + $0x84] sm:$0xff]
    %v861 = vld [vmem:[#allocation4 + $0x8c] sm:$0xf]
    %v862 = vld [vmem:[#allocation4 + $0x90] sm:$0xff]
    %v863 = vld [vmem:[#allocation4 + $0x98] sm:$0xf]
    %v864 = vld [vmem:[#allocation4 + $0x9c] sm:$0xff]
    %v865 = vld [vmem:[#allocation4 + $0xa4] sm:$0xf]
    %v866 = vld [vmem:[#allocation4 + $0xa8] sm:$0xff]
    %v867 = vld [vmem:[#allocation4 + $0xb0] sm:$0xf]
    %v868 = vld [vmem:[#allocation4 + $0xb4] sm:$0xff]
    %v869 = vld [vmem:[#allocation4 + $0xbc] sm:$0xf]
    %v902 = vunpack.c.l.b16 %v838
    %v903 = vunpack.c.h.b16 %v838
    %v904 = vunpack.c.l.b16 %v839
    %v905 = vunpack.c.l.b16 %v840
    %v906 = vunpack.c.h.b16 %v840
    %v907 = vunpack.c.l.b16 %v841
    %v908 = vunpack.c.l.b16 %v842
    %v909 = vunpack.c.h.b16 %v842
    %v910 = vunpack.c.l.b16 %v843
    %v911 = vunpack.c.l.b16 %v844
    %v912 = vunpack.c.h.b16 %v844
    %v913 = vunpack.c.l.b16 %v845
    %v914 = vunpack.c.l.b16 %v846
    %v915 = vunpack.c.h.b16 %v846
    %v916 = vunpack.c.l.b16 %v847
    %v917 = vunpack.c.l.b16 %v848
    %v918 = vunpack.c.h.b16 %v848
    %v919 = vunpack.c.l.b16 %v849
    %v920 = vunpack.c.l.b16 %v850
    %v921 = vunpack.c.h.b16 %v850
    %v922 = vunpack.c.l.b16 %v851
    %v923 = vunpack.c.l.b16 %v852
    %v924 = vunpack.c.h.b16 %v852
    %v925 = vunpack.c.l.b16 %v853
    %v926 = vunpack.c.l.b16 %v854
    %v927 = vunpack.c.h.b16 %v854
    %v928 = vunpack.c.l.b16 %v855
    %v929 = vunpack.c.l.b16 %v856
    %v930 = vunpack.c.h.b16 %v856
    %v931 = vunpack.c.l.b16 %v857
    %v932 = vunpack.c.l.b16 %v858
    %v933 = vunpack.c.h.b16 %v858
    %v934 = vunpack.c.l.b16 %v859
    %v935 = vunpack.c.l.b16 %v860
    %v936 = vunpack.c.h.b16 %v860
    %v937 = vunpack.c.l.b16 %v861
    %v938 = vunpack.c.l.b16 %v862
    %v939 = vunpack.c.h.b16 %v862
    %v940 = vunpack.c.l.b16 %v863
    %v941 = vunpack.c.l.b16 %v864
    %v942 = vunpack.c.h.b16 %v864
    %v943 = vunpack.c.l.b16 %v865
    %v944 = vunpack.c.l.b16 %v866
    %v945 = vunpack.c.h.b16 %v866
    %v946 = vunpack.c.l.b16 %v867
    %v947 = vunpack.c.l.b16 %v868
    %v948 = vunpack.c.h.b16 %v868
    %v949 = vunpack.c.l.b16 %v869
    %v950 = vpack.c.b16 %v905, %v902
    %v951 = vpack.c.b16 %v906, %v903
    %v952 = vpack.c.b16 %v907, %v904
    %v953 = vpack.c.b16 %v911, %v908
    %v954 = vpack.c.b16 %v912, %v909
    %v955 = vpack.c.b16 %v913, %v910
    %v956 = vpack.c.b16 %v917, %v914
    %v957 = vpack.c.b16 %v918, %v915
    %v958 = vpack.c.b16 %v919, %v916
    %v959 = vpack.c.b16 %v923, %v920
    %v960 = vpack.c.b16 %v924, %v921
    %v961 = vpack.c.b16 %v925, %v922
    %v962 = vpack.c.b16 %v929, %v926
    %v963 = vpack.c.b16 %v930, %v927
    %v964 = vpack.c.b16 %v931, %v928
    %v965 = vpack.c.b16 %v935, %v932
    %v966 = vpack.c.b16 %v936, %v933
    %v967 = vpack.c.b16 %v937, %v934
    %v968 = vpack.c.b16 %v941, %v938
    %v969 = vpack.c.b16 %v942, %v939
    %v970 = vpack.c.b16 %v943, %v940
    %v971 = vpack.c.b16 %v947, %v944
    %v972 = vpack.c.b16 %v948, %v945
    %v973 = vpack.c.b16 %v949, %v946
    %998 = vmatprep.subr.bf16.mxu0 %v951
    %999 = vmatpush1.bf16.msra.mxu0 %v950
    %1000 = vmatprep.subr.bf16.mxu0 %v954
    %1001 = vmatpush1.bf16.msra.mxu0 %v953
    %1002 = vmatprep.subr.bf16.mxu0 %v957
    %1003 = vmatpush1.bf16.msra.mxu0 %v956
    %1004 = vmatprep.subr.bf16.mxu0 %v960
    %1005 = vmatpush1.bf16.msra.mxu0 %v959
    %1006 = vmatprep.subr.bf16.mxu0 %v963
    %1007 = vmatpush1.bf16.msra.mxu0 %v962
    %1008 = vmatprep.subr.bf16.mxu0 %v966
    %1009 = vmatpush1.bf16.msra.mxu0 %v965
    %1010 = vmatprep.subr.bf16.mxu0 %v969
    %1011 = vmatpush1.bf16.msra.mxu0 %v968
    %1012 = vmatprep.subr.bf16.mxu0 %v972
    %1013 = vmatpush1.bf16.msra.mxu0 %v971
    %1014 = vmatprep.subr.bf16.mxu0 0
    %1015 = vmatpush1.bf16.msra.mxu0 0
    %1016 = vmatprep.subr.bf16.mxu0 0
    %1017 = vmatpush1.bf16.msra.mxu0 0
    %1018 = vmatprep.subr.bf16.mxu0 0
    %1019 = vmatpush1.bf16.msra.mxu0 0
    %1020 = vmatprep.subr.bf16.mxu0 0
    %1021 = vmatpush1.bf16.msra.mxu0 0
    %1022 = vmatprep.subr.bf16.mxu0 0
    %1023 = vmatpush1.bf16.msra.mxu0 0
    %1024 = vmatprep.subr.bf16.mxu0 0
    %1025 = vmatpush1.bf16.msra.mxu0 0
    %1026 = vmatprep.subr.bf16.mxu0 0
    %1027 = vmatpush1.bf16.msra.mxu0 0
    %1028 = vmatprep.subr.bf16.mxu0 0
    %1029 = vmatpush1.bf16.msra.mxu0 0
    %1030 = vmatprep.mubr.bf16.mxu0 0
    %1031 = vmatmul.mubr.bf16.gmra.mrb[0].mxu0 %v829
    %v1032 = vpop.f32.mrb[0].mxu0
    %v1033 = vadd.f32 0.0, %v1032
    %v1034 = vpop.f32.mrb[0].mxu0
    %v1035 = vadd.f32 0.0, %v1034
    %v1036 = vpop.f32.mrb[0].mxu0
    %v1037 = vpop.f32.mrb[0].mxu0
    %1038 = vdwg.mxu0
    %1039 = vmatprep.subr.bf16.mxu0 0
    %1040 = vmatpush1.bf16.msra.mxu0 %v952
    %1041 = vmatprep.subr.bf16.mxu0 0
    %1042 = vmatpush1.bf16.msra.mxu0 %v955
    %1043 = vmatprep.subr.bf16.mxu0 0
    %1044 = vmatpush1.bf16.msra.mxu0 %v958
    %1045 = vmatprep.subr.bf16.mxu0 0
    %1046 = vmatpush1.bf16.msra.mxu0 %v961
    %1047 = vmatprep.subr.bf16.mxu0 0
    %1048 = vmatpush1.bf16.msra.mxu0 %v964
    %1049 = vmatprep.subr.bf16.mxu0 0
    %1050 = vmatpush1.bf16.msra.mxu0 %v967
    %1051 = vmatprep.subr.bf16.mxu0 0
    %1052 = vmatpush1.bf16.msra.mxu0 %v970
    %1053 = vmatprep.subr.bf16.mxu0 0
    %1054 = vmatpush1.bf16.msra.mxu0 %v973
    %1055 = vmatprep.subr.bf16.mxu0 0
    %1056 = vmatpush1.bf16.msra.mxu0 0
    %1057 = vmatprep.subr.bf16.mxu0 0
    %1058 = vmatpush1.bf16.msra.mxu0 0
    %1059 = vmatprep.subr.bf16.mxu0 0
    %1060 = vmatpush1.bf16.msra.mxu0 0
    %1061 = vmatprep.subr.bf16.mxu0 0
    %1062 = vmatpush1.bf16.msra.mxu0 0
    %1063 = vmatprep.subr.bf16.mxu0 0
    %1064 = vmatpush1.bf16.msra.mxu0 0
    %1065 = vmatprep.subr.bf16.mxu0 0
    %1066 = vmatpush1.bf16.msra.mxu0 0
    %1067 = vmatprep.subr.bf16.mxu0 0
    %1068 = vmatpush1.bf16.msra.mxu0 0
    %1069 = vmatprep.subr.bf16.mxu0 0
    %1070 = vmatpush1.bf16.msra.mxu0 0
    %1071 = vmatprep.mubr.bf16.mxu0 0
    %1072 = vmatmul.mubr.bf16.gmra.mrb[0].mxu0 %v829
    %v1073 = vpop.f32.mrb[0].mxu0
    %v1074 = vadd.f32 0.0, %v1073
    %v1075 = vpop.f32.mrb[0].mxu0
    %v1076 = vpop.f32.mrb[0].mxu0
    %v1077 = vpop.f32.mrb[0].mxu0
    %1078 = vdwg.mxu0
    %v1079 = vadd.f32 %v835, %v1033
    %v1080 = vxor.u32 %v1079, 2147483648
    %v1081 = vmul.f32 %v1080, 1.442695
    %v1082 = vpow.pop %v1081
    %v1083 = vadd.f32 %v1082, 1.0
    %v1084 = vrcp.pop %v1083
    %v1085 = vmul.f32 1.0, %v1084
    %v1086 = vadd.f32 %v836, %v1035
    %v1087 = vxor.u32 %v1086, 2147483648
    %v1088 = vmul.f32 %v1087, 1.442695
    %v1089 = vpow.pop %v1088
    %v1090 = vadd.f32 %v1089, 1.0
    %v1091 = vrcp.pop %v1090
    %v1092 = vmul.f32 1.0, %v1091
    %v1093 = vadd.f32 %v1074, %v285
    %v1094 = vmul.f32 %v1085, %v1093
    %v1095 = vadd.f32 %v837, %v1094
    %v1096 = vtanh.pop %v1095
    %v1097 = vsub.f32 1.0, %v1092
    %v1098 = vmul.f32 %v1097, %v1096
    %v1099 = vmul.f32 %v1092, %v828
    %v1100 = vadd.f32 %v1098, %v1099
    %v1101 = vpack.c.bf16 %v1100, %v1100
    %s1102 = scalar_lea.vmem %s5, 8
    %1103 = vst [vmem:[%s1102] sm:$0xf] %v1101
    %s1104 = smul.u32 3, 3
    %s1105 = smul.addr %s1104, 8
    %s1106 = scalar_lea.vmem [#allocation3], %s1105
    %v1107 = vld [vmem:[%s1106] sm:$0xff]
    %v1108 = vld [vmem:[%s1106 + $0x8] sm:$0xff]
    %v1109 = vld [vmem:[%s1106 + $0x10] sm:$0xff]
    %v1110 = vld [vmem:[#allocation4] sm:$0xff]
    %v1111 = vld [vmem:[#allocation4 + $0x8] sm:$0xf]
    %v1112 = vld [vmem:[#allocation4 + $0xc] sm:$0xff]
    %v1113 = vld [vmem:[#allocation4 + $0x14] sm:$0xf]
    %v1114 = vld [vmem:[#allocation4 + $0x18] sm:$0xff]
    %v1115 = vld [vmem:[#allocation4 + $0x20] sm:$0xf]
    %v1116 = vld [vmem:[#allocation4 + $0x24] sm:$0xff]
    %v1117 = vld [vmem:[#allocation4 + $0x2c] sm:$0xf]
    %v1118 = vld [vmem:[#allocation4 + $0x30] sm:$0xff]
    %v1119 = vld [vmem:[#allocation4 + $0x38] sm:$0xf]
    %v1120 = vld [vmem:[#allocation4 + $0x3c] sm:$0xff]
    %v1121 = vld [vmem:[#allocation4 + $0x44] sm:$0xf]
    %v1122 = vld [vmem:[#allocation4 + $0x48] sm:$0xff]
    %v1123 = vld [vmem:[#allocation4 + $0x50] sm:$0xf]
    %v1124 = vld [vmem:[#allocation4 + $0x54] sm:$0xff]
    %v1125 = vld [vmem:[#allocation4 + $0x5c] sm:$0xf]
    %v1126 = vld [vmem:[#allocation4 + $0x60] sm:$0xff]
    %v1127 = vld [vmem:[#allocation4 + $0x68] sm:$0xf]
    %v1128 = vld [vmem:[#allocation4 + $0x6c] sm:$0xff]
    %v1129 = vld [vmem:[#allocation4 + $0x74] sm:$0xf]
    %v1130 = vld [vmem:[#allocation4 + $0x78] sm:$0xff]
    %v1131 = vld [vmem:[#allocation4 + $0x80] sm:$0xf]
    %v1132 = vld [vmem:[#allocation4 + $0x84] sm:$0xff]
    %v1133 = vld [vmem:[#allocation4 + $0x8c] sm:$0xf]
    %v1134 = vld [vmem:[#allocation4 + $0x90] sm:$0xff]
    %v1135 = vld [vmem:[#allocation4 + $0x98] sm:$0xf]
    %v1136 = vld [vmem:[#allocation4 + $0x9c] sm:$0xff]
    %v1137 = vld [vmem:[#allocation4 + $0xa4] sm:$0xf]
    %v1138 = vld [vmem:[#allocation4 + $0xa8] sm:$0xff]
    %v1139 = vld [vmem:[#allocation4 + $0xb0] sm:$0xf]
    %v1140 = vld [vmem:[#allocation4 + $0xb4] sm:$0xff]
    %v1141 = vld [vmem:[#allocation4 + $0xbc] sm:$0xf]
    %v1174 = vunpack.c.l.b16 %v1110
    %v1175 = vunpack.c.h.b16 %v1110
    %v1176 = vunpack.c.l.b16 %v1111
    %v1177 = vunpack.c.l.b16 %v1112
    %v1178 = vunpack.c.h.b16 %v1112
    %v1179 = vunpack.c.l.b16 %v1113
    %v1180 = vunpack.c.l.b16 %v1114
    %v1181 = vunpack.c.h.b16 %v1114
    %v1182 = vunpack.c.l.b16 %v1115
    %v1183 = vunpack.c.l.b16 %v1116
    %v1184 = vunpack.c.h.b16 %v1116
    %v1185 = vunpack.c.l.b16 %v1117
    %v1186 = vunpack.c.l.b16 %v1118
    %v1187 = vunpack.c.h.b16 %v1118
    %v1188 = vunpack.c.l.b16 %v1119
    %v1189 = vunpack.c.l.b16 %v1120
    %v1190 = vunpack.c.h.b16 %v1120
    %v1191 = vunpack.c.l.b16 %v1121
    %v1192 = vunpack.c.l.b16 %v1122
    %v1193 = vunpack.c.h.b16 %v1122
    %v1194 = vunpack.c.l.b16 %v1123
    %v1195 = vunpack.c.l.b16 %v1124
    %v1196 = vunpack.c.h.b16 %v1124
    %v1197 = vunpack.c.l.b16 %v1125
    %v1198 = vunpack.c.l.b16 %v1126
    %v1199 = vunpack.c.h.b16 %v1126
    %v1200 = vunpack.c.l.b16 %v1127
    %v1201 = vunpack.c.l.b16 %v1128
    %v1202 = vunpack.c.h.b16 %v1128
    %v1203 = vunpack.c.l.b16 %v1129
    %v1204 = vunpack.c.l.b16 %v1130
    %v1205 = vunpack.c.h.b16 %v1130
    %v1206 = vunpack.c.l.b16 %v1131
    %v1207 = vunpack.c.l.b16 %v1132
    %v1208 = vunpack.c.h.b16 %v1132
    %v1209 = vunpack.c.l.b16 %v1133
    %v1210 = vunpack.c.l.b16 %v1134
    %v1211 = vunpack.c.h.b16 %v1134
    %v1212 = vunpack.c.l.b16 %v1135
    %v1213 = vunpack.c.l.b16 %v1136
    %v1214 = vunpack.c.h.b16 %v1136
    %v1215 = vunpack.c.l.b16 %v1137
    %v1216 = vunpack.c.l.b16 %v1138
    %v1217 = vunpack.c.h.b16 %v1138
    %v1218 = vunpack.c.l.b16 %v1139
    %v1219 = vunpack.c.l.b16 %v1140
    %v1220 = vunpack.c.h.b16 %v1140
    %v1221 = vunpack.c.l.b16 %v1141
    %v1222 = vpack.c.b16 %v1177, %v1174
    %v1223 = vpack.c.b16 %v1178, %v1175
    %v1224 = vpack.c.b16 %v1179, %v1176
    %v1225 = vpack.c.b16 %v1183, %v1180
    %v1226 = vpack.c.b16 %v1184, %v1181
    %v1227 = vpack.c.b16 %v1185, %v1182
    %v1228 = vpack.c.b16 %v1189, %v1186
    %v1229 = vpack.c.b16 %v1190, %v1187
    %v1230 = vpack.c.b16 %v1191, %v1188
    %v1231 = vpack.c.b16 %v1195, %v1192
    %v1232 = vpack.c.b16 %v1196, %v1193
    %v1233 = vpack.c.b16 %v1197, %v1194
    %v1234 = vpack.c.b16 %v1201, %v1198
    %v1235 = vpack.c.b16 %v1202, %v1199
    %v1236 = vpack.c.b16 %v1203, %v1200
    %v1237 = vpack.c.b16 %v1207, %v1204
    %v1238 = vpack.c.b16 %v1208, %v1205
    %v1239 = vpack.c.b16 %v1209, %v1206
    %v1240 = vpack.c.b16 %v1213, %v1210
    %v1241 = vpack.c.b16 %v1214, %v1211
    %v1242 = vpack.c.b16 %v1215, %v1212
    %v1243 = vpack.c.b16 %v1219, %v1216
    %v1244 = vpack.c.b16 %v1220, %v1217
    %v1245 = vpack.c.b16 %v1221, %v1218
    %1270 = vmatprep.subr.bf16.mxu0 %v1223
    %1271 = vmatpush1.bf16.msra.mxu0 %v1222
    %1272 = vmatprep.subr.bf16.mxu0 %v1226
    %1273 = vmatpush1.bf16.msra.mxu0 %v1225
    %1274 = vmatprep.subr.bf16.mxu0 %v1229
    %1275 = vmatpush1.bf16.msra.mxu0 %v1228
    %1276 = vmatprep.subr.bf16.mxu0 %v1232
    %1277 = vmatpush1.bf16.msra.mxu0 %v1231
    %1278 = vmatprep.subr.bf16.mxu0 %v1235
    %1279 = vmatpush1.bf16.msra.mxu0 %v1234
    %1280 = vmatprep.subr.bf16.mxu0 %v1238
    %1281 = vmatpush1.bf16.msra.mxu0 %v1237
    %1282 = vmatprep.subr.bf16.mxu0 %v1241
    %1283 = vmatpush1.bf16.msra.mxu0 %v1240
    %1284 = vmatprep.subr.bf16.mxu0 %v1244
    %1285 = vmatpush1.bf16.msra.mxu0 %v1243
    %1286 = vmatprep.subr.bf16.mxu0 0
    %1287 = vmatpush1.bf16.msra.mxu0 0
    %1288 = vmatprep.subr.bf16.mxu0 0
    %1289 = vmatpush1.bf16.msra.mxu0 0
    %1290 = vmatprep.subr.bf16.mxu0 0
    %1291 = vmatpush1.bf16.msra.mxu0 0
    %1292 = vmatprep.subr.bf16.mxu0 0
    %1293 = vmatpush1.bf16.msra.mxu0 0
    %1294 = vmatprep.subr.bf16.mxu0 0
    %1295 = vmatpush1.bf16.msra.mxu0 0
    %1296 = vmatprep.subr.bf16.mxu0 0
    %1297 = vmatpush1.bf16.msra.mxu0 0
    %1298 = vmatprep.subr.bf16.mxu0 0
    %1299 = vmatpush1.bf16.msra.mxu0 0
    %1300 = vmatprep.subr.bf16.mxu0 0
    %1301 = vmatpush1.bf16.msra.mxu0 0
    %1302 = vmatprep.mubr.bf16.mxu0 0
    %1303 = vmatmul.mubr.bf16.gmra.mrb[0].mxu0 %v1101
    %v1304 = vpop.f32.mrb[0].mxu0
    %v1305 = vadd.f32 0.0, %v1304
    %v1306 = vpop.f32.mrb[0].mxu0
    %v1307 = vadd.f32 0.0, %v1306
    %v1308 = vpop.f32.mrb[0].mxu0
    %v1309 = vpop.f32.mrb[0].mxu0
    %1310 = vdwg.mxu0
    %1311 = vmatprep.subr.bf16.mxu0 0
    %1312 = vmatpush1.bf16.msra.mxu0 %v1224
    %1313 = vmatprep.subr.bf16.mxu0 0
    %1314 = vmatpush1.bf16.msra.mxu0 %v1227
    %1315 = vmatprep.subr.bf16.mxu0 0
    %1316 = vmatpush1.bf16.msra.mxu0 %v1230
    %1317 = vmatprep.subr.bf16.mxu0 0
    %1318 = vmatpush1.bf16.msra.mxu0 %v1233
    %1319 = vmatprep.subr.bf16.mxu0 0
    %1320 = vmatpush1.bf16.msra.mxu0 %v1236
    %1321 = vmatprep.subr.bf16.mxu0 0
    %1322 = vmatpush1.bf16.msra.mxu0 %v1239
    %1323 = vmatprep.subr.bf16.mxu0 0
    %1324 = vmatpush1.bf16.msra.mxu0 %v1242
    %1325 = vmatprep.subr.bf16.mxu0 0
    %1326 = vmatpush1.bf16.msra.mxu0 %v1245
    %1327 = vmatprep.subr.bf16.mxu0 0
    %1328 = vmatpush1.bf16.msra.mxu0 0
    %1329 = vmatprep.subr.bf16.mxu0 0
    %1330 = vmatpush1.bf16.msra.mxu0 0
    %1331 = vmatprep.subr.bf16.mxu0 0
    %1332 = vmatpush1.bf16.msra.mxu0 0
    %1333 = vmatprep.subr.bf16.mxu0 0
    %1334 = vmatpush1.bf16.msra.mxu0 0
    %1335 = vmatprep.subr.bf16.mxu0 0
    %1336 = vmatpush1.bf16.msra.mxu0 0
    %1337 = vmatprep.subr.bf16.mxu0 0
    %1338 = vmatpush1.bf16.msra.mxu0 0
    %1339 = vmatprep.subr.bf16.mxu0 0
    %1340 = vmatpush1.bf16.msra.mxu0 0
    %1341 = vmatprep.subr.bf16.mxu0 0
    %1342 = vmatpush1.bf16.msra.mxu0 0
    %1343 = vmatprep.mubr.bf16.mxu0 0
    %1344 = vmatmul.mubr.bf16.gmra.mrb[0].mxu0 %v1101
    %v1345 = vpop.f32.mrb[0].mxu0
    %v1346 = vadd.f32 0.0, %v1345
    %v1347 = vpop.f32.mrb[0].mxu0
    %v1348 = vpop.f32.mrb[0].mxu0
    %v1349 = vpop.f32.mrb[0].mxu0
    %1350 = vdwg.mxu0
    %v1351 = vadd.f32 %v1107, %v1305
    %v1352 = vxor.u32 %v1351, 2147483648
    %v1353 = vmul.f32 %v1352, 1.442695
    %v1354 = vpow.pop %v1353
    %v1355 = vadd.f32 %v1354, 1.0
    %v1356 = vrcp.pop %v1355
    %v1357 = vmul.f32 1.0, %v1356
    %v1358 = vadd.f32 %v1108, %v1307
    %v1359 = vxor.u32 %v1358, 2147483648
    %v1360 = vmul.f32 %v1359, 1.442695
    %v1361 = vpow.pop %v1360
    %v1362 = vadd.f32 %v1361, 1.0
    %v1363 = vrcp.pop %v1362
    %v1364 = vmul.f32 1.0, %v1363
    %v1365 = vadd.f32 %v1346, %v285
    %v1366 = vmul.f32 %v1357, %v1365
    %v1367 = vadd.f32 %v1109, %v1366
    %v1368 = vtanh.pop %v1367
    %v1369 = vsub.f32 1.0, %v1364
    %v1370 = vmul.f32 %v1369, %v1368
    %v1371 = vmul.f32 %v1364, %v1100
    %v1372 = vadd.f32 %v1370, %v1371
    %v1373 = vpack.c.bf16 %v1372, %v1372
    %s1374 = scalar_lea.vmem %s5, 12
    %1375 = vst [vmem:[%s1374] sm:$0xf] %v1373
    %s1376 = smul.u32 4, 3
    %s1377 = smul.addr %s1376, 8
    %s1378 = scalar_lea.vmem [#allocation3], %s1377
    %v1379 = vld [vmem:[%s1378] sm:$0xff]
    %v1380 = vld [vmem:[%s1378 + $0x8] sm:$0xff]
    %v1381 = vld [vmem:[%s1378 + $0x10] sm:$0xff]
    %v1382 = vld [vmem:[#allocation4] sm:$0xff]
    %v1383 = vld [vmem:[#allocation4 + $0x8] sm:$0xf]
    %v1384 = vld [vmem:[#allocation4 + $0xc] sm:$0xff]
    %v1385 = vld [vmem:[#allocation4 + $0x14] sm:$0xf]
    %v1386 = vld [vmem:[#allocation4 + $0x18] sm:$0xff]
    %v1387 = vld [vmem:[#allocation4 + $0x20] sm:$0xf]
    %v1388 = vld [vmem:[#allocation4 + $0x24] sm:$0xff]
    %v1389 = vld [vmem:[#allocation4 + $0x2c] sm:$0xf]
    %v1390 = vld [vmem:[#allocation4 + $0x30] sm:$0xff]
    %v1391 = vld [vmem:[#allocation4 + $0x38] sm:$0xf]
    %v1392 = vld [vmem:[#allocation4 + $0x3c] sm:$0xff]
    %v1393 = vld [vmem:[#allocation4 + $0x44] sm:$0xf]
    %v1394 = vld [vmem:[#allocation4 + $0x48] sm:$0xff]
    %v1395 = vld [vmem:[#allocation4 + $0x50] sm:$0xf]
    %v1396 = vld [vmem:[#allocation4 + $0x54] sm:$0xff]
    %v1397 = vld [vmem:[#allocation4 + $0x5c] sm:$0xf]
    %v1398 = vld [vmem:[#allocation4 + $0x60] sm:$0xff]
    %v1399 = vld [vmem:[#allocation4 + $0x68] sm:$0xf]
    %v1400 = vld [vmem:[#allocation4 + $0x6c] sm:$0xff]
    %v1401 = vld [vmem:[#allocation4 + $0x74] sm:$0xf]
    %v1402 = vld [vmem:[#allocation4 + $0x78] sm:$0xff]
    %v1403 = vld [vmem:[#allocation4 + $0x80] sm:$0xf]
    %v1404 = vld [vmem:[#allocation4 + $0x84] sm:$0xff]
    %v1405 = vld [vmem:[#allocation4 + $0x8c] sm:$0xf]
    %v1406 = vld [vmem:[#allocation4 + $0x90] sm:$0xff]
    %v1407 = vld [vmem:[#allocation4 + $0x98] sm:$0xf]
    %v1408 = vld [vmem:[#allocation4 + $0x9c] sm:$0xff]
    %v1409 = vld [vmem:[#allocation4 + $0xa4] sm:$0xf]
    %v1410 = vld [vmem:[#allocation4 + $0xa8] sm:$0xff]
    %v1411 = vld [vmem:[#allocation4 + $0xb0] sm:$0xf]
    %v1412 = vld [vmem:[#allocation4 + $0xb4] sm:$0xff]
    %v1413 = vld [vmem:[#allocation4 + $0xbc] sm:$0xf]
    %v1446 = vunpack.c.l.b16 %v1382
    %v1447 = vunpack.c.h.b16 %v1382
    %v1448 = vunpack.c.l.b16 %v1383
    %v1449 = vunpack.c.l.b16 %v1384
    %v1450 = vunpack.c.h.b16 %v1384
    %v1451 = vunpack.c.l.b16 %v1385
    %v1452 = vunpack.c.l.b16 %v1386
    %v1453 = vunpack.c.h.b16 %v1386
    %v1454 = vunpack.c.l.b16 %v1387
    %v1455 = vunpack.c.l.b16 %v1388
    %v1456 = vunpack.c.h.b16 %v1388
    %v1457 = vunpack.c.l.b16 %v1389
    %v1458 = vunpack.c.l.b16 %v1390
    %v1459 = vunpack.c.h.b16 %v1390
    %v1460 = vunpack.c.l.b16 %v1391
    %v1461 = vunpack.c.l.b16 %v1392
    %v1462 = vunpack.c.h.b16 %v1392
    %v1463 = vunpack.c.l.b16 %v1393
    %v1464 = vunpack.c.l.b16 %v1394
    %v1465 = vunpack.c.h.b16 %v1394
    %v1466 = vunpack.c.l.b16 %v1395
    %v1467 = vunpack.c.l.b16 %v1396
    %v1468 = vunpack.c.h.b16 %v1396
    %v1469 = vunpack.c.l.b16 %v1397
    %v1470 = vunpack.c.l.b16 %v1398
    %v1471 = vunpack.c.h.b16 %v1398
    %v1472 = vunpack.c.l.b16 %v1399
    %v1473 = vunpack.c.l.b16 %v1400
    %v1474 = vunpack.c.h.b16 %v1400
    %v1475 = vunpack.c.l.b16 %v1401
    %v1476 = vunpack.c.l.b16 %v1402
    %v1477 = vunpack.c.h.b16 %v1402
    %v1478 = vunpack.c.l.b16 %v1403
    %v1479 = vunpack.c.l.b16 %v1404
    %v1480 = vunpack.c.h.b16 %v1404
    %v1481 = vunpack.c.l.b16 %v1405
    %v1482 = vunpack.c.l.b16 %v1406
    %v1483 = vunpack.c.h.b16 %v1406
    %v1484 = vunpack.c.l.b16 %v1407
    %v1485 = vunpack.c.l.b16 %v1408
    %v1486 = vunpack.c.h.b16 %v1408
    %v1487 = vunpack.c.l.b16 %v1409
    %v1488 = vunpack.c.l.b16 %v1410
    %v1489 = vunpack.c.h.b16 %v1410
    %v1490 = vunpack.c.l.b16 %v1411
    %v1491 = vunpack.c.l.b16 %v1412
    %v1492 = vunpack.c.h.b16 %v1412
    %v1493 = vunpack.c.l.b16 %v1413
    %v1494 = vpack.c.b16 %v1449, %v1446
    %v1495 = vpack.c.b16 %v1450, %v1447
    %v1496 = vpack.c.b16 %v1451, %v1448
    %v1497 = vpack.c.b16 %v1455, %v1452
    %v1498 = vpack.c.b16 %v1456, %v1453
    %v1499 = vpack.c.b16 %v1457, %v1454
    %v1500 = vpack.c.b16 %v1461, %v1458
    %v1501 = vpack.c.b16 %v1462, %v1459
    %v1502 = vpack.c.b16 %v1463, %v1460
    %v1503 = vpack.c.b16 %v1467, %v1464
    %v1504 = vpack.c.b16 %v1468, %v1465
    %v1505 = vpack.c.b16 %v1469, %v1466
    %v1506 = vpack.c.b16 %v1473, %v1470
    %v1507 = vpack.c.b16 %v1474, %v1471
    %v1508 = vpack.c.b16 %v1475, %v1472
    %v1509 = vpack.c.b16 %v1479, %v1476
    %v1510 = vpack.c.b16 %v1480, %v1477
    %v1511 = vpack.c.b16 %v1481, %v1478
    %v1512 = vpack.c.b16 %v1485, %v1482
    %v1513 = vpack.c.b16 %v1486, %v1483
    %v1514 = vpack.c.b16 %v1487, %v1484
    %v1515 = vpack.c.b16 %v1491, %v1488
    %v1516 = vpack.c.b16 %v1492, %v1489
    %v1517 = vpack.c.b16 %v1493, %v1490
    %1542 = vmatprep.subr.bf16.mxu0 %v1495
    %1543 = vmatpush1.bf16.msra.mxu0 %v1494
    %1544 = vmatprep.subr.bf16.mxu0 %v1498
    %1545 = vmatpush1.bf16.msra.mxu0 %v1497
    %1546 = vmatprep.subr.bf16.mxu0 %v1501
    %1547 = vmatpush1.bf16.msra.mxu0 %v1500
    %1548 = vmatprep.subr.bf16.mxu0 %v1504
    %1549 = vmatpush1.bf16.msra.mxu0 %v1503
    %1550 = vmatprep.subr.bf16.mxu0 %v1507
    %1551 = vmatpush1.bf16.msra.mxu0 %v1506
    %1552 = vmatprep.subr.bf16.mxu0 %v1510
    %1553 = vmatpush1.bf16.msra.mxu0 %v1509
    %1554 = vmatprep.subr.bf16.mxu0 %v1513
    %1555 = vmatpush1.bf16.msra.mxu0 %v1512
    %1556 = vmatprep.subr.bf16.mxu0 %v1516
    %1557 = vmatpush1.bf16.msra.mxu0 %v1515
    %1558 = vmatprep.subr.bf16.mxu0 0
    %1559 = vmatpush1.bf16.msra.mxu0 0
    %1560 = vmatprep.subr.bf16.mxu0 0
    %1561 = vmatpush1.bf16.msra.mxu0 0
    %1562 = vmatprep.subr.bf16.mxu0 0
    %1563 = vmatpush1.bf16.msra.mxu0 0
    %1564 = vmatprep.subr.bf16.mxu0 0
    %1565 = vmatpush1.bf16.msra.mxu0 0
    %1566 = vmatprep.subr.bf16.mxu0 0
    %1567 = vmatpush1.bf16.msra.mxu0 0
    %1568 = vmatprep.subr.bf16.mxu0 0
    %1569 = vmatpush1.bf16.msra.mxu0 0
    %1570 = vmatprep.subr.bf16.mxu0 0
    %1571 = vmatpush1.bf16.msra.mxu0 0
    %1572 = vmatprep.subr.bf16.mxu0 0
    %1573 = vmatpush1.bf16.msra.mxu0 0
    %1574 = vmatprep.mubr.bf16.mxu0 0
    %1575 = vmatmul.mubr.bf16.gmra.mrb[0].mxu0 %v1373
    %v1576 = vpop.f32.mrb[0].mxu0
    %v1577 = vadd.f32 0.0, %v1576
    %v1578 = vpop.f32.mrb[0].mxu0
    %v1579 = vadd.f32 0.0, %v1578
    %v1580 = vpop.f32.mrb[0].mxu0
    %v1581 = vpop.f32.mrb[0].mxu0
    %1582 = vdwg.mxu0
    %1583 = vmatprep.subr.bf16.mxu0 0
    %1584 = vmatpush1.bf16.msra.mxu0 %v1496
    %1585 = vmatprep.subr.bf16.mxu0 0
    %1586 = vmatpush1.bf16.msra.mxu0 %v1499
    %1587 = vmatprep.subr.bf16.mxu0 0
    %1588 = vmatpush1.bf16.msra.mxu0 %v1502
    %1589 = vmatprep.subr.bf16.mxu0 0
    %1590 = vmatpush1.bf16.msra.mxu0 %v1505
    %1591 = vmatprep.subr.bf16.mxu0 0
    %1592 = vmatpush1.bf16.msra.mxu0 %v1508
    %1593 = vmatprep.subr.bf16.mxu0 0
    %1594 = vmatpush1.bf16.msra.mxu0 %v1511
    %1595 = vmatprep.subr.bf16.mxu0 0
    %1596 = vmatpush1.bf16.msra.mxu0 %v1514
    %1597 = vmatprep.subr.bf16.mxu0 0
    %1598 = vmatpush1.bf16.msra.mxu0 %v1517
    %1599 = vmatprep.subr.bf16.mxu0 0
    %1600 = vmatpush1.bf16.msra.mxu0 0
    %1601 = vmatprep.subr.bf16.mxu0 0
    %1602 = vmatpush1.bf16.msra.mxu0 0
    %1603 = vmatprep.subr.bf16.mxu0 0
    %1604 = vmatpush1.bf16.msra.mxu0 0
    %1605 = vmatprep.subr.bf16.mxu0 0
    %1606 = vmatpush1.bf16.msra.mxu0 0
    %1607 = vmatprep.subr.bf16.mxu0 0
    %1608 = vmatpush1.bf16.msra.mxu0 0
    %1609 = vmatprep.subr.bf16.mxu0 0
    %1610 = vmatpush1.bf16.msra.mxu0 0
    %1611 = vmatprep.subr.bf16.mxu0 0
    %1612 = vmatpush1.bf16.msra.mxu0 0
    %1613 = vmatprep.subr.bf16.mxu0 0
    %1614 = vmatpush1.bf16.msra.mxu0 0
    %1615 = vmatprep.mubr.bf16.mxu0 0
    %1616 = vmatmul.mubr.bf16.gmra.mrb[0].mxu0 %v1373
    %v1617 = vpop.f32.mrb[0].mxu0
    %v1618 = vadd.f32 0.0, %v1617
    %v1619 = vpop.f32.mrb[0].mxu0
    %v1620 = vpop.f32.mrb[0].mxu0
    %v1621 = vpop.f32.mrb[0].mxu0
    %1622 = vdwg.mxu0
    %v1623 = vadd.f32 %v1379, %v1577
    %v1624 = vxor.u32 %v1623, 2147483648
    %v1625 = vmul.f32 %v1624, 1.442695
    %v1626 = vpow.pop %v1625
    %v1627 = vadd.f32 %v1626, 1.0
    %v1628 = vrcp.pop %v1627
    %v1629 = vmul.f32 1.0, %v1628
    %v1630 = vadd.f32 %v1380, %v1579
    %v1631 = vxor.u32 %v1630, 2147483648
    %v1632 = vmul.f32 %v1631, 1.442695
    %v1633 = vpow.pop %v1632
    %v1634 = vadd.f32 %v1633, 1.0
    %v1635 = vrcp.pop %v1634
    %v1636 = vmul.f32 1.0, %v1635
    %v1637 = vadd.f32 %v1618, %v285
    %v1638 = vmul.f32 %v1629, %v1637
    %v1639 = vadd.f32 %v1381, %v1638
    %v1640 = vtanh.pop %v1639
    %v1641 = vsub.f32 1.0, %v1636
    %v1642 = vmul.f32 %v1641, %v1640
    %v1643 = vmul.f32 %v1636, %v1372
    %v1644 = vadd.f32 %v1642, %v1643
    %v1645 = vpack.c.bf16 %v1644, %v1644
    %s1646 = scalar_lea.vmem %s5, 16
    %1647 = vst [vmem:[%s1646] sm:$0xf] %v1645
    %s1648 = smul.u32 5, 3
    %s1649 = smul.addr %s1648, 8
    %s1650 = scalar_lea.vmem [#allocation3], %s1649
    %v1651 = vld [vmem:[%s1650] sm:$0xff]
    %v1652 = vld [vmem:[%s1650 + $0x8] sm:$0xff]
    %v1653 = vld [vmem:[%s1650 + $0x10] sm:$0xff]
    %v1654 = vld [vmem:[#allocation4] sm:$0xff]
    %v1655 = vld [vmem:[#allocation4 + $0x8] sm:$0xf]
    %v1656 = vld [vmem:[#allocation4 + $0xc] sm:$0xff]
    %v1657 = vld [vmem:[#allocation4 + $0x14] sm:$0xf]
    %v1658 = vld [vmem:[#allocation4 + $0x18] sm:$0xff]
    %v1659 = vld [vmem:[#allocation4 + $0x20] sm:$0xf]
    %v1660 = vld [vmem:[#allocation4 + $0x24] sm:$0xff]
    %v1661 = vld [vmem:[#allocation4 + $0x2c] sm:$0xf]
    %v1662 = vld [vmem:[#allocation4 + $0x30] sm:$0xff]
    %v1663 = vld [vmem:[#allocation4 + $0x38] sm:$0xf]
    %v1664 = vld [vmem:[#allocation4 + $0x3c] sm:$0xff]
    %v1665 = vld [vmem:[#allocation4 + $0x44] sm:$0xf]
    %v1666 = vld [vmem:[#allocation4 + $0x48] sm:$0xff]
    %v1667 = vld [vmem:[#allocation4 + $0x50] sm:$0xf]
    %v1668 = vld [vmem:[#allocation4 + $0x54] sm:$0xff]
    %v1669 = vld [vmem:[#allocation4 + $0x5c] sm:$0xf]
    %v1670 = vld [vmem:[#allocation4 + $0x60] sm:$0xff]
    %v1671 = vld [vmem:[#allocation4 + $0x68] sm:$0xf]
    %v1672 = vld [vmem:[#allocation4 + $0x6c] sm:$0xff]
    %v1673 = vld [vmem:[#allocation4 + $0x74] sm:$0xf]
    %v1674 = vld [vmem:[#allocation4 + $0x78] sm:$0xff]
    %v1675 = vld [vmem:[#allocation4 + $0x80] sm:$0xf]
    %v1676 = vld [vmem:[#allocation4 + $0x84] sm:$0xff]
    %v1677 = vld [vmem:[#allocation4 + $0x8c] sm:$0xf]
    %v1678 = vld [vmem:[#allocation4 + $0x90] sm:$0xff]
    %v1679 = vld [vmem:[#allocation4 + $0x98] sm:$0xf]
    %v1680 = vld [vmem:[#allocation4 + $0x9c] sm:$0xff]
    %v1681 = vld [vmem:[#allocation4 + $0xa4] sm:$0xf]
    %v1682 = vld [vmem:[#allocation4 + $0xa8] sm:$0xff]
    %v1683 = vld [vmem:[#allocation4 + $0xb0] sm:$0xf]
    %v1684 = vld [vmem:[#allocation4 + $0xb4] sm:$0xff]
    %v1685 = vld [vmem:[#allocation4 + $0xbc] sm:$0xf]
    %v1718 = vunpack.c.l.b16 %v1654
    %v1719 = vunpack.c.h.b16 %v1654
    %v1720 = vunpack.c.l.b16 %v1655
    %v1721 = vunpack.c.l.b16 %v1656
    %v1722 = vunpack.c.h.b16 %v1656
    %v1723 = vunpack.c.l.b16 %v1657
    %v1724 = vunpack.c.l.b16 %v1658
    %v1725 = vunpack.c.h.b16 %v1658
    %v1726 = vunpack.c.l.b16 %v1659
    %v1727 = vunpack.c.l.b16 %v1660
    %v1728 = vunpack.c.h.b16 %v1660
    %v1729 = vunpack.c.l.b16 %v1661
    %v1730 = vunpack.c.l.b16 %v1662
    %v1731 = vunpack.c.h.b16 %v1662
    %v1732 = vunpack.c.l.b16 %v1663
    %v1733 = vunpack.c.l.b16 %v1664
    %v1734 = vunpack.c.h.b16 %v1664
    %v1735 = vunpack.c.l.b16 %v1665
    %v1736 = vunpack.c.l.b16 %v1666
    %v1737 = vunpack.c.h.b16 %v1666
    %v1738 = vunpack.c.l.b16 %v1667
    %v1739 = vunpack.c.l.b16 %v1668
    %v1740 = vunpack.c.h.b16 %v1668
    %v1741 = vunpack.c.l.b16 %v1669
    %v1742 = vunpack.c.l.b16 %v1670
    %v1743 = vunpack.c.h.b16 %v1670
    %v1744 = vunpack.c.l.b16 %v1671
    %v1745 = vunpack.c.l.b16 %v1672
    %v1746 = vunpack.c.h.b16 %v1672
    %v1747 = vunpack.c.l.b16 %v1673
    %v1748 = vunpack.c.l.b16 %v1674
    %v1749 = vunpack.c.h.b16 %v1674
    %v1750 = vunpack.c.l.b16 %v1675
    %v1751 = vunpack.c.l.b16 %v1676
    %v1752 = vunpack.c.h.b16 %v1676
    %v1753 = vunpack.c.l.b16 %v1677
    %v1754 = vunpack.c.l.b16 %v1678
    %v1755 = vunpack.c.h.b16 %v1678
    %v1756 = vunpack.c.l.b16 %v1679
    %v1757 = vunpack.c.l.b16 %v1680
    %v1758 = vunpack.c.h.b16 %v1680
    %v1759 = vunpack.c.l.b16 %v1681
    %v1760 = vunpack.c.l.b16 %v1682
    %v1761 = vunpack.c.h.b16 %v1682
    %v1762 = vunpack.c.l.b16 %v1683
    %v1763 = vunpack.c.l.b16 %v1684
    %v1764 = vunpack.c.h.b16 %v1684
    %v1765 = vunpack.c.l.b16 %v1685
    %v1766 = vpack.c.b16 %v1721, %v1718
    %v1767 = vpack.c.b16 %v1722, %v1719
    %v1768 = vpack.c.b16 %v1723, %v1720
    %v1769 = vpack.c.b16 %v1727, %v1724
    %v1770 = vpack.c.b16 %v1728, %v1725
    %v1771 = vpack.c.b16 %v1729, %v1726
    %v1772 = vpack.c.b16 %v1733, %v1730
    %v1773 = vpack.c.b16 %v1734, %v1731
    %v1774 = vpack.c.b16 %v1735, %v1732
    %v1775 = vpack.c.b16 %v1739, %v1736
    %v1776 = vpack.c.b16 %v1740, %v1737
    %v1777 = vpack.c.b16 %v1741, %v1738
    %v1778 = vpack.c.b16 %v1745, %v1742
    %v1779 = vpack.c.b16 %v1746, %v1743
    %v1780 = vpack.c.b16 %v1747, %v1744
    %v1781 = vpack.c.b16 %v1751, %v1748
    %v1782 = vpack.c.b16 %v1752, %v1749
    %v1783 = vpack.c.b16 %v1753, %v1750
    %v1784 = vpack.c.b16 %v1757, %v1754
    %v1785 = vpack.c.b16 %v1758, %v1755
    %v1786 = vpack.c.b16 %v1759, %v1756
    %v1787 = vpack.c.b16 %v1763, %v1760
    %v1788 = vpack.c.b16 %v1764, %v1761
    %v1789 = vpack.c.b16 %v1765, %v1762
    %1814 = vmatprep.subr.bf16.mxu0 %v1767
    %1815 = vmatpush1.bf16.msra.mxu0 %v1766
    %1816 = vmatprep.subr.bf16.mxu0 %v1770
    %1817 = vmatpush1.bf16.msra.mxu0 %v1769
    %1818 = vmatprep.subr.bf16.mxu0 %v1773
    %1819 = vmatpush1.bf16.msra.mxu0 %v1772
    %1820 = vmatprep.subr.bf16.mxu0 %v1776
    %1821 = vmatpush1.bf16.msra.mxu0 %v1775
    %1822 = vmatprep.subr.bf16.mxu0 %v1779
    %1823 = vmatpush1.bf16.msra.mxu0 %v1778
    %1824 = vmatprep.subr.bf16.mxu0 %v1782
    %1825 = vmatpush1.bf16.msra.mxu0 %v1781
    %1826 = vmatprep.subr.bf16.mxu0 %v1785
    %1827 = vmatpush1.bf16.msra.mxu0 %v1784
    %1828 = vmatprep.subr.bf16.mxu0 %v1788
    %1829 = vmatpush1.bf16.msra.mxu0 %v1787
    %1830 = vmatprep.subr.bf16.mxu0 0
    %1831 = vmatpush1.bf16.msra.mxu0 0
    %1832 = vmatprep.subr.bf16.mxu0 0
    %1833 = vmatpush1.bf16.msra.mxu0 0
    %1834 = vmatprep.subr.bf16.mxu0 0
    %1835 = vmatpush1.bf16.msra.mxu0 0
    %1836 = vmatprep.subr.bf16.mxu0 0
    %1837 = vmatpush1.bf16.msra.mxu0 0
    %1838 = vmatprep.subr.bf16.mxu0 0
    %1839 = vmatpush1.bf16.msra.mxu0 0
    %1840 = vmatprep.subr.bf16.mxu0 0
    %1841 = vmatpush1.bf16.msra.mxu0 0
    %1842 = vmatprep.subr.bf16.mxu0 0
    %1843 = vmatpush1.bf16.msra.mxu0 0
    %1844 = vmatprep.subr.bf16.mxu0 0
    %1845 = vmatpush1.bf16.msra.mxu0 0
    %1846 = vmatprep.mubr.bf16.mxu0 0
    %1847 = vmatmul.mubr.bf16.gmra.mrb[0].mxu0 %v1645
    %v1848 = vpop.f32.mrb[0].mxu0
    %v1849 = vadd.f32 0.0, %v1848
    %v1850 = vpop.f32.mrb[0].mxu0
    %v1851 = vadd.f32 0.0, %v1850
    %v1852 = vpop.f32.mrb[0].mxu0
    %v1853 = vpop.f32.mrb[0].mxu0
    %1854 = vdwg.mxu0
    %1855 = vmatprep.subr.bf16.mxu0 0
    %1856 = vmatpush1.bf16.msra.mxu0 %v1768
    %1857 = vmatprep.subr.bf16.mxu0 0
    %1858 = vmatpush1.bf16.msra.mxu0 %v1771
    %1859 = vmatprep.subr.bf16.mxu0 0
    %1860 = vmatpush1.bf16.msra.mxu0 %v1774
    %1861 = vmatprep.subr.bf16.mxu0 0
    %1862 = vmatpush1.bf16.msra.mxu0 %v1777
    %1863 = vmatprep.subr.bf16.mxu0 0
    %1864 = vmatpush1.bf16.msra.mxu0 %v1780
    %1865 = vmatprep.subr.bf16.mxu0 0
    %1866 = vmatpush1.bf16.msra.mxu0 %v1783
    %1867 = vmatprep.subr.bf16.mxu0 0
    %1868 = vmatpush1.bf16.msra.mxu0 %v1786
    %1869 = vmatprep.subr.bf16.mxu0 0
    %1870 = vmatpush1.bf16.msra.mxu0 %v1789
    %1871 = vmatprep.subr.bf16.mxu0 0
    %1872 = vmatpush1.bf16.msra.mxu0 0
    %1873 = vmatprep.subr.bf16.mxu0 0
    %1874 = vmatpush1.bf16.msra.mxu0 0
    %1875 = vmatprep.subr.bf16.mxu0 0
    %1876 = vmatpush1.bf16.msra.mxu0 0
    %1877 = vmatprep.subr.bf16.mxu0 0
    %1878 = vmatpush1.bf16.msra.mxu0 0
    %1879 = vmatprep.subr.bf16.mxu0 0
    %1880 = vmatpush1.bf16.msra.mxu0 0
    %1881 = vmatprep.subr.bf16.mxu0 0
    %1882 = vmatpush1.bf16.msra.mxu0 0
    %1883 = vmatprep.subr.bf16.mxu0 0
    %1884 = vmatpush1.bf16.msra.mxu0 0
    %1885 = vmatprep.subr.bf16.mxu0 0
    %1886 = vmatpush1.bf16.msra.mxu0 0
    %1887 = vmatprep.mubr.bf16.mxu0 0
    %1888 = vmatmul.mubr.bf16.gmra.mrb[0].mxu0 %v1645
    %v1889 = vpop.f32.mrb[0].mxu0
    %v1890 = vadd.f32 0.0, %v1889
    %v1891 = vpop.f32.mrb[0].mxu0
    %v1892 = vpop.f32.mrb[0].mxu0
    %v1893 = vpop.f32.mrb[0].mxu0
    %1894 = vdwg.mxu0
    %v1895 = vadd.f32 %v1651, %v1849
    %v1896 = vxor.u32 %v1895, 2147483648
    %v1897 = vmul.f32 %v1896, 1.442695
    %v1898 = vpow.pop %v1897
    %v1899 = vadd.f32 %v1898, 1.0
    %v1900 = vrcp.pop %v1899
    %v1901 = vmul.f32 1.0, %v1900
    %v1902 = vadd.f32 %v1652, %v1851
    %v1903 = vxor.u32 %v1902, 2147483648
    %v1904 = vmul.f32 %v1903, 1.442695
    %v1905 = vpow.pop %v1904
    %v1906 = vadd.f32 %v1905, 1.0
    %v1907 = vrcp.pop %v1906
    %v1908 = vmul.f32 1.0, %v1907
    %v1909 = vadd.f32 %v1890, %v285
    %v1910 = vmul.f32 %v1901, %v1909
    %v1911 = vadd.f32 %v1653, %v1910
    %v1912 = vtanh.pop %v1911
    %v1913 = vsub.f32 1.0, %v1908
    %v1914 = vmul.f32 %v1913, %v1912
    %v1915 = vmul.f32 %v1908, %v1644
    %v1916 = vadd.f32 %v1914, %v1915
    %v1917 = vpack.c.bf16 %v1916, %v1916
    %s1918 = scalar_lea.vmem %s5, 20
    %1919 = vst [vmem:[%s1918] sm:$0xf] %v1917
    %s1920 = smul.u32 6, 3
    %s1921 = smul.addr %s1920, 8
    %s1922 = scalar_lea.vmem [#allocation3], %s1921
    %v1923 = vld [vmem:[%s1922] sm:$0xff]
    %v1924 = vld [vmem:[%s1922 + $0x8] sm:$0xff]
    %v1925 = vld [vmem:[%s1922 + $0x10] sm:$0xff]
    %v1926 = vld [vmem:[#allocation4] sm:$0xff]
    %v1927 = vld [vmem:[#allocation4 + $0x8] sm:$0xf]
    %v1928 = vld [vmem:[#allocation4 + $0xc] sm:$0xff]
    %v1929 = vld [vmem:[#allocation4 + $0x14] sm:$0xf]
    %v1930 = vld [vmem:[#allocation4 + $0x18] sm:$0xff]
    %v1931 = vld [vmem:[#allocation4 + $0x20] sm:$0xf]
    %v1932 = vld [vmem:[#allocation4 + $0x24] sm:$0xff]
    %v1933 = vld [vmem:[#allocation4 + $0x2c] sm:$0xf]
    %v1934 = vld [vmem:[#allocation4 + $0x30] sm:$0xff]
    %v1935 = vld [vmem:[#allocation4 + $0x38] sm:$0xf]
    %v1936 = vld [vmem:[#allocation4 + $0x3c] sm:$0xff]
    %v1937 = vld [vmem:[#allocation4 + $0x44] sm:$0xf]
    %v1938 = vld [vmem:[#allocation4 + $0x48] sm:$0xff]
    %v1939 = vld [vmem:[#allocation4 + $0x50] sm:$0xf]
    %v1940 = vld [vmem:[#allocation4 + $0x54] sm:$0xff]
    %v1941 = vld [vmem:[#allocation4 + $0x5c] sm:$0xf]
    %v1942 = vld [vmem:[#allocation4 + $0x60] sm:$0xff]
    %v1943 = vld [vmem:[#allocation4 + $0x68] sm:$0xf]
    %v1944 = vld [vmem:[#allocation4 + $0x6c] sm:$0xff]
    %v1945 = vld [vmem:[#allocation4 + $0x74] sm:$0xf]
    %v1946 = vld [vmem:[#allocation4 + $0x78] sm:$0xff]
    %v1947 = vld [vmem:[#allocation4 + $0x80] sm:$0xf]
    %v1948 = vld [vmem:[#allocation4 + $0x84] sm:$0xff]
    %v1949 = vld [vmem:[#allocation4 + $0x8c] sm:$0xf]
    %v1950 = vld [vmem:[#allocation4 + $0x90] sm:$0xff]
    %v1951 = vld [vmem:[#allocation4 + $0x98] sm:$0xf]
    %v1952 = vld [vmem:[#allocation4 + $0x9c] sm:$0xff]
    %v1953 = vld [vmem:[#allocation4 + $0xa4] sm:$0xf]
    %v1954 = vld [vmem:[#allocation4 + $0xa8] sm:$0xff]
    %v1955 = vld [vmem:[#allocation4 + $0xb0] sm:$0xf]
    %v1956 = vld [vmem:[#allocation4 + $0xb4] sm:$0xff]
    %v1957 = vld [vmem:[#allocation4 + $0xbc] sm:$0xf]
    %v1990 = vunpack.c.l.b16 %v1926
    %v1991 = vunpack.c.h.b16 %v1926
    %v1992 = vunpack.c.l.b16 %v1927
    %v1993 = vunpack.c.l.b16 %v1928
    %v1994 = vunpack.c.h.b16 %v1928
    %v1995 = vunpack.c.l.b16 %v1929
    %v1996 = vunpack.c.l.b16 %v1930
    %v1997 = vunpack.c.h.b16 %v1930
    %v1998 = vunpack.c.l.b16 %v1931
    %v1999 = vunpack.c.l.b16 %v1932
    %v2000 = vunpack.c.h.b16 %v1932
    %v2001 = vunpack.c.l.b16 %v1933
    %v2002 = vunpack.c.l.b16 %v1934
    %v2003 = vunpack.c.h.b16 %v1934
    %v2004 = vunpack.c.l.b16 %v1935
    %v2005 = vunpack.c.l.b16 %v1936
    %v2006 = vunpack.c.h.b16 %v1936
    %v2007 = vunpack.c.l.b16 %v1937
    %v2008 = vunpack.c.l.b16 %v1938
    %v2009 = vunpack.c.h.b16 %v1938
    %v2010 = vunpack.c.l.b16 %v1939
    %v2011 = vunpack.c.l.b16 %v1940
    %v2012 = vunpack.c.h.b16 %v1940
    %v2013 = vunpack.c.l.b16 %v1941
    %v2014 = vunpack.c.l.b16 %v1942
    %v2015 = vunpack.c.h.b16 %v1942
    %v2016 = vunpack.c.l.b16 %v1943
    %v2017 = vunpack.c.l.b16 %v1944
    %v2018 = vunpack.c.h.b16 %v1944
    %v2019 = vunpack.c.l.b16 %v1945
    %v2020 = vunpack.c.l.b16 %v1946
    %v2021 = vunpack.c.h.b16 %v1946
    %v2022 = vunpack.c.l.b16 %v1947
    %v2023 = vunpack.c.l.b16 %v1948
    %v2024 = vunpack.c.h.b16 %v1948
    %v2025 = vunpack.c.l.b16 %v1949
    %v2026 = vunpack.c.l.b16 %v1950
    %v2027 = vunpack.c.h.b16 %v1950
    %v2028 = vunpack.c.l.b16 %v1951
    %v2029 = vunpack.c.l.b16 %v1952
    %v2030 = vunpack.c.h.b16 %v1952
    %v2031 = vunpack.c.l.b16 %v1953
    %v2032 = vunpack.c.l.b16 %v1954
    %v2033 = vunpack.c.h.b16 %v1954
    %v2034 = vunpack.c.l.b16 %v1955
    %v2035 = vunpack.c.l.b16 %v1956
    %v2036 = vunpack.c.h.b16 %v1956
    %v2037 = vunpack.c.l.b16 %v1957
    %v2038 = vpack.c.b16 %v1993, %v1990
    %v2039 = vpack.c.b16 %v1994, %v1991
    %v2040 = vpack.c.b16 %v1995, %v1992
    %v2041 = vpack.c.b16 %v1999, %v1996
    %v2042 = vpack.c.b16 %v2000, %v1997
    %v2043 = vpack.c.b16 %v2001, %v1998
    %v2044 = vpack.c.b16 %v2005, %v2002
    %v2045 = vpack.c.b16 %v2006, %v2003
    %v2046 = vpack.c.b16 %v2007, %v2004
    %v2047 = vpack.c.b16 %v2011, %v2008
    %v2048 = vpack.c.b16 %v2012, %v2009
    %v2049 = vpack.c.b16 %v2013, %v2010
    %v2050 = vpack.c.b16 %v2017, %v2014
    %v2051 = vpack.c.b16 %v2018, %v2015
    %v2052 = vpack.c.b16 %v2019, %v2016
    %v2053 = vpack.c.b16 %v2023, %v2020
    %v2054 = vpack.c.b16 %v2024, %v2021
    %v2055 = vpack.c.b16 %v2025, %v2022
    %v2056 = vpack.c.b16 %v2029, %v2026
    %v2057 = vpack.c.b16 %v2030, %v2027
    %v2058 = vpack.c.b16 %v2031, %v2028
    %v2059 = vpack.c.b16 %v2035, %v2032
    %v2060 = vpack.c.b16 %v2036, %v2033
    %v2061 = vpack.c.b16 %v2037, %v2034
    %2086 = vmatprep.subr.bf16.mxu0 %v2039
    %2087 = vmatpush1.bf16.msra.mxu0 %v2038
    %2088 = vmatprep.subr.bf16.mxu0 %v2042
    %2089 = vmatpush1.bf16.msra.mxu0 %v2041
    %2090 = vmatprep.subr.bf16.mxu0 %v2045
    %2091 = vmatpush1.bf16.msra.mxu0 %v2044
    %2092 = vmatprep.subr.bf16.mxu0 %v2048
    %2093 = vmatpush1.bf16.msra.mxu0 %v2047
    %2094 = vmatprep.subr.bf16.mxu0 %v2051
    %2095 = vmatpush1.bf16.msra.mxu0 %v2050
    %2096 = vmatprep.subr.bf16.mxu0 %v2054
    %2097 = vmatpush1.bf16.msra.mxu0 %v2053
    %2098 = vmatprep.subr.bf16.mxu0 %v2057
    %2099 = vmatpush1.bf16.msra.mxu0 %v2056
    %2100 = vmatprep.subr.bf16.mxu0 %v2060
    %2101 = vmatpush1.bf16.msra.mxu0 %v2059
    %2102 = vmatprep.subr.bf16.mxu0 0
    %2103 = vmatpush1.bf16.msra.mxu0 0
    %2104 = vmatprep.subr.bf16.mxu0 0
    %2105 = vmatpush1.bf16.msra.mxu0 0
    %2106 = vmatprep.subr.bf16.mxu0 0
    %2107 = vmatpush1.bf16.msra.mxu0 0
    %2108 = vmatprep.subr.bf16.mxu0 0
    %2109 = vmatpush1.bf16.msra.mxu0 0
    %2110 = vmatprep.subr.bf16.mxu0 0
    %2111 = vmatpush1.bf16.msra.mxu0 0
    %2112 = vmatprep.subr.bf16.mxu0 0
    %2113 = vmatpush1.bf16.msra.mxu0 0
    %2114 = vmatprep.subr.bf16.mxu0 0
    %2115 = vmatpush1.bf16.msra.mxu0 0
    %2116 = vmatprep.subr.bf16.mxu0 0
    %2117 = vmatpush1.bf16.msra.mxu0 0
    %2118 = vmatprep.mubr.bf16.mxu0 0
    %2119 = vmatmul.mubr.bf16.gmra.mrb[0].mxu0 %v1917
    %v2120 = vpop.f32.mrb[0].mxu0
    %v2121 = vadd.f32 0.0, %v2120
    %v2122 = vpop.f32.mrb[0].mxu0
    %v2123 = vadd.f32 0.0, %v2122
    %v2124 = vpop.f32.mrb[0].mxu0
    %v2125 = vpop.f32.mrb[0].mxu0
    %2126 = vdwg.mxu0
    %2127 = vmatprep.subr.bf16.mxu0 0
    %2128 = vmatpush1.bf16.msra.mxu0 %v2040
    %2129 = vmatprep.subr.bf16.mxu0 0
    %2130 = vmatpush1.bf16.msra.mxu0 %v2043
    %2131 = vmatprep.subr.bf16.mxu0 0
    %2132 = vmatpush1.bf16.msra.mxu0 %v2046
    %2133 = vmatprep.subr.bf16.mxu0 0
    %2134 = vmatpush1.bf16.msra.mxu0 %v2049
    %2135 = vmatprep.subr.bf16.mxu0 0
    %2136 = vmatpush1.bf16.msra.mxu0 %v2052
    %2137 = vmatprep.subr.bf16.mxu0 0
    %2138 = vmatpush1.bf16.msra.mxu0 %v2055
    %2139 = vmatprep.subr.bf16.mxu0 0
    %2140 = vmatpush1.bf16.msra.mxu0 %v2058
    %2141 = vmatprep.subr.bf16.mxu0 0
    %2142 = vmatpush1.bf16.msra.mxu0 %v2061
    %2143 = vmatprep.subr.bf16.mxu0 0
    %2144 = vmatpush1.bf16.msra.mxu0 0
    %2145 = vmatprep.subr.bf16.mxu0 0
    %2146 = vmatpush1.bf16.msra.mxu0 0
    %2147 = vmatprep.subr.bf16.mxu0 0
    %2148 = vmatpush1.bf16.msra.mxu0 0
    %2149 = vmatprep.subr.bf16.mxu0 0
    %2150 = vmatpush1.bf16.msra.mxu0 0
    %2151 = vmatprep.subr.bf16.mxu0 0
    %2152 = vmatpush1.bf16.msra.mxu0 0
    %2153 = vmatprep.subr.bf16.mxu0 0
    %2154 = vmatpush1.bf16.msra.mxu0 0
    %2155 = vmatprep.subr.bf16.mxu0 0
    %2156 = vmatpush1.bf16.msra.mxu0 0
    %2157 = vmatprep.subr.bf16.mxu0 0
    %2158 = vmatpush1.bf16.msra.mxu0 0
    %2159 = vmatprep.mubr.bf16.mxu0 0
    %2160 = vmatmul.mubr.bf16.gmra.mrb[0].mxu0 %v1917
    %v2161 = vpop.f32.mrb[0].mxu0
    %v2162 = vadd.f32 0.0, %v2161
    %v2163 = vpop.f32.mrb[0].mxu0
    %v2164 = vpop.f32.mrb[0].mxu0
    %v2165 = vpop.f32.mrb[0].mxu0
    %2166 = vdwg.mxu0
    %v2167 = vadd.f32 %v1923, %v2121
    %v2168 = vxor.u32 %v2167, 2147483648
    %v2169 = vmul.f32 %v2168, 1.442695
    %v2170 = vpow.pop %v2169
    %v2171 = vadd.f32 %v2170, 1.0
    %v2172 = vrcp.pop %v2171
    %v2173 = vmul.f32 1.0, %v2172
    %v2174 = vadd.f32 %v1924, %v2123
    %v2175 = vxor.u32 %v2174, 2147483648
    %v2176 = vmul.f32 %v2175, 1.442695
    %v2177 = vpow.pop %v2176
    %v2178 = vadd.f32 %v2177, 1.0
    %v2179 = vrcp.pop %v2178
    %v2180 = vmul.f32 1.0, %v2179
    %v2181 = vadd.f32 %v2162, %v285
    %v2182 = vmul.f32 %v2173, %v2181
    %v2183 = vadd.f32 %v1925, %v2182
    %v2184 = vtanh.pop %v2183
    %v2185 = vsub.f32 1.0, %v2180
    %v2186 = vmul.f32 %v2185, %v2184
    %v2187 = vmul.f32 %v2180, %v1916
    %v2188 = vadd.f32 %v2186, %v2187
    %v2189 = vpack.c.bf16 %v2188, %v2188
    %s2190 = scalar_lea.vmem %s5, 24
    %2191 = vst [vmem:[%s2190] sm:$0xf] %v2189
    %s2192 = smul.u32 7, 3
    %s2193 = smul.addr %s2192, 8
    %s2194 = scalar_lea.vmem [#allocation3], %s2193
    %v2195 = vld [vmem:[%s2194] sm:$0xff]
    %v2196 = vld [vmem:[%s2194 + $0x8] sm:$0xff]
    %v2197 = vld [vmem:[%s2194 + $0x10] sm:$0xff]
    %v2198 = vld [vmem:[#allocation4] sm:$0xff]
    %v2199 = vld [vmem:[#allocation4 + $0x8] sm:$0xf]
    %v2200 = vld [vmem:[#allocation4 + $0xc] sm:$0xff]
    %v2201 = vld [vmem:[#allocation4 + $0x14] sm:$0xf]
    %v2202 = vld [vmem:[#allocation4 + $0x18] sm:$0xff]
    %v2203 = vld [vmem:[#allocation4 + $0x20] sm:$0xf]
    %v2204 = vld [vmem:[#allocation4 + $0x24] sm:$0xff]
    %v2205 = vld [vmem:[#allocation4 + $0x2c] sm:$0xf]
    %v2206 = vld [vmem:[#allocation4 + $0x30] sm:$0xff]
    %v2207 = vld [vmem:[#allocation4 + $0x38] sm:$0xf]
    %v2208 = vld [vmem:[#allocation4 + $0x3c] sm:$0xff]
    %v2209 = vld [vmem:[#allocation4 + $0x44] sm:$0xf]
    %v2210 = vld [vmem:[#allocation4 + $0x48] sm:$0xff]
    %v2211 = vld [vmem:[#allocation4 + $0x50] sm:$0xf]
    %v2212 = vld [vmem:[#allocation4 + $0x54] sm:$0xff]
    %v2213 = vld [vmem:[#allocation4 + $0x5c] sm:$0xf]
    %v2214 = vld [vmem:[#allocation4 + $0x60] sm:$0xff]
    %v2215 = vld [vmem:[#allocation4 + $0x68] sm:$0xf]
    %v2216 = vld [vmem:[#allocation4 + $0x6c] sm:$0xff]
    %v2217 = vld [vmem:[#allocation4 + $0x74] sm:$0xf]
    %v2218 = vld [vmem:[#allocation4 + $0x78] sm:$0xff]
    %v2219 = vld [vmem:[#allocation4 + $0x80] sm:$0xf]
    %v2220 = vld [vmem:[#allocation4 + $0x84] sm:$0xff]
    %v2221 = vld [vmem:[#allocation4 + $0x8c] sm:$0xf]
    %v2222 = vld [vmem:[#allocation4 + $0x90] sm:$0xff]
    %v2223 = vld [vmem:[#allocation4 + $0x98] sm:$0xf]
    %v2224 = vld [vmem:[#allocation4 + $0x9c] sm:$0xff]
    %v2225 = vld [vmem:[#allocation4 + $0xa4] sm:$0xf]
    %v2226 = vld [vmem:[#allocation4 + $0xa8] sm:$0xff]
    %v2227 = vld [vmem:[#allocation4 + $0xb0] sm:$0xf]
    %v2228 = vld [vmem:[#allocation4 + $0xb4] sm:$0xff]
    %v2229 = vld [vmem:[#allocation4 + $0xbc] sm:$0xf]
    %v2262 = vunpack.c.l.b16 %v2198
    %v2263 = vunpack.c.h.b16 %v2198
    %v2264 = vunpack.c.l.b16 %v2199
    %v2265 = vunpack.c.l.b16 %v2200
    %v2266 = vunpack.c.h.b16 %v2200
    %v2267 = vunpack.c.l.b16 %v2201
    %v2268 = vunpack.c.l.b16 %v2202
    %v2269 = vunpack.c.h.b16 %v2202
    %v2270 = vunpack.c.l.b16 %v2203
    %v2271 = vunpack.c.l.b16 %v2204
    %v2272 = vunpack.c.h.b16 %v2204
    %v2273 = vunpack.c.l.b16 %v2205
    %v2274 = vunpack.c.l.b16 %v2206
    %v2275 = vunpack.c.h.b16 %v2206
    %v2276 = vunpack.c.l.b16 %v2207
    %v2277 = vunpack.c.l.b16 %v2208
    %v2278 = vunpack.c.h.b16 %v2208
    %v2279 = vunpack.c.l.b16 %v2209
    %v2280 = vunpack.c.l.b16 %v2210
    %v2281 = vunpack.c.h.b16 %v2210
    %v2282 = vunpack.c.l.b16 %v2211
    %v2283 = vunpack.c.l.b16 %v2212
    %v2284 = vunpack.c.h.b16 %v2212
    %v2285 = vunpack.c.l.b16 %v2213
    %v2286 = vunpack.c.l.b16 %v2214
    %v2287 = vunpack.c.h.b16 %v2214
    %v2288 = vunpack.c.l.b16 %v2215
    %v2289 = vunpack.c.l.b16 %v2216
    %v2290 = vunpack.c.h.b16 %v2216
    %v2291 = vunpack.c.l.b16 %v2217
    %v2292 = vunpack.c.l.b16 %v2218
    %v2293 = vunpack.c.h.b16 %v2218
    %v2294 = vunpack.c.l.b16 %v2219
    %v2295 = vunpack.c.l.b16 %v2220
    %v2296 = vunpack.c.h.b16 %v2220
    %v2297 = vunpack.c.l.b16 %v2221
    %v2298 = vunpack.c.l.b16 %v2222
    %v2299 = vunpack.c.h.b16 %v2222
    %v2300 = vunpack.c.l.b16 %v2223
    %v2301 = vunpack.c.l.b16 %v2224
    %v2302 = vunpack.c.h.b16 %v2224
    %v2303 = vunpack.c.l.b16 %v2225
    %v2304 = vunpack.c.l.b16 %v2226
    %v2305 = vunpack.c.h.b16 %v2226
    %v2306 = vunpack.c.l.b16 %v2227
    %v2307 = vunpack.c.l.b16 %v2228
    %v2308 = vunpack.c.h.b16 %v2228
    %v2309 = vunpack.c.l.b16 %v2229
    %v2310 = vpack.c.b16 %v2265, %v2262
    %v2311 = vpack.c.b16 %v2266, %v2263
    %v2312 = vpack.c.b16 %v2267, %v2264
    %v2313 = vpack.c.b16 %v2271, %v2268
    %v2314 = vpack.c.b16 %v2272, %v2269
    %v2315 = vpack.c.b16 %v2273, %v2270
    %v2316 = vpack.c.b16 %v2277, %v2274
    %v2317 = vpack.c.b16 %v2278, %v2275
    %v2318 = vpack.c.b16 %v2279, %v2276
    %v2319 = vpack.c.b16 %v2283, %v2280
    %v2320 = vpack.c.b16 %v2284, %v2281
    %v2321 = vpack.c.b16 %v2285, %v2282
    %v2322 = vpack.c.b16 %v2289, %v2286
    %v2323 = vpack.c.b16 %v2290, %v2287
    %v2324 = vpack.c.b16 %v2291, %v2288
    %v2325 = vpack.c.b16 %v2295, %v2292
    %v2326 = vpack.c.b16 %v2296, %v2293
    %v2327 = vpack.c.b16 %v2297, %v2294
    %v2328 = vpack.c.b16 %v2301, %v2298
    %v2329 = vpack.c.b16 %v2302, %v2299
    %v2330 = vpack.c.b16 %v2303, %v2300
    %v2331 = vpack.c.b16 %v2307, %v2304
    %v2332 = vpack.c.b16 %v2308, %v2305
    %v2333 = vpack.c.b16 %v2309, %v2306
    %2358 = vmatprep.subr.bf16.mxu0 %v2311
    %2359 = vmatpush1.bf16.msra.mxu0 %v2310
    %2360 = vmatprep.subr.bf16.mxu0 %v2314
    %2361 = vmatpush1.bf16.msra.mxu0 %v2313
    %2362 = vmatprep.subr.bf16.mxu0 %v2317
    %2363 = vmatpush1.bf16.msra.mxu0 %v2316
    %2364 = vmatprep.subr.bf16.mxu0 %v2320
    %2365 = vmatpush1.bf16.msra.mxu0 %v2319
    %2366 = vmatprep.subr.bf16.mxu0 %v2323
    %2367 = vmatpush1.bf16.msra.mxu0 %v2322
    %2368 = vmatprep.subr.bf16.mxu0 %v2326
    %2369 = vmatpush1.bf16.msra.mxu0 %v2325
    %2370 = vmatprep.subr.bf16.mxu0 %v2329
    %2371 = vmatpush1.bf16.msra.mxu0 %v2328
    %2372 = vmatprep.subr.bf16.mxu0 %v2332
    %2373 = vmatpush1.bf16.msra.mxu0 %v2331
    %2374 = vmatprep.subr.bf16.mxu0 0
    %2375 = vmatpush1.bf16.msra.mxu0 0
    %2376 = vmatprep.subr.bf16.mxu0 0
    %2377 = vmatpush1.bf16.msra.mxu0 0
    %2378 = vmatprep.subr.bf16.mxu0 0
    %2379 = vmatpush1.bf16.msra.mxu0 0
    %2380 = vmatprep.subr.bf16.mxu0 0
    %2381 = vmatpush1.bf16.msra.mxu0 0
    %2382 = vmatprep.subr.bf16.mxu0 0
    %2383 = vmatpush1.bf16.msra.mxu0 0
    %2384 = vmatprep.subr.bf16.mxu0 0
    %2385 = vmatpush1.bf16.msra.mxu0 0
    %2386 = vmatprep.subr.bf16.mxu0 0
    %2387 = vmatpush1.bf16.msra.mxu0 0
    %2388 = vmatprep.subr.bf16.mxu0 0
    %2389 = vmatpush1.bf16.msra.mxu0 0
    %2390 = vmatprep.mubr.bf16.mxu0 0
    %2391 = vmatmul.mubr.bf16.gmra.mrb[0].mxu0 %v2189
    %v2392 = vpop.f32.mrb[0].mxu0
    %v2393 = vadd.f32 0.0, %v2392
    %v2394 = vpop.f32.mrb[0].mxu0
    %v2395 = vadd.f32 0.0, %v2394
    %v2396 = vpop.f32.mrb[0].mxu0
    %v2397 = vpop.f32.mrb[0].mxu0
    %2398 = vdwg.mxu0
    %2399 = vmatprep.subr.bf16.mxu0 0
    %2400 = vmatpush1.bf16.msra.mxu0 %v2312
    %2401 = vmatprep.subr.bf16.mxu0 0
    %2402 = vmatpush1.bf16.msra.mxu0 %v2315
    %2403 = vmatprep.subr.bf16.mxu0 0
    %2404 = vmatpush1.bf16.msra.mxu0 %v2318
    %2405 = vmatprep.subr.bf16.mxu0 0
    %2406 = vmatpush1.bf16.msra.mxu0 %v2321
    %2407 = vmatprep.subr.bf16.mxu0 0
    %2408 = vmatpush1.bf16.msra.mxu0 %v2324
    %2409 = vmatprep.subr.bf16.mxu0 0
    %2410 = vmatpush1.bf16.msra.mxu0 %v2327
    %2411 = vmatprep.subr.bf16.mxu0 0
    %2412 = vmatpush1.bf16.msra.mxu0 %v2330
    %2413 = vmatprep.subr.bf16.mxu0 0
    %2414 = vmatpush1.bf16.msra.mxu0 %v2333
    %2415 = vmatprep.subr.bf16.mxu0 0
    %2416 = vmatpush1.bf16.msra.mxu0 0
    %2417 = vmatprep.subr.bf16.mxu0 0
    %2418 = vmatpush1.bf16.msra.mxu0 0
    %2419 = vmatprep.subr.bf16.mxu0 0
    %2420 = vmatpush1.bf16.msra.mxu0 0
    %2421 = vmatprep.subr.bf16.mxu0 0
    %2422 = vmatpush1.bf16.msra.mxu0 0
    %2423 = vmatprep.subr.bf16.mxu0 0
    %2424 = vmatpush1.bf16.msra.mxu0 0
    %2425 = vmatprep.subr.bf16.mxu0 0
    %2426 = vmatpush1.bf16.msra.mxu0 0
    %2427 = vmatprep.subr.bf16.mxu0 0
    %2428 = vmatpush1.bf16.msra.mxu0 0
    %2429 = vmatprep.subr.bf16.mxu0 0
    %2430 = vmatpush1.bf16.msra.mxu0 0
    %2431 = vmatprep.mubr.bf16.mxu0 0
    %2432 = vmatmul.mubr.bf16.gmra.mrb[0].mxu0 %v2189
    %v2433 = vpop.f32.mrb[0].mxu0
    %v2434 = vadd.f32 0.0, %v2433
    %v2435 = vpop.f32.mrb[0].mxu0
    %v2436 = vpop.f32.mrb[0].mxu0
    %v2437 = vpop.f32.mrb[0].mxu0
    %2438 = vdwg.mxu0
    %v2439 = vadd.f32 %v2195, %v2393
    %v2440 = vxor.u32 %v2439, 2147483648
    %v2441 = vmul.f32 %v2440, 1.442695
    %v2442 = vpow.pop %v2441
    %v2443 = vadd.f32 %v2442, 1.0
    %v2444 = vrcp.pop %v2443
    %v2445 = vmul.f32 1.0, %v2444
    %v2446 = vadd.f32 %v2196, %v2395
    %v2447 = vxor.u32 %v2446, 2147483648
    %v2448 = vmul.f32 %v2447, 1.442695
    %v2449 = vpow.pop %v2448
    %v2450 = vadd.f32 %v2449, 1.0
    %v2451 = vrcp.pop %v2450
    %v2452 = vmul.f32 1.0, %v2451
    %v2453 = vadd.f32 %v2434, %v285
    %v2454 = vmul.f32 %v2445, %v2453
    %v2455 = vadd.f32 %v2197, %v2454
    %v2456 = vtanh.pop %v2455
    %v2457 = vsub.f32 1.0, %v2452
    %v2458 = vmul.f32 %v2457, %v2456
    %v2459 = vmul.f32 %v2452, %v2188
    %v2460 = vadd.f32 %v2458, %v2459
    %v2461 = vpack.c.bf16 %v2460, %v2460
    %s2462 = scalar_lea.vmem %s5, 28
    %2463 = vst [vmem:[%s2462] sm:$0xf] %v2461
    %2464 = vst [vmem:[#allocation2] sm:$0xff] %v2460
    // Predicated region
    $region30: #{gru_model_forward.3} parent=1 // pred_check
      _
    $region31: #{gru_model_forward.3} parent=1 // pred_check_branch
      %2466 = sbr.rel (0) target = $region33
    $region32: #{gru_model_forward.3} parent=1 // pred_region
      _
    $region33: #{gru_model_forward.3} parent=1 // pred_fallthru
      _
    // Predicated region
    $region34: #{gru_model_forward.3} parent=1 // pred_check
      _
    $region35: #{gru_model_forward.3} parent=1 // pred_check_branch
      %2468 = sbr.rel (0) target = $region37
    $region36: #{gru_model_forward.3} parent=1 // pred_region
      _
    $region37: #{gru_model_forward.3} parent=1 // pred_fallthru
      _
    %2469 = vsyncpa [#allocation5], 1

</llo_original>
